<compile_context>
chip_gen: v7x
topology: tpu7x:2x2x1
jax: 0.10.0
libtpu: 0.0.40
codegen_flags: <defaults>
</compile_context>

<pallas_src>
import functools

import jax
import jax.numpy as jnp
from jax import lax
from jax.experimental import pallas as pl
from jax.experimental.pallas import tpu as pltpu


def _self_attn1d_kernel(x_ref, gamma_ref, beta_ref, wqkv_ref, bqkv_ref,
                        wout_ref, bout_ref, o_ref, *, n_head, eps, k_chunk):
    # x_ref: (S, C) channel-last slab for one batch element.
    x = x_ref[...].astype(jnp.float32)
    S, C = x.shape
    d = C // n_head

    # --- GroupNorm(1, C): stats over all C*S elements of this sample ----------
    mean = jnp.mean(x)
    var = jnp.mean(jnp.square(x - mean))          # biased, matches PyTorch
    inv = lax.rsqrt(var + eps)
    xn = (x - mean) * inv
    xn = xn * gamma_ref[...].astype(jnp.float32) + beta_ref[...].astype(jnp.float32)

    # --- QKV projection (1x1 conv == matmul on the MXU) -----------------------
    qkv = jnp.dot(xn, wqkv_ref[...].astype(jnp.float32),
                  preferred_element_type=jnp.float32)
    qkv = qkv + bqkv_ref[...].astype(jnp.float32)          # (S, 3C)

    # --- per-head attention, flash-style online softmax over K chunks ---------
    scale = float(d) ** (-0.5)                    # == (d**-0.25) applied to q and k
    n_chunks = S // k_chunk
    y_heads = []
    for h in range(n_head):
        q = qkv[:, h * d:(h + 1) * d] * scale                       # (S, d)
        k = qkv[:, (n_head + h) * d:(n_head + h + 1) * d]           # (S, d)
        v = qkv[:, (2 * n_head + h) * d:(2 * n_head + h + 1) * d]   # (S, d)

        m = jnp.full((S, 1), -jnp.inf, jnp.float32)
        l = jnp.zeros((S, 1), jnp.float32)
        acc = jnp.zeros((S, d), jnp.float32)
        for j in range(n_chunks):
            kj = k[j * k_chunk:(j + 1) * k_chunk, :]
            vj = v[j * k_chunk:(j + 1) * k_chunk, :]
            s_blk = jnp.dot(q, kj.T, preferred_element_type=jnp.float32)
            m_new = jnp.maximum(m, s_blk.max(axis=-1, keepdims=True))
            alpha = jnp.exp(m - m_new)
            p = jnp.exp(s_blk - m_new)
            l = alpha * l + p.sum(axis=-1, keepdims=True)
            acc = alpha * acc + jnp.dot(p, vj, preferred_element_type=jnp.float32)
            m = m_new
        y_heads.append(acc * pl.reciprocal(l, approx=True))

    y = jnp.concatenate(y_heads, axis=-1)                           # (S, C)

    # --- output projection + residual ------------------------------------------
    out = jnp.dot(y, wout_ref[...].astype(jnp.float32),
                  preferred_element_type=jnp.float32)
    out = out + bout_ref[...].astype(jnp.float32)
    o_ref[...] = (x + out).astype(o_ref.dtype)


def self_attention_1d_forward(x, gamma, beta, w_qkv, b_qkv, w_out, b_out,
                              *, n_head, eps=1e-5):
    """Pallas implementation of SelfAttention1d.forward.

    Args:
      x:      (N, C, S) input (PyTorch Conv1d layout).
      gamma, beta:      (C,) GroupNorm affine parameters.
      w_qkv:  (3C, C)   qkv_proj weight (Conv1d kernel size 1, squeezed).
      b_qkv:  (3C,)     qkv_proj bias.
      w_out:  (C, C)    out_proj weight.
      b_out:  (C,)      out_proj bias.
      n_head: number of attention heads (C % n_head == 0).
    Returns:
      (N, C, S) output, same dtype as x.
    """
    n, c, s = x.shape
    assert c % n_head == 0

    # Channel-last layout: lanes = channels (lane-dense), matmuls are natural.
    x_t = jnp.transpose(x, (0, 2, 1))           # (N, S, C)
    w_qkv_t = w_qkv.T                           # (C, 3C)
    w_out_t = w_out.T                           # (C, C)
    gamma2 = gamma.reshape(1, c)
    beta2 = beta.reshape(1, c)
    b_qkv2 = b_qkv.reshape(1, 3 * c)
    b_out2 = b_out.reshape(1, c)

    k_chunk = s if s <= 512 else 512
    assert s % k_chunk == 0, "sequence length must be a multiple of the K chunk"

    kernel = functools.partial(_self_attn1d_kernel,
                               n_head=n_head, eps=eps, k_chunk=k_chunk)

    out_t = pl.pallas_call(
        kernel,
        out_shape=jax.ShapeDtypeStruct((n, s, c), x.dtype),
        grid=(n,),
        in_specs=[
            pl.BlockSpec((None, s, c), lambda i: (i, 0, 0)),   # x (per-batch slab)
            pl.BlockSpec((1, c), lambda i: (0, 0)),            # gamma
            pl.BlockSpec((1, c), lambda i: (0, 0)),            # beta
            pl.BlockSpec((c, 3 * c), lambda i: (0, 0)),        # Wqkv^T
            pl.BlockSpec((1, 3 * c), lambda i: (0, 0)),        # bqkv
            pl.BlockSpec((c, c), lambda i: (0, 0)),            # Wout^T
            pl.BlockSpec((1, c), lambda i: (0, 0)),            # bout
        ],
        out_specs=pl.BlockSpec((None, s, c), lambda i: (i, 0, 0)),
        compiler_params=pltpu.CompilerParams(
            dimension_semantics=("parallel",),
            vmem_limit_bytes=32 * 1024 * 1024,
        ),
    )(x_t, gamma2, beta2, w_qkv_t, b_qkv2, w_out_t, b_out2)

    return jnp.transpose(out_t, (0, 2, 1))


def _reference_forward(x, gamma, beta, w_qkv, b_qkv, w_out, b_out, n_head,
                       eps=1e-5):
    """Pure-JAX mirror of the PyTorch module (for correctness checking)."""
    n, c, s = x.shape
    d = c // n_head
    mean = jnp.mean(x, axis=(1, 2), keepdims=True)
    var = jnp.mean(jnp.square(x - mean), axis=(1, 2), keepdims=True)
    xn = (x - mean) / jnp.sqrt(var + eps)
    xn = xn * gamma[None, :, None] + beta[None, :, None]
    qkv = jnp.einsum("oc,ncs->nos", w_qkv, xn) + b_qkv[None, :, None]
    qkv = qkv.reshape(n, 3 * n_head, d, s).transpose(0, 1, 3, 2)
    q, k, v = jnp.split(qkv, 3, axis=1)
    scale = float(d) ** (-0.25)
    att = jax.nn.softmax((q * scale) @ (jnp.swapaxes(k, 2, 3) * scale), axis=3)
    y = jnp.swapaxes(att @ v, 2, 3).reshape(n, c, s)
    out = jnp.einsum("oc,ncs->nos", w_out, y) + b_out[None, :, None]
    return x + out


if __name__ == "__main__":
    key = jax.random.PRNGKey(0)
    n, c, s_len, n_head = 2, 128, 128, 4
    ks = jax.random.split(key, 7)

    x = jax.random.normal(ks[0], (n, c, s_len), jnp.float32)
    gamma = 1.0 + 0.1 * jax.random.normal(ks[1], (c,), jnp.float32)
    beta = 0.1 * jax.random.normal(ks[2], (c,), jnp.float32)
    w_qkv = jax.random.normal(ks[3], (3 * c, c), jnp.float32) / jnp.sqrt(c)
    b_qkv = 0.1 * jax.random.normal(ks[4], (3 * c,), jnp.float32)
    w_out = jax.random.normal(ks[5], (c, c), jnp.float32) / jnp.sqrt(c)
    b_out = 0.1 * jax.random.normal(ks[6], (c,), jnp.float32)

    y = self_attention_1d_forward(x, gamma, beta, w_qkv, b_qkv, w_out, b_out,
                                  n_head=n_head)
    jax.block_until_ready(y)

    y_ref = _reference_forward(x, gamma, beta, w_qkv, b_qkv, w_out, b_out, n_head)
    assert y.shape == x.shape and y.dtype == x.dtype
    max_err = float(jnp.max(jnp.abs(y - y_ref)))
    assert max_err < 3e-2, f"max abs error too large: {max_err}"

    print("KERNEL_OK")
</pallas_src>

<mosaic_0001>
module attributes {stable_mosaic.version = 11 : i64} {
  func.func @_self_attn1d_kernel(%arg0: i32, %arg1: memref<1x128x128xf32, #tpu.memory_space<vmem>>, %arg2: memref<1x128xf32, #tpu.memory_space<vmem>>, %arg3: memref<1x128xf32, #tpu.memory_space<vmem>>, %arg4: memref<128x384xf32, #tpu.memory_space<vmem>>, %arg5: memref<1x384xf32, #tpu.memory_space<vmem>>, %arg6: memref<128x128xf32, #tpu.memory_space<vmem>>, %arg7: memref<1x128xf32, #tpu.memory_space<vmem>>, %arg8: memref<1x128x128xf32, #tpu.memory_space<vmem>>) attributes {dimension_semantics = [#tpu.dimension_semantics<parallel>], iteration_bounds = array<i64: 2>, scalar_prefetch = 0 : i64, scratch_operands = 0 : i64, tpu.core_type = #tpu.core_type<tc>, window_params = [{transform_indices = @transform_0, window_bounds = array<i64: 1, 128, 128>}, {pipeline_mode = #tpu.pipeline_mode<synchronous>, transform_indices = @transform_1, window_bounds = array<i64: 1, 128>}, {pipeline_mode = #tpu.pipeline_mode<synchronous>, transform_indices = @transform_2, window_bounds = array<i64: 1, 128>}, {pipeline_mode = #tpu.pipeline_mode<synchronous>, transform_indices = @transform_3, window_bounds = array<i64: 128, 384>}, {pipeline_mode = #tpu.pipeline_mode<synchronous>, transform_indices = @transform_4, window_bounds = array<i64: 1, 384>}, {pipeline_mode = #tpu.pipeline_mode<synchronous>, transform_indices = @transform_5, window_bounds = array<i64: 128, 128>}, {pipeline_mode = #tpu.pipeline_mode<synchronous>, transform_indices = @transform_6, window_bounds = array<i64: 1, 128>}, {transform_indices = @transform_7, window_bounds = array<i64: 1, 128, 128>}]} {
    %c0 = arith.constant 0 : index
    %c0_0 = arith.constant 0 : index
    %c0_1 = arith.constant 0 : index
    %0 = vector.load %arg1[%c0, %c0_0, %c0_1] : memref<1x128x128xf32, #tpu.memory_space<vmem>>, vector<1x128x128xf32>
    %1 = vector.shape_cast %0 : vector<1x128x128xf32> to vector<128x128xf32>
    %2 = vector.shape_cast %1 : vector<128x128xf32> to vector<1x128x128xf32>
    %cst = arith.constant dense<0.000000e+00> : vector<1xf32>
    %3 = vector.multi_reduction <add>, %2, %cst [1, 2] : vector<1x128x128xf32> to vector<1xf32>
    %4 = vector.shape_cast %3 : vector<1xf32> to vector<1x1x1xf32>
    %5 = vector.extract %4[0, 0, 0] : f32 from vector<1x1x1xf32>
    %cst_2 = arith.constant 1.638400e+04 : f32
    %6 = arith.divf %5, %cst_2 : f32
    %7 = vector.broadcast %6 : f32 to vector<128x128xf32>
    %8 = arith.subf %1, %7 : vector<128x128xf32>
    %9 = arith.mulf %8, %8 : vector<128x128xf32>
    %10 = vector.shape_cast %9 : vector<128x128xf32> to vector<1x128x128xf32>
    %cst_3 = arith.constant dense<0.000000e+00> : vector<1xf32>
    %11 = vector.multi_reduction <add>, %10, %cst_3 [1, 2] : vector<1x128x128xf32> to vector<1xf32>
    %12 = vector.shape_cast %11 : vector<1xf32> to vector<1x1x1xf32>
    %13 = vector.extract %12[0, 0, 0] : f32 from vector<1x1x1xf32>
    %cst_4 = arith.constant 1.638400e+04 : f32
    %14 = arith.divf %13, %cst_4 : f32
    %cst_5 = arith.constant 9.99999974E-6 : f32
    %15 = arith.addf %14, %cst_5 : f32
    %16 = math.rsqrt %15 : f32
    %17 = vector.broadcast %6 : f32 to vector<128x128xf32>
    %18 = arith.subf %1, %17 : vector<128x128xf32>
    %19 = vector.broadcast %16 : f32 to vector<128x128xf32>
    %20 = arith.mulf %18, %19 : vector<128x128xf32>
    %c0_6 = arith.constant 0 : index
    %c0_7 = arith.constant 0 : index
    %21 = vector.load %arg2[%c0_6, %c0_7] : memref<1x128xf32, #tpu.memory_space<vmem>>, vector<1x128xf32>
    %22 = vector.broadcast %21 : vector<1x128xf32> to vector<128x128xf32>
    %23 = arith.mulf %20, %22 : vector<128x128xf32>
    %c0_8 = arith.constant 0 : index
    %c0_9 = arith.constant 0 : index
    %24 = vector.load %arg3[%c0_8, %c0_9] : memref<1x128xf32, #tpu.memory_space<vmem>>, vector<1x128xf32>
    %25 = vector.broadcast %24 : vector<1x128xf32> to vector<128x128xf32>
    %26 = arith.addf %23, %25 : vector<128x128xf32>
    %c0_10 = arith.constant 0 : index
    %c0_11 = arith.constant 0 : index
    %27 = vector.load %arg4[%c0_10, %c0_11] : memref<128x384xf32, #tpu.memory_space<vmem>>, vector<128x384xf32>
    %cst_12 = arith.constant dense<0.000000e+00> : vector<128x384xf32>
    %28 = tpu.matmul %26, %27, %cst_12 {dimension_numbers = #tpu.dot_dimension_numbers<[1], [0], [0], [1], [0, 0, 1, 1], [], []>} : vector<128x128xf32>, vector<128x384xf32>, vector<128x384xf32> -> vector<128x384xf32>
    %c0_13 = arith.constant 0 : index
    %c0_14 = arith.constant 0 : index
    %29 = vector.load %arg5[%c0_13, %c0_14] : memref<1x384xf32, #tpu.memory_space<vmem>>, vector<1x384xf32>
    %30 = vector.broadcast %29 : vector<1x384xf32> to vector<128x384xf32>
    %31 = arith.addf %28, %30 : vector<128x384xf32>
    %32 = vector.extract_strided_slice %31 {offsets = [0, 0], sizes = [128, 32], strides = [1, 1]} : vector<128x384xf32> to vector<128x32xf32>
    %cst_15 = arith.constant 0.176776692 : f32
    %33 = vector.broadcast %cst_15 : f32 to vector<128x32xf32>
    %34 = arith.mulf %32, %33 : vector<128x32xf32>
    %35 = vector.extract_strided_slice %31 {offsets = [0, 128], sizes = [128, 32], strides = [1, 1]} : vector<128x384xf32> to vector<128x32xf32>
    %36 = vector.extract_strided_slice %31 {offsets = [0, 256], sizes = [128, 32], strides = [1, 1]} : vector<128x384xf32> to vector<128x32xf32>
    %cst_16 = arith.constant 0xFF800000 : f32
    %37 = vector.broadcast %cst_16 : f32 to vector<128x1xf32>
    %cst_17 = arith.constant 0.000000e+00 : f32
    %38 = vector.broadcast %cst_17 : f32 to vector<128x1xf32>
    %cst_18 = arith.constant 0.000000e+00 : f32
    %39 = vector.broadcast %cst_18 : f32 to vector<128x32xf32>
    %40 = tpu.transpose %35, [1, 0] : vector<128x32xf32> -> vector<32x128xf32>
    %cst_19 = arith.constant dense<0.000000e+00> : vector<128x128xf32>
    %41 = tpu.matmul %34, %40, %cst_19 {dimension_numbers = #tpu.dot_dimension_numbers<[1], [0], [0], [1], [0, 0, 1, 1], [], []>} : vector<128x32xf32>, vector<32x128xf32>, vector<128x128xf32> -> vector<128x128xf32>
    %cst_20 = arith.constant dense<0xFF800000> : vector<128xf32>
    %42 = vector.multi_reduction <maximumf>, %41, %cst_20 [1] : vector<128x128xf32> to vector<128xf32>
    %43 = vector.shape_cast %42 : vector<128xf32> to vector<128x1xf32>
    %44 = arith.maximumf %37, %43 : vector<128x1xf32>
    %45 = arith.subf %37, %44 : vector<128x1xf32>
    %46 = math.exp %45 : vector<128x1xf32>
    %47 = vector.broadcast %44 : vector<128x1xf32> to vector<128x128xf32>
    %48 = arith.subf %41, %47 : vector<128x128xf32>
    %49 = math.exp %48 : vector<128x128xf32>
    %50 = arith.mulf %46, %38 : vector<128x1xf32>
    %cst_21 = arith.constant dense<0.000000e+00> : vector<128xf32>
    %51 = vector.multi_reduction <add>, %49, %cst_21 [1] : vector<128x128xf32> to vector<128xf32>
    %52 = vector.shape_cast %51 : vector<128xf32> to vector<128x1xf32>
    %53 = arith.addf %50, %52 : vector<128x1xf32>
    %54 = vector.broadcast %46 : vector<128x1xf32> to vector<128x32xf32>
    %55 = arith.mulf %54, %39 : vector<128x32xf32>
    %cst_22 = arith.constant dense<0.000000e+00> : vector<128x32xf32>
    %56 = tpu.matmul %49, %36, %cst_22 {dimension_numbers = #tpu.dot_dimension_numbers<[1], [0], [0], [1], [0, 0, 1, 1], [], []>} : vector<128x128xf32>, vector<128x32xf32>, vector<128x32xf32> -> vector<128x32xf32>
    %57 = arith.addf %55, %56 : vector<128x32xf32>
    %58 = tpu.reciprocal %53 {approx = true} : vector<128x1xf32> -> vector<128x1xf32>
    %59 = vector.broadcast %58 : vector<128x1xf32> to vector<128x32xf32>
    %60 = arith.mulf %57, %59 : vector<128x32xf32>
    %61 = vector.extract_strided_slice %31 {offsets = [0, 32], sizes = [128, 32], strides = [1, 1]} : vector<128x384xf32> to vector<128x32xf32>
    %cst_23 = arith.constant 0.176776692 : f32
    %62 = vector.broadcast %cst_23 : f32 to vector<128x32xf32>
    %63 = arith.mulf %61, %62 : vector<128x32xf32>
    %64 = vector.extract_strided_slice %31 {offsets = [0, 160], sizes = [128, 32], strides = [1, 1]} : vector<128x384xf32> to vector<128x32xf32>
    %65 = vector.extract_strided_slice %31 {offsets = [0, 288], sizes = [128, 32], strides = [1, 1]} : vector<128x384xf32> to vector<128x32xf32>
    %cst_24 = arith.constant 0xFF800000 : f32
    %66 = vector.broadcast %cst_24 : f32 to vector<128x1xf32>
    %cst_25 = arith.constant 0.000000e+00 : f32
    %67 = vector.broadcast %cst_25 : f32 to vector<128x1xf32>
    %cst_26 = arith.constant 0.000000e+00 : f32
    %68 = vector.broadcast %cst_26 : f32 to vector<128x32xf32>
    %69 = tpu.transpose %64, [1, 0] : vector<128x32xf32> -> vector<32x128xf32>
    %cst_27 = arith.constant dense<0.000000e+00> : vector<128x128xf32>
    %70 = tpu.matmul %63, %69, %cst_27 {dimension_numbers = #tpu.dot_dimension_numbers<[1], [0], [0], [1], [0, 0, 1, 1], [], []>} : vector<128x32xf32>, vector<32x128xf32>, vector<128x128xf32> -> vector<128x128xf32>
    %cst_28 = arith.constant dense<0xFF800000> : vector<128xf32>
    %71 = vector.multi_reduction <maximumf>, %70, %cst_28 [1] : vector<128x128xf32> to vector<128xf32>
    %72 = vector.shape_cast %71 : vector<128xf32> to vector<128x1xf32>
    %73 = arith.maximumf %66, %72 : vector<128x1xf32>
    %74 = arith.subf %66, %73 : vector<128x1xf32>
    %75 = math.exp %74 : vector<128x1xf32>
    %76 = vector.broadcast %73 : vector<128x1xf32> to vector<128x128xf32>
    %77 = arith.subf %70, %76 : vector<128x128xf32>
    %78 = math.exp %77 : vector<128x128xf32>
    %79 = arith.mulf %75, %67 : vector<128x1xf32>
    %cst_29 = arith.constant dense<0.000000e+00> : vector<128xf32>
    %80 = vector.multi_reduction <add>, %78, %cst_29 [1] : vector<128x128xf32> to vector<128xf32>
    %81 = vector.shape_cast %80 : vector<128xf32> to vector<128x1xf32>
    %82 = arith.addf %79, %81 : vector<128x1xf32>
    %83 = vector.broadcast %75 : vector<128x1xf32> to vector<128x32xf32>
    %84 = arith.mulf %83, %68 : vector<128x32xf32>
    %cst_30 = arith.constant dense<0.000000e+00> : vector<128x32xf32>
    %85 = tpu.matmul %78, %65, %cst_30 {dimension_numbers = #tpu.dot_dimension_numbers<[1], [0], [0], [1], [0, 0, 1, 1], [], []>} : vector<128x128xf32>, vector<128x32xf32>, vector<128x32xf32> -> vector<128x32xf32>
    %86 = arith.addf %84, %85 : vector<128x32xf32>
    %87 = tpu.reciprocal %82 {approx = true} : vector<128x1xf32> -> vector<128x1xf32>
    %88 = vector.broadcast %87 : vector<128x1xf32> to vector<128x32xf32>
    %89 = arith.mulf %86, %88 : vector<128x32xf32>
    %90 = vector.extract_strided_slice %31 {offsets = [0, 64], sizes = [128, 32], strides = [1, 1]} : vector<128x384xf32> to vector<128x32xf32>
    %cst_31 = arith.constant 0.176776692 : f32
    %91 = vector.broadcast %cst_31 : f32 to vector<128x32xf32>
    %92 = arith.mulf %90, %91 : vector<128x32xf32>
    %93 = vector.extract_strided_slice %31 {offsets = [0, 192], sizes = [128, 32], strides = [1, 1]} : vector<128x384xf32> to vector<128x32xf32>
    %94 = vector.extract_strided_slice %31 {offsets = [0, 320], sizes = [128, 32], strides = [1, 1]} : vector<128x384xf32> to vector<128x32xf32>
    %cst_32 = arith.constant 0xFF800000 : f32
    %95 = vector.broadcast %cst_32 : f32 to vector<128x1xf32>
    %cst_33 = arith.constant 0.000000e+00 : f32
    %96 = vector.broadcast %cst_33 : f32 to vector<128x1xf32>
    %cst_34 = arith.constant 0.000000e+00 : f32
    %97 = vector.broadcast %cst_34 : f32 to vector<128x32xf32>
    %98 = tpu.transpose %93, [1, 0] : vector<128x32xf32> -> vector<32x128xf32>
    %cst_35 = arith.constant dense<0.000000e+00> : vector<128x128xf32>
    %99 = tpu.matmul %92, %98, %cst_35 {dimension_numbers = #tpu.dot_dimension_numbers<[1], [0], [0], [1], [0, 0, 1, 1], [], []>} : vector<128x32xf32>, vector<32x128xf32>, vector<128x128xf32> -> vector<128x128xf32>
    %cst_36 = arith.constant dense<0xFF800000> : vector<128xf32>
    %100 = vector.multi_reduction <maximumf>, %99, %cst_36 [1] : vector<128x128xf32> to vector<128xf32>
    %101 = vector.shape_cast %100 : vector<128xf32> to vector<128x1xf32>
    %102 = arith.maximumf %95, %101 : vector<128x1xf32>
    %103 = arith.subf %95, %102 : vector<128x1xf32>
    %104 = math.exp %103 : vector<128x1xf32>
    %105 = vector.broadcast %102 : vector<128x1xf32> to vector<128x128xf32>
    %106 = arith.subf %99, %105 : vector<128x128xf32>
    %107 = math.exp %106 : vector<128x128xf32>
    %108 = arith.mulf %104, %96 : vector<128x1xf32>
    %cst_37 = arith.constant dense<0.000000e+00> : vector<128xf32>
    %109 = vector.multi_reduction <add>, %107, %cst_37 [1] : vector<128x128xf32> to vector<128xf32>
    %110 = vector.shape_cast %109 : vector<128xf32> to vector<128x1xf32>
    %111 = arith.addf %108, %110 : vector<128x1xf32>
    %112 = vector.broadcast %104 : vector<128x1xf32> to vector<128x32xf32>
    %113 = arith.mulf %112, %97 : vector<128x32xf32>
    %cst_38 = arith.constant dense<0.000000e+00> : vector<128x32xf32>
    %114 = tpu.matmul %107, %94, %cst_38 {dimension_numbers = #tpu.dot_dimension_numbers<[1], [0], [0], [1], [0, 0, 1, 1], [], []>} : vector<128x128xf32>, vector<128x32xf32>, vector<128x32xf32> -> vector<128x32xf32>
    %115 = arith.addf %113, %114 : vector<128x32xf32>
    %116 = tpu.reciprocal %111 {approx = true} : vector<128x1xf32> -> vector<128x1xf32>
    %117 = vector.broadcast %116 : vector<128x1xf32> to vector<128x32xf32>
    %118 = arith.mulf %115, %117 : vector<128x32xf32>
    %119 = vector.extract_strided_slice %31 {offsets = [0, 96], sizes = [128, 32], strides = [1, 1]} : vector<128x384xf32> to vector<128x32xf32>
    %cst_39 = arith.constant 0.176776692 : f32
    %120 = vector.broadcast %cst_39 : f32 to vector<128x32xf32>
    %121 = arith.mulf %119, %120 : vector<128x32xf32>
    %122 = vector.extract_strided_slice %31 {offsets = [0, 224], sizes = [128, 32], strides = [1, 1]} : vector<128x384xf32> to vector<128x32xf32>
    %123 = vector.extract_strided_slice %31 {offsets = [0, 352], sizes = [128, 32], strides = [1, 1]} : vector<128x384xf32> to vector<128x32xf32>
    %cst_40 = arith.constant 0xFF800000 : f32
    %124 = vector.broadcast %cst_40 : f32 to vector<128x1xf32>
    %cst_41 = arith.constant 0.000000e+00 : f32
    %125 = vector.broadcast %cst_41 : f32 to vector<128x1xf32>
    %cst_42 = arith.constant 0.000000e+00 : f32
    %126 = vector.broadcast %cst_42 : f32 to vector<128x32xf32>
    %127 = tpu.transpose %122, [1, 0] : vector<128x32xf32> -> vector<32x128xf32>
    %cst_43 = arith.constant dense<0.000000e+00> : vector<128x128xf32>
    %128 = tpu.matmul %121, %127, %cst_43 {dimension_numbers = #tpu.dot_dimension_numbers<[1], [0], [0], [1], [0, 0, 1, 1], [], []>} : vector<128x32xf32>, vector<32x128xf32>, vector<128x128xf32> -> vector<128x128xf32>
    %cst_44 = arith.constant dense<0xFF800000> : vector<128xf32>
    %129 = vector.multi_reduction <maximumf>, %128, %cst_44 [1] : vector<128x128xf32> to vector<128xf32>
    %130 = vector.shape_cast %129 : vector<128xf32> to vector<128x1xf32>
    %131 = arith.maximumf %124, %130 : vector<128x1xf32>
    %132 = arith.subf %124, %131 : vector<128x1xf32>
    %133 = math.exp %132 : vector<128x1xf32>
    %134 = vector.broadcast %131 : vector<128x1xf32> to vector<128x128xf32>
    %135 = arith.subf %128, %134 : vector<128x128xf32>
    %136 = math.exp %135 : vector<128x128xf32>
    %137 = arith.mulf %133, %125 : vector<128x1xf32>
    %cst_45 = arith.constant dense<0.000000e+00> : vector<128xf32>
    %138 = vector.multi_reduction <add>, %136, %cst_45 [1] : vector<128x128xf32> to vector<128xf32>
    %139 = vector.shape_cast %138 : vector<128xf32> to vector<128x1xf32>
    %140 = arith.addf %137, %139 : vector<128x1xf32>
    %141 = vector.broadcast %133 : vector<128x1xf32> to vector<128x32xf32>
    %142 = arith.mulf %141, %126 : vector<128x32xf32>
    %cst_46 = arith.constant dense<0.000000e+00> : vector<128x32xf32>
    %143 = tpu.matmul %136, %123, %cst_46 {dimension_numbers = #tpu.dot_dimension_numbers<[1], [0], [0], [1], [0, 0, 1, 1], [], []>} : vector<128x128xf32>, vector<128x32xf32>, vector<128x32xf32> -> vector<128x32xf32>
    %144 = arith.addf %142, %143 : vector<128x32xf32>
    %145 = tpu.reciprocal %140 {approx = true} : vector<128x1xf32> -> vector<128x1xf32>
    %146 = vector.broadcast %145 : vector<128x1xf32> to vector<128x32xf32>
    %147 = arith.mulf %144, %146 : vector<128x32xf32>
    %148 = tpu.concatenate %60, %89, %118, %147 in 1 : vector<128x32xf32>, vector<128x32xf32>, vector<128x32xf32>, vector<128x32xf32> -> vector<128x128xf32>
    %c0_47 = arith.constant 0 : index
    %c0_48 = arith.constant 0 : index
    %149 = vector.load %arg6[%c0_47, %c0_48] : memref<128x128xf32, #tpu.memory_space<vmem>>, vector<128x128xf32>
    %cst_49 = arith.constant dense<0.000000e+00> : vector<128x128xf32>
    %150 = tpu.matmul %148, %149, %cst_49 {dimension_numbers = #tpu.dot_dimension_numbers<[1], [0], [0], [1], [0, 0, 1, 1], [], []>} : vector<128x128xf32>, vector<128x128xf32>, vector<128x128xf32> -> vector<128x128xf32>
    %c0_50 = arith.constant 0 : index
    %c0_51 = arith.constant 0 : index
    %151 = vector.load %arg7[%c0_50, %c0_51] : memref<1x128xf32, #tpu.memory_space<vmem>>, vector<1x128xf32>
    %152 = vector.broadcast %151 : vector<1x128xf32> to vector<128x128xf32>
    %153 = arith.addf %150, %152 : vector<128x128xf32>
    %154 = arith.addf %1, %153 : vector<128x128xf32>
    %c0_52 = arith.constant 0 : index
    %c0_53 = arith.constant 0 : index
    %c0_54 = arith.constant 0 : index
    %155 = vector.load %arg8[%c0_52, %c0_53, %c0_54] : memref<1x128x128xf32, #tpu.memory_space<vmem>>, vector<1x128x128xf32>
    %156 = vector.shape_cast %155 : vector<1x128x128xf32> to vector<128x128xf32>
    %157 = vector.shape_cast %154 : vector<128x128xf32> to vector<1x128x128xf32>
    tpu.vector_store %arg8[%c0_52, %c0_53, %c0_54], %157 {strides = array<i32>} : memref<1x128x128xf32, #tpu.memory_space<vmem>>, vector<1x128x128xf32>,
    return
  }
  func.func @transform_0(%arg0: i32) -> (i32, i32, i32) {
    %c0_i32 = arith.constant 0 : i32
    %c0_i32_0 = arith.constant 0 : i32
    %c0_i32_1 = arith.constant 0 : i32
    return %arg0, %c0_i32, %c0_i32_0 : i32, i32, i32
  }
  func.func @transform_1(%arg0: i32) -> (i32, i32) {
    %c0_i32 = arith.constant 0 : i32
    %c0_i32_0 = arith.constant 0 : i32
    %c0_i32_1 = arith.constant 0 : i32
    return %c0_i32, %c0_i32_0 : i32, i32
  }
  func.func @transform_2(%arg0: i32) -> (i32, i32) {
    %c0_i32 = arith.constant 0 : i32
    %c0_i32_0 = arith.constant 0 : i32
    %c0_i32_1 = arith.constant 0 : i32
    return %c0_i32, %c0_i32_0 : i32, i32
  }
  func.func @transform_3(%arg0: i32) -> (i32, i32) {
    %c0_i32 = arith.constant 0 : i32
    %c0_i32_0 = arith.constant 0 : i32
    %c0_i32_1 = arith.constant 0 : i32
    return %c0_i32, %c0_i32_0 : i32, i32
  }
  func.func @transform_4(%arg0: i32) -> (i32, i32) {
    %c0_i32 = arith.constant 0 : i32
    %c0_i32_0 = arith.constant 0 : i32
    %c0_i32_1 = arith.constant 0 : i32
    return %c0_i32, %c0_i32_0 : i32, i32
  }
  func.func @transform_5(%arg0: i32) -> (i32, i32) {
    %c0_i32 = arith.constant 0 : i32
    %c0_i32_0 = arith.constant 0 : i32
    %c0_i32_1 = arith.constant 0 : i32
    return %c0_i32, %c0_i32_0 : i32, i32
  }
  func.func @transform_6(%arg0: i32) -> (i32, i32) {
    %c0_i32 = arith.constant 0 : i32
    %c0_i32_0 = arith.constant 0 : i32
    %c0_i32_1 = arith.constant 0 : i32
    return %c0_i32, %c0_i32_0 : i32, i32
  }
  func.func @transform_7(%arg0: i32) -> (i32, i32, i32) {
    %c0_i32 = arith.constant 0 : i32
    %c0_i32_0 = arith.constant 0 : i32
    %c0_i32_1 = arith.constant 0 : i32
    return %arg0, %c0_i32, %c0_i32_0 : i32, i32, i32
  }
}

</mosaic_0001>

<llo_original>
// kernel: tpu_custom_call.1
$region0: #{tpu_custom_call.1}
  #allocation0 [shape = 'u32[]', space=smem, size = 0x4, offset = 0x4, fixed_abs, tag = 'smem constant byte address 0x4 - core index']
  #allocation1 [shape = 'u32[144,128]{1,0:T(1,128)}', space=vmem, size = 0x12000, scoped, tag = 'internal scratch']
  %s0 = inlined_call_operand.hbm [shape: f32[2,128,128], index: 0, kind: input, shape index: {}]
  %s1 = inlined_call_operand.vmem [shape: f32[1,128], index: 1, kind: input, shape index: {}]
  %s2 = inlined_call_operand.vmem [shape: f32[1,128], index: 2, kind: input, shape index: {}]
  %s3 = inlined_call_operand.hbm [shape: f32[128,384], index: 3, kind: input, shape index: {}]
  %s4 = inlined_call_operand.vmem [shape: f32[1,384], index: 4, kind: input, shape index: {}]
  %s5 = inlined_call_operand.hbm [shape: f32[128,128], index: 5, kind: input, shape index: {}]
  %s6 = inlined_call_operand.vmem [shape: f32[1,128], index: 6, kind: input, shape index: {}]
  %s7 = inlined_call_operand.hbm [shape: f32[2,128,128], index: 7, kind: output, shape index: {}]
  %s8 = sld [smem:[#allocation0]]
  $region73: #{tpu_custom_call.1} parent=0
    _
  %s10 = ssub.s32 1, %s8
  %s11 = scalar_select 0, %s10, %s8
  $region1: #{tpu_custom_call.1} parent=0
    #allocation2 [shape = 'u8[131072]{0}', space=vmem, size = 0x20000, scoped, tag = 'input window, operand 0']
    #allocation3 [shape = 's32[2]{0}', space=sflag, size = 0x8, scoped, tag = 'scoped memory for tpu_custom_call.1']
    #allocation4 [shape = 's32[2]{0}', space=sflag, size = 0x8, scoped, tag = 'scoped memory for tpu_custom_call.1']
    #allocation5 [shape = 'u8[196608]{0}', space=vmem, size = 0x30000, scoped, tag = 'input window, operand 3, single buffered']
    #allocation6 [shape = 's32[1]{0}', space=sflag, size = 0x4, scoped, tag = 'scoped memory for tpu_custom_call.1']
    #allocation7 [shape = 'u8[65536]{0}', space=vmem, size = 0x10000, scoped, tag = 'input window, operand 5, single buffered']
    #allocation8 [shape = 'u8[131072]{0}', space=vmem, size = 0x20000, scoped, tag = 'output window, operand 0']
    %12 = vsyncpa [#allocation3], 0
    %s13 = scalar_lea.sflag [#allocation3], 1
    %14 = vsyncpa %s13, 0
    %15 = vsyncpa [#allocation6], 0
    %16 = vsyncpa [#allocation4], 0
    %s17 = scalar_lea.sflag [#allocation4], 1
    %18 = vsyncpa %s17, 0
    loop: start=0, step=1, limit=4
    $region2: #{tpu_custom_call.1} parent=1 // loop_pre_header
      _
    $region3: #{tpu_custom_call.1} parent=1 // loop_header
      %s20 = sphi 0, %s24
      %p21 = scmp.ge.s32.totalorder %s20, 4
      %s30 = sphi 0, %s32
      %s33 = sphi 0, %s30
      %s34 = sphi 0, %s33
      %s50 = sphi 0, %s34
      %s54 = sphi 0, %s54
      %s56 = sphi 0, %s54
      %s57 = sphi 0, %s56
      %s71 = sphi 0, %s57
      %s75 = sphi 0, %s75
      %s77 = sphi 0, %s75
      %s78 = sphi 0, %s77
      %s92 = sphi 0, %s78
      %s96 = sphi 0, %s96
      %s98 = sphi 0, %s96
      %s99 = sphi 0, %s98
      %s113 = sphi 0, %s99
      %s117 = sphi 0, %s117
      %s119 = sphi 0, %s117
      %s120 = sphi 0, %s119
      %s134 = sphi 0, %s120
      %s138 = sphi 0, %s138
      %s140 = sphi 0, %s138
      %s141 = sphi 0, %s140
      %s155 = sphi 0, %s141
      %s159 = sphi 0, %s159
      %s161 = sphi 0, %s159
      %s162 = sphi 0, %s161
      %s176 = sphi 0, %s162
      %s182 = sphi 0, %s184
      %s185 = sphi 0, %s182
      %s186 = sphi 0, %s185
      %s202 = sphi 0, %s186
    $region4: #{tpu_custom_call.1} parent=1 // loop_header_branch
      %23 = sbr.rel (%p21) target = $region8
    $region5: #{tpu_custom_call.1} parent=1 // loop_body
      %s25 = ssub.s32 %s20, 1
      %s26 = ssub.s32 %s20, 2
      %s27 = sadd.s32 %s20, 1
      %s28 = ssub.s32 %s20, %s27
      %p29 = scmp.eq.s32.totalorder %s28, 0
      %s31 = sadd.s32 %s30, 1
      %s32 = scalar_select %p29, %s30, %s31
      %p35 = pneg %p29
      %p36 = scmp.eq.s32.totalorder %s20, 1
      %p37 = por %p35, %p36
      %p38 = scmp.ne.s32.totalorder %s30, %s33
      %p39 = scmp.eq.s32.totalorder %s20, 0
      %p40 = por %p38, %p39
      %p41 = scmp.ne.s32.totalorder %s30, %s33
      %p42 = scmp.eq.s32.totalorder %s25, 1
      %p43 = por %p41, %p42
      %p44 = scmp.ne.s32.totalorder %s33, %s34
      %p45 = scmp.eq.s32.totalorder %s25, 0
      %p46 = por %p44, %p45
      %p47 = scmp.ne.s32.totalorder %s33, %s34
      %p48 = scmp.eq.s32.totalorder %s26, 1
      %p49 = por %p47, %p48
      %p51 = scmp.ne.s32.totalorder %s34, %s50
      %p52 = scmp.eq.s32.totalorder %s26, 0
      %p53 = por %p51, %p52
      %s55 = sadd.s32 %s54, 1
      %p58 = scmp.eq.s32.totalorder %s20, 1
      %p59 = scmp.ne.s32.totalorder %s54, %s56
      %p60 = scmp.eq.s32.totalorder %s20, 0
      %p61 = por %p59, %p60
      %p62 = scmp.ne.s32.totalorder %s54, %s56
      %p63 = scmp.eq.s32.totalorder %s25, 1
      %p64 = por %p62, %p63
      %p65 = scmp.ne.s32.totalorder %s56, %s57
      %p66 = scmp.eq.s32.totalorder %s25, 0
      %p67 = por %p65, %p66
      %p68 = scmp.ne.s32.totalorder %s56, %s57
      %p69 = scmp.eq.s32.totalorder %s26, 1
      %p70 = por %p68, %p69
      %p72 = scmp.ne.s32.totalorder %s57, %s71
      %p73 = scmp.eq.s32.totalorder %s26, 0
      %p74 = por %p72, %p73
      %s76 = sadd.s32 %s75, 1
      %p79 = scmp.eq.s32.totalorder %s20, 1
      %p80 = scmp.ne.s32.totalorder %s75, %s77
      %p81 = scmp.eq.s32.totalorder %s20, 0
      %p82 = por %p80, %p81
      %p83 = scmp.ne.s32.totalorder %s75, %s77
      %p84 = scmp.eq.s32.totalorder %s25, 1
      %p85 = por %p83, %p84
      %p86 = scmp.ne.s32.totalorder %s77, %s78
      %p87 = scmp.eq.s32.totalorder %s25, 0
      %p88 = por %p86, %p87
      %p89 = scmp.ne.s32.totalorder %s77, %s78
      %p90 = scmp.eq.s32.totalorder %s26, 1
      %p91 = por %p89, %p90
      %p93 = scmp.ne.s32.totalorder %s78, %s92
      %p94 = scmp.eq.s32.totalorder %s26, 0
      %p95 = por %p93, %p94
      %s97 = sadd.s32 %s96, 1
      %p100 = scmp.eq.s32.totalorder %s20, 1
      %p101 = scmp.ne.s32.totalorder %s96, %s98
      %p102 = scmp.eq.s32.totalorder %s20, 0
      %p103 = por %p101, %p102
      %p104 = scmp.ne.s32.totalorder %s96, %s98
      %p105 = scmp.eq.s32.totalorder %s25, 1
      %p106 = por %p104, %p105
      %p107 = scmp.ne.s32.totalorder %s98, %s99
      %p108 = scmp.eq.s32.totalorder %s25, 0
      %p109 = por %p107, %p108
      %p110 = scmp.ne.s32.totalorder %s98, %s99
      %p111 = scmp.eq.s32.totalorder %s26, 1
      %p112 = por %p110, %p111
      %p114 = scmp.ne.s32.totalorder %s99, %s113
      %p115 = scmp.eq.s32.totalorder %s26, 0
      %p116 = por %p114, %p115
      %s118 = sadd.s32 %s117, 1
      %p121 = scmp.eq.s32.totalorder %s20, 1
      %p122 = scmp.ne.s32.totalorder %s117, %s119
      %p123 = scmp.eq.s32.totalorder %s20, 0
      %p124 = por %p122, %p123
      %p125 = scmp.ne.s32.totalorder %s117, %s119
      %p126 = scmp.eq.s32.totalorder %s25, 1
      %p127 = por %p125, %p126
      %p128 = scmp.ne.s32.totalorder %s119, %s120
      %p129 = scmp.eq.s32.totalorder %s25, 0
      %p130 = por %p128, %p129
      %p131 = scmp.ne.s32.totalorder %s119, %s120
      %p132 = scmp.eq.s32.totalorder %s26, 1
      %p133 = por %p131, %p132
      %p135 = scmp.ne.s32.totalorder %s120, %s134
      %p136 = scmp.eq.s32.totalorder %s26, 0
      %p137 = por %p135, %p136
      %s139 = sadd.s32 %s138, 1
      %p142 = scmp.eq.s32.totalorder %s20, 1
      %p143 = scmp.ne.s32.totalorder %s138, %s140
      %p144 = scmp.eq.s32.totalorder %s20, 0
      %p145 = por %p143, %p144
      %p146 = scmp.ne.s32.totalorder %s138, %s140
      %p147 = scmp.eq.s32.totalorder %s25, 1
      %p148 = por %p146, %p147
      %p149 = scmp.ne.s32.totalorder %s140, %s141
      %p150 = scmp.eq.s32.totalorder %s25, 0
      %p151 = por %p149, %p150
      %p152 = scmp.ne.s32.totalorder %s140, %s141
      %p153 = scmp.eq.s32.totalorder %s26, 1
      %p154 = por %p152, %p153
      %p156 = scmp.ne.s32.totalorder %s141, %s155
      %p157 = scmp.eq.s32.totalorder %s26, 0
      %p158 = por %p156, %p157
      %s160 = sadd.s32 %s159, 1
      %p163 = scmp.eq.s32.totalorder %s20, 1
      %p164 = scmp.ne.s32.totalorder %s159, %s161
      %p165 = scmp.eq.s32.totalorder %s20, 0
      %p166 = por %p164, %p165
      %p167 = scmp.ne.s32.totalorder %s159, %s161
      %p168 = scmp.eq.s32.totalorder %s25, 1
      %p169 = por %p167, %p168
      %p170 = scmp.ne.s32.totalorder %s161, %s162
      %p171 = scmp.eq.s32.totalorder %s25, 0
      %p172 = por %p170, %p171
      %p173 = scmp.ne.s32.totalorder %s161, %s162
      %p174 = scmp.eq.s32.totalorder %s26, 1
      %p175 = por %p173, %p174
      %p177 = scmp.ne.s32.totalorder %s162, %s176
      %p178 = scmp.eq.s32.totalorder %s26, 0
      %p179 = por %p177, %p178
      %s180 = ssub.s32 %s20, %s27
      %p181 = scmp.eq.s32.totalorder %s180, 0
      %s183 = sadd.s32 %s182, 1
      %s184 = scalar_select %p181, %s182, %s183
      %p187 = pneg %p181
      %p188 = scmp.eq.s32.totalorder %s20, 1
      %p189 = por %p187, %p188
      %p190 = scmp.ne.s32.totalorder %s182, %s185
      %p191 = scmp.eq.s32.totalorder %s20, 0
      %p192 = por %p190, %p191
      %p193 = scmp.ne.s32.totalorder %s182, %s185
      %p194 = scmp.eq.s32.totalorder %s25, 1
      %p195 = por %p193, %p194
      %p196 = scmp.ne.s32.totalorder %s185, %s186
      %p197 = scmp.eq.s32.totalorder %s25, 0
      %p198 = por %p196, %p197
      %p199 = scmp.ne.s32.totalorder %s185, %s186
      %p200 = scmp.eq.s32.totalorder %s26, 1
      %p201 = por %p199, %p200
      %p203 = scmp.ne.s32.totalorder %s186, %s202
      %p204 = scmp.eq.s32.totalorder %s26, 0
      %p205 = por %p203, %p204
      %p206 = scmp.le.s32.totalorder 1, %s20
      %p207 = scmp.lt.s32.totalorder %s20, 3
      %p208 = pnand %p206, %p207
      %p209 = pneg %p208
      // Predicated region
      $region9: #{tpu_custom_call.1} parent=5 // pred_check
        _
      $region10: #{tpu_custom_call.1} parent=5 // pred_check_branch
        %211 = sbr.rel (%p208) target = $region12
      $region11: #{tpu_custom_call.1} parent=5 // pred_region
        %s212 = ssub.s32 %s20, 1
        // Predicated region
        $region13: #{tpu_custom_call.1} parent=11 // pred_check
          %p213 = pneg %p67
        $region14: #{tpu_custom_call.1} parent=11 // pred_check_branch
          %215 = sbr.rel (%p213) target = $region16
        $region15: #{tpu_custom_call.1} parent=11 // pred_region
          _
        $region16: #{tpu_custom_call.1} parent=11 // pred_fallthru
          _
        // Predicated region
        $region17: #{tpu_custom_call.1} parent=11 // pred_check
          %p216 = pneg %p88
        $region18: #{tpu_custom_call.1} parent=11 // pred_check_branch
          %218 = sbr.rel (%p216) target = $region20
        $region19: #{tpu_custom_call.1} parent=11 // pred_region
          _
        $region20: #{tpu_custom_call.1} parent=11 // pred_fallthru
          _
        // Predicated region
        $region21: #{tpu_custom_call.1} parent=11 // pred_check
          %p219 = pneg %p109
        $region22: #{tpu_custom_call.1} parent=11 // pred_check_branch
          %221 = sbr.rel (%p219) target = $region24
        $region23: #{tpu_custom_call.1} parent=11 // pred_region
          %s223 = ssub.s32 6144, 6144
          %224 = vsyncadd [#allocation6], %s223
          %s225 = sshll.u32 [#allocation5], 4
          %s226 = int_to_ptr.vmem [resolvable:$true] %s225
          %231 = dma.hbm_to_vmem [thread:$0]  %s3, 6144, %s226, [#allocation6], 384, 384, 24
        $region24: #{tpu_custom_call.1} parent=11 // pred_fallthru
          _
        // Predicated region
        $region25: #{tpu_custom_call.1} parent=11 // pred_check
          %p232 = pneg %p130
        $region26: #{tpu_custom_call.1} parent=11 // pred_check_branch
          %234 = sbr.rel (%p232) target = $region28
        $region27: #{tpu_custom_call.1} parent=11 // pred_region
          _
        $region28: #{tpu_custom_call.1} parent=11 // pred_fallthru
          _
        // Predicated region
        $region29: #{tpu_custom_call.1} parent=11 // pred_check
          %p235 = pneg %p151
        $region30: #{tpu_custom_call.1} parent=11 // pred_check_branch
          %237 = sbr.rel (%p235) target = $region32
        $region31: #{tpu_custom_call.1} parent=11 // pred_region
          %s239 = ssub.s32 2048, 2048
          %240 = vsyncadd [#allocation6], %s239
          %s241 = sshll.u32 [#allocation7], 4
          %s242 = int_to_ptr.vmem [resolvable:$true] %s241
          %247 = dma.hbm_to_vmem [thread:$0]  %s5, 2048, %s242, [#allocation6], 128, 128, 8
        $region32: #{tpu_custom_call.1} parent=11 // pred_fallthru
          _
        // Predicated region
        $region33: #{tpu_custom_call.1} parent=11 // pred_check
          %p248 = pneg %p172
        $region34: #{tpu_custom_call.1} parent=11 // pred_check_branch
          %250 = sbr.rel (%p248) target = $region36
        $region35: #{tpu_custom_call.1} parent=11 // pred_region
          _
        $region36: #{tpu_custom_call.1} parent=11 // pred_fallthru
          _
      $region12: #{tpu_custom_call.1} parent=5 // pred_fallthru
        _
      %p251 = scmp.lt.s32.totalorder %s20, 2
      // Predicated region
      $region37: #{tpu_custom_call.1} parent=5 // pred_check
        %p252 = pneg %p251
      $region38: #{tpu_custom_call.1} parent=5 // pred_check_branch
        %254 = sbr.rel (%p252) target = $region40
      $region39: #{tpu_custom_call.1} parent=5 // pred_region
        // Predicated region
        $region41: #{tpu_custom_call.1} parent=39 // pred_check
          %p255 = pneg %p40
        $region42: #{tpu_custom_call.1} parent=39 // pred_check_branch
          %257 = sbr.rel (%p255) target = $region44
        $region43: #{tpu_custom_call.1} parent=39 // pred_region
          %s258 = sand.u32 %s30, 1
          %s259 = scalar_lea.sflag [#allocation3], %s258
          %s260 = sand.u32 %s30, 1
          %s261 = smul.addr %s260, 128
          %s262 = scalar_lea.vmem [#allocation2], %s261
          %s264 = ssub.s32 2048, 2048
          %265 = vsyncadd %s259, %s264
          %s266 = smul.addr %s20, 16
          %s267 = smul.addr %s266, 128
          %s268 = scalar_lea.hbm %s0, %s267
          %s269 = sshll.u32 %s262, 4
          %s270 = int_to_ptr.vmem [resolvable:$true] %s269
          %275 = dma.hbm_to_vmem [thread:$0]  %s268, 2048, %s270, %s259, 128, 128, 8
        $region44: #{tpu_custom_call.1} parent=39 // pred_fallthru
          _
      $region40: #{tpu_custom_call.1} parent=5 // pred_fallthru
        _
      %p276 = scmp.le.s32.totalorder 1, %s20
      %p277 = scmp.lt.s32.totalorder %s20, 3
      %p278 = pnand %p276, %p277
      %p279 = pneg %p278
      // Predicated region
      $region45: #{tpu_custom_call.1} parent=5 // pred_check
        _
      $region46: #{tpu_custom_call.1} parent=5 // pred_check_branch
        %281 = sbr.rel (%p278) target = $region48
      $region47: #{tpu_custom_call.1} parent=5 // pred_region
        %s282 = ssub.s32 %s20, 1
        %s283 = sand.u32 %s33, 1
        %s284 = scalar_lea.sflag [#allocation3], %s283
        %s285 = sand.u32 %s33, 1
        %s286 = smul.addr %s285, 128
        %s287 = scalar_lea.vmem [#allocation2], %s286
        // Predicated region
        $region49: #{tpu_custom_call.1} parent=47 // pred_check
          %p288 = pneg %p46
        $region50: #{tpu_custom_call.1} parent=47 // pred_check_branch
          %290 = sbr.rel (%p288) target = $region52
        $region51: #{tpu_custom_call.1} parent=47 // pred_region
          %291 = dma.done %s284, 2048
        $region52: #{tpu_custom_call.1} parent=47 // pred_fallthru
          _
        // Predicated region
        $region53: #{tpu_custom_call.1} parent=47 // pred_check
          %p292 = pneg %p109
        $region54: #{tpu_custom_call.1} parent=47 // pred_check_branch
          %294 = sbr.rel (%p292) target = $region56
        $region55: #{tpu_custom_call.1} parent=47 // pred_region
          %295 = dma.done [#allocation6], 6144
        $region56: #{tpu_custom_call.1} parent=47 // pred_fallthru
          _
        // Predicated region
        $region57: #{tpu_custom_call.1} parent=47 // pred_check
          %p296 = pneg %p151
        $region58: #{tpu_custom_call.1} parent=47 // pred_check_branch
          %298 = sbr.rel (%p296) target = $region60
        $region59: #{tpu_custom_call.1} parent=47 // pred_region
          %299 = dma.done [#allocation6], 2048
        $region60: #{tpu_custom_call.1} parent=47 // pred_fallthru
          _
        %s300 = sand.u32 %s33, 1
        %s301 = scalar_lea.sflag [#allocation3], %s300
        %s302 = sand.u32 %s33, 1
        %s303 = smul.addr %s302, 128
        %s304 = scalar_lea.vmem [#allocation2], %s303
        %p305 = pneg %p46
        %p306 = pneg %p43
        %p307 = pneg %p67
        %p308 = pneg %p64
        %p309 = pneg %p88
        %p310 = pneg %p85
        %p311 = pneg %p109
        %p312 = pneg %p106
        %p313 = pneg %p130
        %p314 = pneg %p127
        %p315 = pneg %p151
        %p316 = pneg %p148
        %p317 = pneg %p172
        %p318 = pneg %p169
        %p319 = pneg %p198
        %p320 = pneg %p195
        %s321 = sand.u32 %s185, 1
        %s322 = scalar_lea.sflag [#allocation4], %s321
        %s323 = sand.u32 %s185, 1
        %s324 = smul.addr %s323, 128
        %s325 = scalar_lea.vmem [#allocation8], %s324
        %v326 = vld [vmem:[%s287] sm:$0xff]
        %v327 = vld [vmem:[%s287 + $0x8] sm:$0xff]
        %v328 = vld [vmem:[%s287 + $0x10] sm:$0xff]
        %v329 = vld [vmem:[%s287 + $0x18] sm:$0xff]
        %v330 = vld [vmem:[%s287 + $0x20] sm:$0xff]
        %v331 = vld [vmem:[%s287 + $0x28] sm:$0xff]
        %v332 = vld [vmem:[%s287 + $0x30] sm:$0xff]
        %v333 = vld [vmem:[%s287 + $0x38] sm:$0xff]
        %v334 = vld [vmem:[%s287 + $0x40] sm:$0xff]
        %v335 = vld [vmem:[%s287 + $0x48] sm:$0xff]
        %v336 = vld [vmem:[%s287 + $0x50] sm:$0xff]
        %v337 = vld [vmem:[%s287 + $0x58] sm:$0xff]
        %v338 = vld [vmem:[%s287 + $0x60] sm:$0xff]
        %v339 = vld [vmem:[%s287 + $0x68] sm:$0xff]
        %v340 = vld [vmem:[%s287 + $0x70] sm:$0xff]
        %v341 = vld [vmem:[%s287 + $0x78] sm:$0xff]
        %v342 = vadd.f32 %v326, %v327
        %v343 = vadd.f32 %v342, %v328
        %v344 = vadd.f32 %v343, %v329
        %v345 = vadd.f32 %v344, %v330
        %v346 = vadd.f32 %v345, %v331
        %v347 = vadd.f32 %v346, %v332
        %v348 = vadd.f32 %v347, %v333
        %v349 = vadd.f32 %v348, %v334
        %v350 = vadd.f32 %v349, %v335
        %v351 = vadd.f32 %v350, %v336
        %v352 = vadd.f32 %v351, %v337
        %v353 = vadd.f32 %v352, %v338
        %v354 = vadd.f32 %v353, %v339
        %v355 = vadd.f32 %v354, %v340
        %v356 = vadd.f32 %v355, %v341
        %357 = vadd.xlane.f32.xlu0 %v356
        %v358 = vpop.xlane.xlu0 %357
        %v359 = vrot.slane %v358, 4
        %v360 = vadd.f32 %v358, %v359
        %v361 = vrot.slane %v360, 2
        %v362 = vadd.f32 %v360, %v361
        %v363 = vrot.slane %v362, 1
        %v364 = vadd.f32 %v362, %v363
        %s365 = vtos %v364
        %v366 = vrcp.pop 16384.0
        %s367 = vtos %v366
        %s368 = smul.f32 %s365, %s367
        %v369 = vstv %s368
        %v370 = vsub.f32 %v326, %v369
        %v371 = vsub.f32 %v327, %v369
        %v372 = vsub.f32 %v328, %v369
        %v373 = vsub.f32 %v329, %v369
        %v374 = vsub.f32 %v330, %v369
        %v375 = vsub.f32 %v331, %v369
        %v376 = vsub.f32 %v332, %v369
        %v377 = vsub.f32 %v333, %v369
        %v378 = vsub.f32 %v334, %v369
        %v379 = vsub.f32 %v335, %v369
        %v380 = vsub.f32 %v336, %v369
        %v381 = vsub.f32 %v337, %v369
        %v382 = vsub.f32 %v338, %v369
        %v383 = vsub.f32 %v339, %v369
        %v384 = vsub.f32 %v340, %v369
        %v385 = vsub.f32 %v341, %v369
        %v386 = vmul.f32 %v370, %v370
        %v387 = vmul.f32 %v371, %v371
        %v388 = vmul.f32 %v372, %v372
        %v389 = vmul.f32 %v373, %v373
        %v390 = vmul.f32 %v374, %v374
        %v391 = vmul.f32 %v375, %v375
        %v392 = vmul.f32 %v376, %v376
        %v393 = vmul.f32 %v377, %v377
        %v394 = vmul.f32 %v378, %v378
        %v395 = vmul.f32 %v379, %v379
        %v396 = vmul.f32 %v380, %v380
        %v397 = vmul.f32 %v381, %v381
        %v398 = vmul.f32 %v382, %v382
        %v399 = vmul.f32 %v383, %v383
        %v400 = vmul.f32 %v384, %v384
        %v401 = vmul.f32 %v385, %v385
        %v402 = vadd.f32 %v386, %v387
        %v403 = vadd.f32 %v402, %v388
        %v404 = vadd.f32 %v403, %v389
        %v405 = vadd.f32 %v404, %v390
        %v406 = vadd.f32 %v405, %v391
        %v407 = vadd.f32 %v406, %v392
        %v408 = vadd.f32 %v407, %v393
        %v409 = vadd.f32 %v408, %v394
        %v410 = vadd.f32 %v409, %v395
        %v411 = vadd.f32 %v410, %v396
        %v412 = vadd.f32 %v411, %v397
        %v413 = vadd.f32 %v412, %v398
        %v414 = vadd.f32 %v413, %v399
        %v415 = vadd.f32 %v414, %v400
        %v416 = vadd.f32 %v415, %v401
        %417 = vadd.xlane.f32.xlu0 %v416
        %v418 = vpop.xlane.xlu0 %417
        %v419 = vrot.slane %v418, 4
        %v420 = vadd.f32 %v418, %v419
        %v421 = vrot.slane %v420, 2
        %v422 = vadd.f32 %v420, %v421
        %v423 = vrot.slane %v422, 1
        %v424 = vadd.f32 %v422, %v423
        %s425 = vtos %v424
        %v426 = vrcp.pop 16384.0
        %s427 = vtos %v426
        %s428 = smul.f32 %s425, %s427
        %s429 = sadd.f32 %s428, 1e-05
        %v430 = vstv %s429
        %v431 = vrsqrt.pop %v430
        %s432 = vtos %v431
        %v433 = vstv %s432
        %v434 = vmul.f32 %v370, %v433
        %v435 = vmul.f32 %v371, %v433
        %v436 = vmul.f32 %v372, %v433
        %v437 = vmul.f32 %v373, %v433
        %v438 = vmul.f32 %v374, %v433
        %v439 = vmul.f32 %v375, %v433
        %v440 = vmul.f32 %v376, %v433
        %v441 = vmul.f32 %v377, %v433
        %v442 = vmul.f32 %v378, %v433
        %v443 = vmul.f32 %v379, %v433
        %v444 = vmul.f32 %v380, %v433
        %v445 = vmul.f32 %v381, %v433
        %v446 = vmul.f32 %v382, %v433
        %v447 = vmul.f32 %v383, %v433
        %v448 = vmul.f32 %v384, %v433
        %v449 = vmul.f32 %v385, %v433
        %v450 = vld [vmem:[%s1] sm:$0x1]
        %v452 = vlaneseq
        %v453 = vshrl.u32 %v452, 7
        %v454 = vsub.s32 0, %v453
        %v455 = vrot.slane %v450, %v454
        %v457 = vmul.f32 %v434, %v455
        %v458 = vmul.f32 %v435, %v455
        %v459 = vmul.f32 %v436, %v455
        %v460 = vmul.f32 %v437, %v455
        %v461 = vmul.f32 %v438, %v455
        %v462 = vmul.f32 %v439, %v455
        %v463 = vmul.f32 %v440, %v455
        %v464 = vmul.f32 %v441, %v455
        %v465 = vmul.f32 %v442, %v455
        %v466 = vmul.f32 %v443, %v455
        %v467 = vmul.f32 %v444, %v455
        %v468 = vmul.f32 %v445, %v455
        %v469 = vmul.f32 %v446, %v455
        %v470 = vmul.f32 %v447, %v455
        %v471 = vmul.f32 %v448, %v455
        %v472 = vmul.f32 %v449, %v455
        %v473 = vld [vmem:[%s2] sm:$0x1]
        %v475 = vlaneseq
        %v476 = vshrl.u32 %v475, 7
        %v477 = vsub.s32 0, %v476
        %v478 = vrot.slane %v473, %v477
        %v480 = vadd.f32 %v457, %v478
        %v481 = vadd.f32 %v458, %v478
        %v482 = vadd.f32 %v459, %v478
        %v483 = vadd.f32 %v460, %v478
        %v484 = vadd.f32 %v461, %v478
        %v485 = vadd.f32 %v462, %v478
        %v486 = vadd.f32 %v463, %v478
        %v487 = vadd.f32 %v464, %v478
        %v488 = vadd.f32 %v465, %v478
        %v489 = vadd.f32 %v466, %v478
        %v490 = vadd.f32 %v467, %v478
        %v491 = vadd.f32 %v468, %v478
        %v492 = vadd.f32 %v469, %v478
        %v493 = vadd.f32 %v470, %v478
        %v494 = vadd.f32 %v471, %v478
        %v495 = vadd.f32 %v472, %v478
        %v496 = vld [vmem:[#allocation5] sm:$0xff]
        %v497 = vld [vmem:[#allocation5 + $0x8] sm:$0xff]
        %v498 = vld [vmem:[#allocation5 + $0x10] sm:$0xff]
        %v499 = vld [vmem:[#allocation5 + $0x18] sm:$0xff]
        %v500 = vld [vmem:[#allocation5 + $0x20] sm:$0xff]
        %v501 = vld [vmem:[#allocation5 + $0x28] sm:$0xff]
        %v502 = vld [vmem:[#allocation5 + $0x30] sm:$0xff]
        %v503 = vld [vmem:[#allocation5 + $0x38] sm:$0xff]
        %v504 = vld [vmem:[#allocation5 + $0x40] sm:$0xff]
        %v505 = vld [vmem:[#allocation5 + $0x48] sm:$0xff]
        %v506 = vld [vmem:[#allocation5 + $0x50] sm:$0xff]
        %v507 = vld [vmem:[#allocation5 + $0x58] sm:$0xff]
        %v508 = vld [vmem:[#allocation5 + $0x60] sm:$0xff]
        %v509 = vld [vmem:[#allocation5 + $0x68] sm:$0xff]
        %v510 = vld [vmem:[#allocation5 + $0x70] sm:$0xff]
        %v511 = vld [vmem:[#allocation5 + $0x78] sm:$0xff]
        %v512 = vld [vmem:[#allocation5 + $0x80] sm:$0xff]
        %v513 = vld [vmem:[#allocation5 + $0x88] sm:$0xff]
        %v514 = vld [vmem:[#allocation5 + $0x90] sm:$0xff]
        %v515 = vld [vmem:[#allocation5 + $0x98] sm:$0xff]
        %v516 = vld [vmem:[#allocation5 + $0xa0] sm:$0xff]
        %v517 = vld [vmem:[#allocation5 + $0xa8] sm:$0xff]
        %v518 = vld [vmem:[#allocation5 + $0xb0] sm:$0xff]
        %v519 = vld [vmem:[#allocation5 + $0xb8] sm:$0xff]
        %v520 = vld [vmem:[#allocation5 + $0xc0] sm:$0xff]
        %v521 = vld [vmem:[#allocation5 + $0xc8] sm:$0xff]
        %v522 = vld [vmem:[#allocation5 + $0xd0] sm:$0xff]
        %v523 = vld [vmem:[#allocation5 + $0xd8] sm:$0xff]
        %v524 = vld [vmem:[#allocation5 + $0xe0] sm:$0xff]
        %v525 = vld [vmem:[#allocation5 + $0xe8] sm:$0xff]
        %v526 = vld [vmem:[#allocation5 + $0xf0] sm:$0xff]
        %v527 = vld [vmem:[#allocation5 + $0xf8] sm:$0xff]
        %v528 = vld [vmem:[#allocation5 + $0x100] sm:$0xff]
        %v529 = vld [vmem:[#allocation5 + $0x108] sm:$0xff]
        %v530 = vld [vmem:[#allocation5 + $0x110] sm:$0xff]
        %v531 = vld [vmem:[#allocation5 + $0x118] sm:$0xff]
        %v532 = vld [vmem:[#allocation5 + $0x120] sm:$0xff]
        %v533 = vld [vmem:[#allocation5 + $0x128] sm:$0xff]
        %v534 = vld [vmem:[#allocation5 + $0x130] sm:$0xff]
        %v535 = vld [vmem:[#allocation5 + $0x138] sm:$0xff]
        %v536 = vld [vmem:[#allocation5 + $0x140] sm:$0xff]
        %v537 = vld [vmem:[#allocation5 + $0x148] sm:$0xff]
        %v538 = vld [vmem:[#allocation5 + $0x150] sm:$0xff]
        %v539 = vld [vmem:[#allocation5 + $0x158] sm:$0xff]
        %v540 = vld [vmem:[#allocation5 + $0x160] sm:$0xff]
        %v541 = vld [vmem:[#allocation5 + $0x168] sm:$0xff]
        %v542 = vld [vmem:[#allocation5 + $0x170] sm:$0xff]
        %v543 = vld [vmem:[#allocation5 + $0x178] sm:$0xff]
        %v544 = vld [vmem:[%s4] sm:$0x7]
        %v546 = vlaneseq
        %v547 = vshrl.u32 %v546, 7
        %v548 = vsub.s32 0, %v547
        %v549 = vrot.slane %v544, %v548
        %v550 = vlaneseq
        %v551 = vshrl.u32 %v550, 7
        %v552 = vsub.s32 1, %v551
        %v553 = vrot.slane %v544, %v552
        %v554 = vlaneseq
        %v555 = vshrl.u32 %v554, 7
        %v556 = vsub.s32 2, %v555
        %v557 = vrot.slane %v544, %v556
        %561 = vmatprep.subr.mxu0 %v497
        %562 = vmatpush1.msra.mxu0 %v496
        %563 = vmatprep.subr.mxu0 %v500
        %564 = vmatpush1.msra.mxu0 %v499
        %565 = vmatprep.subr.mxu0 %v503
        %566 = vmatpush1.msra.mxu0 %v502
        %567 = vmatprep.subr.mxu0 %v506
        %568 = vmatpush1.msra.mxu0 %v505
        %569 = vmatprep.subr.mxu0 %v509
        %570 = vmatpush1.msra.mxu0 %v508
        %571 = vmatprep.subr.mxu0 %v512
        %572 = vmatpush1.msra.mxu0 %v511
        %573 = vmatprep.subr.mxu0 %v515
        %574 = vmatpush1.msra.mxu0 %v514
        %575 = vmatprep.subr.mxu0 %v518
        %576 = vmatpush1.msra.mxu0 %v517
        %577 = vmatprep.subr.mxu0 %v521
        %578 = vmatpush1.msra.mxu0 %v520
        %579 = vmatprep.subr.mxu0 %v524
        %580 = vmatpush1.msra.mxu0 %v523
        %581 = vmatprep.subr.mxu0 %v527
        %582 = vmatpush1.msra.mxu0 %v526
        %583 = vmatprep.subr.mxu0 %v530
        %584 = vmatpush1.msra.mxu0 %v529
        %585 = vmatprep.subr.mxu0 %v533
        %586 = vmatpush1.msra.mxu0 %v532
        %587 = vmatprep.subr.mxu0 %v536
        %588 = vmatpush1.msra.mxu0 %v535
        %589 = vmatprep.subr.mxu0 %v539
        %590 = vmatpush1.msra.mxu0 %v538
        %591 = vmatprep.subr.mxu0 %v542
        %592 = vmatpush1.msra.mxu0 %v541
        %593 = vmatprep.subr.mxu0 0.0
        %594 = vmatpush1.msra.mxu0 0.0
        %595 = vmatprep.subr.mxu0 0.0
        %596 = vmatpush1.msra.mxu0 0.0
        %597 = vmatprep.subr.mxu0 0.0
        %598 = vmatpush1.msra.mxu0 0.0
        %599 = vmatprep.subr.mxu0 0.0
        %600 = vmatpush1.msra.mxu0 0.0
        %601 = vmatprep.subr.mxu0 0.0
        %602 = vmatpush1.msra.mxu0 0.0
        %603 = vmatprep.subr.mxu0 0.0
        %604 = vmatpush1.msra.mxu0 0.0
        %605 = vmatprep.subr.mxu0 0.0
        %606 = vmatpush1.msra.mxu0 0.0
        %607 = vmatprep.subr.mxu0 0.0
        %608 = vmatpush1.msra.mxu0 0.0
        %609 = vmatprep.subr.mxu0 0.0
        %610 = vmatpush1.msra.mxu0 0.0
        %611 = vmatprep.subr.mxu0 0.0
        %612 = vmatpush1.msra.mxu0 0.0
        %613 = vmatprep.subr.mxu0 0.0
        %614 = vmatpush1.msra.mxu0 0.0
        %615 = vmatprep.subr.mxu0 0.0
        %616 = vmatpush1.msra.mxu0 0.0
        %617 = vmatprep.subr.mxu0 0.0
        %618 = vmatpush1.msra.mxu0 0.0
        %619 = vmatprep.subr.mxu0 0.0
        %620 = vmatpush1.msra.mxu0 0.0
        %621 = vmatprep.subr.mxu0 0.0
        %622 = vmatpush1.msra.mxu0 0.0
        %623 = vmatprep.subr.mxu0 0.0
        %624 = vmatpush1.msra.mxu0 0.0
        %625 = vmatprep.mubr.f32.mxu0 0.0
        %626 = vmatmul.mubr.f32.gmra.mrb[0].mxu0 %v480
        %v627 = vpop.f32.mrb[0].mxu0
        %v628 = vadd.f32 %v549, %v627
        %v629 = vpop.f32.mrb[0].mxu0
        %v630 = vadd.f32 %v553, %v629
        %631 = vmatprep.mubr.f32.mxu0 0.0
        %632 = vmatmul.mubr.f32.gmra.mrb[0].mxu0 %v481
        %v633 = vpop.f32.mrb[0].mxu0
        %v634 = vadd.f32 %v549, %v633
        %v635 = vpop.f32.mrb[0].mxu0
        %v636 = vadd.f32 %v553, %v635
        %637 = vmatprep.mubr.f32.mxu0 0.0
        %638 = vmatmul.mubr.f32.gmra.mrb[0].mxu0 %v482
        %v639 = vpop.f32.mrb[0].mxu0
        %v640 = vadd.f32 %v549, %v639
        %v641 = vpop.f32.mrb[0].mxu0
        %v642 = vadd.f32 %v553, %v641
        %643 = vmatprep.mubr.f32.mxu0 0.0
        %644 = vmatmul.mubr.f32.gmra.mrb[0].mxu0 %v483
        %v645 = vpop.f32.mrb[0].mxu0
        %v646 = vadd.f32 %v549, %v645
        %v647 = vpop.f32.mrb[0].mxu0
        %v648 = vadd.f32 %v553, %v647
        %649 = vmatprep.mubr.f32.mxu0 0.0
        %650 = vmatmul.mubr.f32.gmra.mrb[0].mxu0 %v484
        %v651 = vpop.f32.mrb[0].mxu0
        %v652 = vadd.f32 %v549, %v651
        %v653 = vpop.f32.mrb[0].mxu0
        %v654 = vadd.f32 %v553, %v653
        %655 = vmatprep.mubr.f32.mxu0 0.0
        %656 = vmatmul.mubr.f32.gmra.mrb[0].mxu0 %v485
        %v657 = vpop.f32.mrb[0].mxu0
        %v658 = vadd.f32 %v549, %v657
        %v659 = vpop.f32.mrb[0].mxu0
        %v660 = vadd.f32 %v553, %v659
        %661 = vmatprep.mubr.f32.mxu0 0.0
        %662 = vmatmul.mubr.f32.gmra.mrb[0].mxu0 %v486
        %v663 = vpop.f32.mrb[0].mxu0
        %v664 = vadd.f32 %v549, %v663
        %v665 = vpop.f32.mrb[0].mxu0
        %v666 = vadd.f32 %v553, %v665
        %667 = vmatprep.mubr.f32.mxu0 0.0
        %668 = vmatmul.mubr.f32.gmra.mrb[0].mxu0 %v487
        %v669 = vpop.f32.mrb[0].mxu0
        %v670 = vadd.f32 %v549, %v669
        %v671 = vpop.f32.mrb[0].mxu0
        %v672 = vadd.f32 %v553, %v671
        %673 = vmatprep.mubr.f32.mxu0 0.0
        %674 = vmatmul.mubr.f32.gmra.mrb[0].mxu0 %v488
        %v675 = vpop.f32.mrb[0].mxu0
        %v676 = vadd.f32 %v549, %v675
        %v677 = vpop.f32.mrb[0].mxu0
        %v678 = vadd.f32 %v553, %v677
        %679 = vmatprep.mubr.f32.mxu0 0.0
        %680 = vmatmul.mubr.f32.gmra.mrb[0].mxu0 %v489
        %v681 = vpop.f32.mrb[0].mxu0
        %v682 = vadd.f32 %v549, %v681
        %v683 = vpop.f32.mrb[0].mxu0
        %v684 = vadd.f32 %v553, %v683
        %685 = vmatprep.mubr.f32.mxu0 0.0
        %686 = vmatmul.mubr.f32.gmra.mrb[0].mxu0 %v490
        %v687 = vpop.f32.mrb[0].mxu0
        %v688 = vadd.f32 %v549, %v687
        %v689 = vpop.f32.mrb[0].mxu0
        %v690 = vadd.f32 %v553, %v689
        %691 = vmatprep.mubr.f32.mxu0 0.0
        %692 = vmatmul.mubr.f32.gmra.mrb[0].mxu0 %v491
        %v693 = vpop.f32.mrb[0].mxu0
        %v694 = vadd.f32 %v549, %v693
        %v695 = vpop.f32.mrb[0].mxu0
        %v696 = vadd.f32 %v553, %v695
        %697 = vmatprep.mubr.f32.mxu0 0.0
        %698 = vmatmul.mubr.f32.gmra.mrb[0].mxu0 %v492
        %v699 = vpop.f32.mrb[0].mxu0
        %v700 = vadd.f32 %v549, %v699
        %v701 = vpop.f32.mrb[0].mxu0
        %v702 = vadd.f32 %v553, %v701
        %703 = vmatprep.mubr.f32.mxu0 0.0
        %704 = vmatmul.mubr.f32.gmra.mrb[0].mxu0 %v493
        %v705 = vpop.f32.mrb[0].mxu0
        %v706 = vadd.f32 %v549, %v705
        %v707 = vpop.f32.mrb[0].mxu0
        %v708 = vadd.f32 %v553, %v707
        %709 = vmatprep.mubr.f32.mxu0 0.0
        %710 = vmatmul.mubr.f32.gmra.mrb[0].mxu0 %v494
        %v711 = vpop.f32.mrb[0].mxu0
        %v712 = vadd.f32 %v549, %v711
        %v713 = vpop.f32.mrb[0].mxu0
        %v714 = vadd.f32 %v553, %v713
        %715 = vmatprep.mubr.f32.mxu0 0.0
        %716 = vmatmul.mubr.f32.gmra.mrb[0].mxu0 %v495
        %v717 = vpop.f32.mrb[0].mxu0
        %v718 = vadd.f32 %v549, %v717
        %v719 = vpop.f32.mrb[0].mxu0
        %v720 = vadd.f32 %v553, %v719
        %721 = vdwg.mxu0
        %722 = vmatprep.subr.mxu0 0.0
        %723 = vmatpush1.msra.mxu0 %v498
        %724 = vmatprep.subr.mxu0 0.0
        %725 = vmatpush1.msra.mxu0 %v501
        %726 = vmatprep.subr.mxu0 0.0
        %727 = vmatpush1.msra.mxu0 %v504
        %728 = vmatprep.subr.mxu0 0.0
        %729 = vmatpush1.msra.mxu0 %v507
        %730 = vmatprep.subr.mxu0 0.0
        %731 = vmatpush1.msra.mxu0 %v510
        %732 = vmatprep.subr.mxu0 0.0
        %733 = vmatpush1.msra.mxu0 %v513
        %734 = vmatprep.subr.mxu0 0.0
        %735 = vmatpush1.msra.mxu0 %v516
        %736 = vmatprep.subr.mxu0 0.0
        %737 = vmatpush1.msra.mxu0 %v519
        %738 = vmatprep.subr.mxu0 0.0
        %739 = vmatpush1.msra.mxu0 %v522
        %740 = vmatprep.subr.mxu0 0.0
        %741 = vmatpush1.msra.mxu0 %v525
        %742 = vmatprep.subr.mxu0 0.0
        %743 = vmatpush1.msra.mxu0 %v528
        %744 = vmatprep.subr.mxu0 0.0
        %745 = vmatpush1.msra.mxu0 %v531
        %746 = vmatprep.subr.mxu0 0.0
        %747 = vmatpush1.msra.mxu0 %v534
        %748 = vmatprep.subr.mxu0 0.0
        %749 = vmatpush1.msra.mxu0 %v537
        %750 = vmatprep.subr.mxu0 0.0
        %751 = vmatpush1.msra.mxu0 %v540
        %752 = vmatprep.subr.mxu0 0.0
        %753 = vmatpush1.msra.mxu0 %v543
        %754 = vmatprep.subr.mxu0 0.0
        %755 = vmatpush1.msra.mxu0 0.0
        %756 = vmatprep.subr.mxu0 0.0
        %757 = vmatpush1.msra.mxu0 0.0
        %758 = vmatprep.subr.mxu0 0.0
        %759 = vmatpush1.msra.mxu0 0.0
        %760 = vmatprep.subr.mxu0 0.0
        %761 = vmatpush1.msra.mxu0 0.0
        %762 = vmatprep.subr.mxu0 0.0
        %763 = vmatpush1.msra.mxu0 0.0
        %764 = vmatprep.subr.mxu0 0.0
        %765 = vmatpush1.msra.mxu0 0.0
        %766 = vmatprep.subr.mxu0 0.0
        %767 = vmatpush1.msra.mxu0 0.0
        %768 = vmatprep.subr.mxu0 0.0
        %769 = vmatpush1.msra.mxu0 0.0
        %770 = vmatprep.subr.mxu0 0.0
        %771 = vmatpush1.msra.mxu0 0.0
        %772 = vmatprep.subr.mxu0 0.0
        %773 = vmatpush1.msra.mxu0 0.0
        %774 = vmatprep.subr.mxu0 0.0
        %775 = vmatpush1.msra.mxu0 0.0
        %776 = vmatprep.subr.mxu0 0.0
        %777 = vmatpush1.msra.mxu0 0.0
        %778 = vmatprep.subr.mxu0 0.0
        %779 = vmatpush1.msra.mxu0 0.0
        %780 = vmatprep.subr.mxu0 0.0
        %781 = vmatpush1.msra.mxu0 0.0
        %782 = vmatprep.subr.mxu0 0.0
        %783 = vmatpush1.msra.mxu0 0.0
        %784 = vmatprep.subr.mxu0 0.0
        %785 = vmatpush1.msra.mxu0 0.0
        %786 = vmatprep.mubr.f32.mxu0 0.0
        %787 = vmatmul.mubr.f32.gmra.mrb[0].mxu0 %v480
        %v788 = vpop.f32.mrb[0].mxu0
        %v789 = vadd.f32 %v557, %v788
        %v790 = vpop.f32.mrb[0].mxu0
        %791 = vmatprep.mubr.f32.mxu0 0.0
        %792 = vmatmul.mubr.f32.gmra.mrb[0].mxu0 %v481
        %v793 = vpop.f32.mrb[0].mxu0
        %v794 = vadd.f32 %v557, %v793
        %v795 = vpop.f32.mrb[0].mxu0
        %796 = vmatprep.mubr.f32.mxu0 0.0
        %797 = vmatmul.mubr.f32.gmra.mrb[0].mxu0 %v482
        %v798 = vpop.f32.mrb[0].mxu0
        %v799 = vadd.f32 %v557, %v798
        %v800 = vpop.f32.mrb[0].mxu0
        %801 = vmatprep.mubr.f32.mxu0 0.0
        %802 = vmatmul.mubr.f32.gmra.mrb[0].mxu0 %v483
        %v803 = vpop.f32.mrb[0].mxu0
        %v804 = vadd.f32 %v557, %v803
        %v805 = vpop.f32.mrb[0].mxu0
        %806 = vmatprep.mubr.f32.mxu0 0.0
        %807 = vmatmul.mubr.f32.gmra.mrb[0].mxu0 %v484
        %v808 = vpop.f32.mrb[0].mxu0
        %v809 = vadd.f32 %v557, %v808
        %v810 = vpop.f32.mrb[0].mxu0
        %811 = vmatprep.mubr.f32.mxu0 0.0
        %812 = vmatmul.mubr.f32.gmra.mrb[0].mxu0 %v485
        %v813 = vpop.f32.mrb[0].mxu0
        %v814 = vadd.f32 %v557, %v813
        %v815 = vpop.f32.mrb[0].mxu0
        %816 = vmatprep.mubr.f32.mxu0 0.0
        %817 = vmatmul.mubr.f32.gmra.mrb[0].mxu0 %v486
        %v818 = vpop.f32.mrb[0].mxu0
        %v819 = vadd.f32 %v557, %v818
        %v820 = vpop.f32.mrb[0].mxu0
        %821 = vmatprep.mubr.f32.mxu0 0.0
        %822 = vmatmul.mubr.f32.gmra.mrb[0].mxu0 %v487
        %v823 = vpop.f32.mrb[0].mxu0
        %v824 = vadd.f32 %v557, %v823
        %v825 = vpop.f32.mrb[0].mxu0
        %826 = vmatprep.mubr.f32.mxu0 0.0
        %827 = vmatmul.mubr.f32.gmra.mrb[0].mxu0 %v488
        %v828 = vpop.f32.mrb[0].mxu0
        %v829 = vadd.f32 %v557, %v828
        %v830 = vpop.f32.mrb[0].mxu0
        %831 = vmatprep.mubr.f32.mxu0 0.0
        %832 = vmatmul.mubr.f32.gmra.mrb[0].mxu0 %v489
        %v833 = vpop.f32.mrb[0].mxu0
        %v834 = vadd.f32 %v557, %v833
        %v835 = vpop.f32.mrb[0].mxu0
        %836 = vmatprep.mubr.f32.mxu0 0.0
        %837 = vmatmul.mubr.f32.gmra.mrb[0].mxu0 %v490
        %v838 = vpop.f32.mrb[0].mxu0
        %v839 = vadd.f32 %v557, %v838
        %v840 = vpop.f32.mrb[0].mxu0
        %841 = vmatprep.mubr.f32.mxu0 0.0
        %842 = vmatmul.mubr.f32.gmra.mrb[0].mxu0 %v491
        %v843 = vpop.f32.mrb[0].mxu0
        %v844 = vadd.f32 %v557, %v843
        %v845 = vpop.f32.mrb[0].mxu0
        %846 = vmatprep.mubr.f32.mxu0 0.0
        %847 = vmatmul.mubr.f32.gmra.mrb[0].mxu0 %v492
        %v848 = vpop.f32.mrb[0].mxu0
        %v849 = vadd.f32 %v557, %v848
        %v850 = vpop.f32.mrb[0].mxu0
        %851 = vmatprep.mubr.f32.mxu0 0.0
        %852 = vmatmul.mubr.f32.gmra.mrb[0].mxu0 %v493
        %v853 = vpop.f32.mrb[0].mxu0
        %v854 = vadd.f32 %v557, %v853
        %v855 = vpop.f32.mrb[0].mxu0
        %856 = vmatprep.mubr.f32.mxu0 0.0
        %857 = vmatmul.mubr.f32.gmra.mrb[0].mxu0 %v494
        %v858 = vpop.f32.mrb[0].mxu0
        %v859 = vadd.f32 %v557, %v858
        %v860 = vpop.f32.mrb[0].mxu0
        %861 = vmatprep.mubr.f32.mxu0 0.0
        %862 = vmatmul.mubr.f32.gmra.mrb[0].mxu0 %v495
        %v863 = vpop.f32.mrb[0].mxu0
        %v864 = vadd.f32 %v557, %v863
        %v865 = vpop.f32.mrb[0].mxu0
        %866 = vdwg.mxu0
        %v867 = vmul.f32 %v628, 0.17677669
        %v868 = vmul.f32 %v634, 0.17677669
        %v869 = vmul.f32 %v640, 0.17677669
        %v870 = vmul.f32 %v646, 0.17677669
        %v871 = vmul.f32 %v652, 0.17677669
        %v872 = vmul.f32 %v658, 0.17677669
        %v873 = vmul.f32 %v664, 0.17677669
        %v874 = vmul.f32 %v670, 0.17677669
        %v875 = vmul.f32 %v676, 0.17677669
        %v876 = vmul.f32 %v682, 0.17677669
        %v877 = vmul.f32 %v688, 0.17677669
        %v878 = vmul.f32 %v694, 0.17677669
        %v879 = vmul.f32 %v700, 0.17677669
        %v880 = vmul.f32 %v706, 0.17677669
        %v881 = vmul.f32 %v712, 0.17677669
        %v882 = vmul.f32 %v718, 0.17677669
        %vm883 = vcmask 261120
        %v885 = vsel %vm883, %v867, 0
        %v888 = vsel %vm883, %v868, 0
        %v891 = vsel %vm883, %v869, 0
        %v894 = vsel %vm883, %v870, 0
        %v897 = vsel %vm883, %v871, 0
        %v900 = vsel %vm883, %v872, 0
        %v903 = vsel %vm883, %v873, 0
        %v906 = vsel %vm883, %v874, 0
        %v909 = vsel %vm883, %v875, 0
        %v912 = vsel %vm883, %v876, 0
        %v915 = vsel %vm883, %v877, 0
        %v918 = vsel %vm883, %v878, 0
        %v921 = vsel %vm883, %v879, 0
        %v924 = vsel %vm883, %v880, 0
        %v927 = vsel %vm883, %v881, 0
        %v930 = vsel %vm883, %v882, 0
        %v933 = vsel %vm883, %v630, 0
        %v936 = vsel %vm883, %v636, 0
        %v939 = vsel %vm883, %v642, 0
        %v942 = vsel %vm883, %v648, 0
        %v945 = vsel %vm883, %v654, 0
        %v948 = vsel %vm883, %v660, 0
        %v951 = vsel %vm883, %v666, 0
        %v954 = vsel %vm883, %v672, 0
        %v957 = vsel %vm883, %v678, 0
        %v960 = vsel %vm883, %v684, 0
        %v963 = vsel %vm883, %v690, 0
        %v966 = vsel %vm883, %v696, 0
        %v969 = vsel %vm883, %v702, 0
        %v972 = vsel %vm883, %v708, 0
        %v975 = vsel %vm883, %v714, 0
        %v978 = vsel %vm883, %v720, 0
        %980 = vmatprep.subr.mxu0 0.0
        %981 = vmatpush1.xpose.msra.mxu0 %v933
        %982 = vmatprep.subr.mxu0 0.0
        %983 = vmatpush1.xpose.msra.mxu0 %v936
        %984 = vmatprep.subr.mxu0 0.0
        %985 = vmatpush1.xpose.msra.mxu0 %v939
        %986 = vmatprep.subr.mxu0 0.0
        %987 = vmatpush1.xpose.msra.mxu0 %v942
        %988 = vmatprep.subr.mxu0 0.0
        %989 = vmatpush1.xpose.msra.mxu0 %v945
        %990 = vmatprep.subr.mxu0 0.0
        %991 = vmatpush1.xpose.msra.mxu0 %v948
        %992 = vmatprep.subr.mxu0 0.0
        %993 = vmatpush1.xpose.msra.mxu0 %v951
        %994 = vmatprep.subr.mxu0 0.0
        %995 = vmatpush1.xpose.msra.mxu0 %v954
        %996 = vmatprep.subr.mxu0 0.0
        %997 = vmatpush1.xpose.msra.mxu0 %v957
        %998 = vmatprep.subr.mxu0 0.0
        %999 = vmatpush1.xpose.msra.mxu0 %v960
        %1000 = vmatprep.subr.mxu0 0.0
        %1001 = vmatpush1.xpose.msra.mxu0 %v963
        %1002 = vmatprep.subr.mxu0 0.0
        %1003 = vmatpush1.xpose.msra.mxu0 %v966
        %1004 = vmatprep.subr.mxu0 0.0
        %1005 = vmatpush1.xpose.msra.mxu0 %v969
        %1006 = vmatprep.subr.mxu0 0.0
        %1007 = vmatpush1.xpose.msra.mxu0 %v972
        %1008 = vmatprep.subr.mxu0 0.0
        %1009 = vmatpush1.xpose.msra.mxu0 %v975
        %1010 = vmatprep.subr.mxu0 0.0
        %1011 = vmatpush1.xpose.msra.mxu0 %v978
        %1012 = vmatprep.subr.mxu0 0.0
        %1013 = vmatpush1.xpose.msra.mxu0 0.0
        %1014 = vmatprep.subr.mxu0 0.0
        %1015 = vmatpush1.xpose.msra.mxu0 0.0
        %1016 = vmatprep.subr.mxu0 0.0
        %1017 = vmatpush1.xpose.msra.mxu0 0.0
        %1018 = vmatprep.subr.mxu0 0.0
        %1019 = vmatpush1.xpose.msra.mxu0 0.0
        %1020 = vmatprep.subr.mxu0 0.0
        %1021 = vmatpush1.xpose.msra.mxu0 0.0
        %1022 = vmatprep.subr.mxu0 0.0
        %1023 = vmatpush1.xpose.msra.mxu0 0.0
        %1024 = vmatprep.subr.mxu0 0.0
        %1025 = vmatpush1.xpose.msra.mxu0 0.0
        %1026 = vmatprep.subr.mxu0 0.0
        %1027 = vmatpush1.xpose.msra.mxu0 0.0
        %1028 = vmatprep.subr.mxu0 0.0
        %1029 = vmatpush1.xpose.msra.mxu0 0.0
        %1030 = vmatprep.subr.mxu0 0.0
        %1031 = vmatpush1.xpose.msra.mxu0 0.0
        %1032 = vmatprep.subr.mxu0 0.0
        %1033 = vmatpush1.xpose.msra.mxu0 0.0
        %1034 = vmatprep.subr.mxu0 0.0
        %1035 = vmatpush1.xpose.msra.mxu0 0.0
        %1036 = vmatprep.subr.mxu0 0.0
        %1037 = vmatpush1.xpose.msra.mxu0 0.0
        %1038 = vmatprep.subr.mxu0 0.0
        %1039 = vmatpush1.xpose.msra.mxu0 0.0
        %1040 = vmatprep.subr.mxu0 0.0
        %1041 = vmatpush1.xpose.msra.mxu0 0.0
        %1042 = vmatprep.subr.mxu0 0.0
        %1043 = vmatpush1.xpose.msra.mxu0 0.0
        %1044 = vmatprep.mubr.f32.mxu0 0.0
        %1045 = vmatmul.mubr.f32.gmra.mrb[0].mxu0 %v885
        %v1046 = vpop.f32.mrb[0].mxu0
        %v1047 = vadd.f32 0.0, %v1046
        %v1048 = vpop.f32.mrb[0].mxu0
        %1049 = vmatprep.mubr.f32.mxu0 0.0
        %1050 = vmatmul.mubr.f32.gmra.mrb[0].mxu0 %v888
        %v1051 = vpop.f32.mrb[0].mxu0
        %v1052 = vadd.f32 0.0, %v1051
        %v1053 = vpop.f32.mrb[0].mxu0
        %1054 = vmatprep.mubr.f32.mxu0 0.0
        %1055 = vmatmul.mubr.f32.gmra.mrb[0].mxu0 %v891
        %v1056 = vpop.f32.mrb[0].mxu0
        %v1057 = vadd.f32 0.0, %v1056
        %v1058 = vpop.f32.mrb[0].mxu0
        %1059 = vmatprep.mubr.f32.mxu0 0.0
        %1060 = vmatmul.mubr.f32.gmra.mrb[0].mxu0 %v894
        %v1061 = vpop.f32.mrb[0].mxu0
        %v1062 = vadd.f32 0.0, %v1061
        %v1063 = vpop.f32.mrb[0].mxu0
        %1064 = vmatprep.mubr.f32.mxu0 0.0
        %1065 = vmatmul.mubr.f32.gmra.mrb[0].mxu0 %v897
        %v1066 = vpop.f32.mrb[0].mxu0
        %v1067 = vadd.f32 0.0, %v1066
        %v1068 = vpop.f32.mrb[0].mxu0
        %1069 = vmatprep.mubr.f32.mxu0 0.0
        %1070 = vmatmul.mubr.f32.gmra.mrb[0].mxu0 %v900
        %v1071 = vpop.f32.mrb[0].mxu0
        %v1072 = vadd.f32 0.0, %v1071
        %v1073 = vpop.f32.mrb[0].mxu0
        %1074 = vmatprep.mubr.f32.mxu0 0.0
        %1075 = vmatmul.mubr.f32.gmra.mrb[0].mxu0 %v903
        %v1076 = vpop.f32.mrb[0].mxu0
        %v1077 = vadd.f32 0.0, %v1076
        %v1078 = vpop.f32.mrb[0].mxu0
        %1079 = vmatprep.mubr.f32.mxu0 0.0
        %1080 = vmatmul.mubr.f32.gmra.mrb[0].mxu0 %v906
        %v1081 = vpop.f32.mrb[0].mxu0
        %v1082 = vadd.f32 0.0, %v1081
        %v1083 = vpop.f32.mrb[0].mxu0
        %1084 = vmatprep.mubr.f32.mxu0 0.0
        %1085 = vmatmul.mubr.f32.gmra.mrb[0].mxu0 %v909
        %v1086 = vpop.f32.mrb[0].mxu0
        %v1087 = vadd.f32 0.0, %v1086
        %v1088 = vpop.f32.mrb[0].mxu0
        %1089 = vmatprep.mubr.f32.mxu0 0.0
        %1090 = vmatmul.mubr.f32.gmra.mrb[0].mxu0 %v912
        %v1091 = vpop.f32.mrb[0].mxu0
        %v1092 = vadd.f32 0.0, %v1091
        %v1093 = vpop.f32.mrb[0].mxu0
        %1094 = vmatprep.mubr.f32.mxu0 0.0
        %1095 = vmatmul.mubr.f32.gmra.mrb[0].mxu0 %v915
        %v1096 = vpop.f32.mrb[0].mxu0
        %v1097 = vadd.f32 0.0, %v1096
        %v1098 = vpop.f32.mrb[0].mxu0
        %1099 = vmatprep.mubr.f32.mxu0 0.0
        %1100 = vmatmul.mubr.f32.gmra.mrb[0].mxu0 %v918
        %v1101 = vpop.f32.mrb[0].mxu0
        %v1102 = vadd.f32 0.0, %v1101
        %v1103 = vpop.f32.mrb[0].mxu0
        %1104 = vmatprep.mubr.f32.mxu0 0.0
        %1105 = vmatmul.mubr.f32.gmra.mrb[0].mxu0 %v921
        %v1106 = vpop.f32.mrb[0].mxu0
        %v1107 = vadd.f32 0.0, %v1106
        %v1108 = vpop.f32.mrb[0].mxu0
        %1109 = vmatprep.mubr.f32.mxu0 0.0
        %1110 = vmatmul.mubr.f32.gmra.mrb[0].mxu0 %v924
        %v1111 = vpop.f32.mrb[0].mxu0
        %v1112 = vadd.f32 0.0, %v1111
        %v1113 = vpop.f32.mrb[0].mxu0
        %1114 = vmatprep.mubr.f32.mxu0 0.0
        %1115 = vmatmul.mubr.f32.gmra.mrb[0].mxu0 %v927
        %v1116 = vpop.f32.mrb[0].mxu0
        %v1117 = vadd.f32 0.0, %v1116
        %v1118 = vpop.f32.mrb[0].mxu0
        %1119 = vmatprep.mubr.f32.mxu0 0.0
        %1120 = vmatmul.mubr.f32.gmra.mrb[0].mxu0 %v930
        %v1121 = vpop.f32.mrb[0].mxu0
        %v1122 = vadd.f32 0.0, %v1121
        %v1123 = vpop.f32.mrb[0].mxu0
        %1124 = vdwg.mxu0
        %1125 = vmax.xlane.f32.xlu0 %v1047
        %v1126 = vpop.xlane.xlu0 %1125
        %1127 = vmax.xlane.f32.xlu0 %v1052
        %v1128 = vpop.xlane.xlu0 %1127
        %1129 = vmax.xlane.f32.xlu0 %v1057
        %v1130 = vpop.xlane.xlu0 %1129
        %1131 = vmax.xlane.f32.xlu0 %v1062
        %v1132 = vpop.xlane.xlu0 %1131
        %1133 = vmax.xlane.f32.xlu0 %v1067
        %v1134 = vpop.xlane.xlu0 %1133
        %1135 = vmax.xlane.f32.xlu0 %v1072
        %v1136 = vpop.xlane.xlu0 %1135
        %1137 = vmax.xlane.f32.xlu0 %v1077
        %v1138 = vpop.xlane.xlu0 %1137
        %1139 = vmax.xlane.f32.xlu0 %v1082
        %v1140 = vpop.xlane.xlu0 %1139
        %1141 = vmax.xlane.f32.xlu0 %v1087
        %v1142 = vpop.xlane.xlu0 %1141
        %1143 = vmax.xlane.f32.xlu0 %v1092
        %v1144 = vpop.xlane.xlu0 %1143
        %1145 = vmax.xlane.f32.xlu0 %v1097
        %v1146 = vpop.xlane.xlu0 %1145
        %1147 = vmax.xlane.f32.xlu0 %v1102
        %v1148 = vpop.xlane.xlu0 %1147
        %1149 = vmax.xlane.f32.xlu0 %v1107
        %v1150 = vpop.xlane.xlu0 %1149
        %1151 = vmax.xlane.f32.xlu0 %v1112
        %v1152 = vpop.xlane.xlu0 %1151
        %1153 = vmax.xlane.f32.xlu0 %v1117
        %v1154 = vpop.xlane.xlu0 %1153
        %1155 = vmax.xlane.f32.xlu0 %v1122
        %v1156 = vpop.xlane.xlu0 %1155
        %v1157 = vsub.f32 -inf, %v1126
        %v1158 = vsub.f32 -inf, %v1128
        %v1159 = vsub.f32 -inf, %v1130
        %v1160 = vsub.f32 -inf, %v1132
        %v1161 = vsub.f32 -inf, %v1134
        %v1162 = vsub.f32 -inf, %v1136
        %v1163 = vsub.f32 -inf, %v1138
        %v1164 = vsub.f32 -inf, %v1140
        %v1165 = vsub.f32 -inf, %v1142
        %v1166 = vsub.f32 -inf, %v1144
        %v1167 = vsub.f32 -inf, %v1146
        %v1168 = vsub.f32 -inf, %v1148
        %v1169 = vsub.f32 -inf, %v1150
        %v1170 = vsub.f32 -inf, %v1152
        %v1171 = vsub.f32 -inf, %v1154
        %v1172 = vsub.f32 -inf, %v1156
        %v1173 = vmul.f32 %v1157, 1.442695
        %v1174 = vpow.pop %v1173
        %v1175 = vmul.f32 %v1158, 1.442695
        %v1176 = vpow.pop %v1175
        %v1177 = vmul.f32 %v1159, 1.442695
        %v1178 = vpow.pop %v1177
        %v1179 = vmul.f32 %v1160, 1.442695
        %v1180 = vpow.pop %v1179
        %v1181 = vmul.f32 %v1161, 1.442695
        %v1182 = vpow.pop %v1181
        %v1183 = vmul.f32 %v1162, 1.442695
        %v1184 = vpow.pop %v1183
        %v1185 = vmul.f32 %v1163, 1.442695
        %v1186 = vpow.pop %v1185
        %v1187 = vmul.f32 %v1164, 1.442695
        %v1188 = vpow.pop %v1187
        %v1189 = vmul.f32 %v1165, 1.442695
        %v1190 = vpow.pop %v1189
        %v1191 = vmul.f32 %v1166, 1.442695
        %v1192 = vpow.pop %v1191
        %v1193 = vmul.f32 %v1167, 1.442695
        %v1194 = vpow.pop %v1193
        %v1195 = vmul.f32 %v1168, 1.442695
        %v1196 = vpow.pop %v1195
        %v1197 = vmul.f32 %v1169, 1.442695
        %v1198 = vpow.pop %v1197
        %v1199 = vmul.f32 %v1170, 1.442695
        %v1200 = vpow.pop %v1199
        %v1201 = vmul.f32 %v1171, 1.442695
        %v1202 = vpow.pop %v1201
        %v1203 = vmul.f32 %v1172, 1.442695
        %v1204 = vpow.pop %v1203
        %v1205 = vsub.f32 %v1047, %v1126
        %v1206 = vsub.f32 %v1052, %v1128
        %v1207 = vsub.f32 %v1057, %v1130
        %v1208 = vsub.f32 %v1062, %v1132
        %v1209 = vsub.f32 %v1067, %v1134
        %v1210 = vsub.f32 %v1072, %v1136
        %v1211 = vsub.f32 %v1077, %v1138
        %v1212 = vsub.f32 %v1082, %v1140
        %v1213 = vsub.f32 %v1087, %v1142
        %v1214 = vsub.f32 %v1092, %v1144
        %v1215 = vsub.f32 %v1097, %v1146
        %v1216 = vsub.f32 %v1102, %v1148
        %v1217 = vsub.f32 %v1107, %v1150
        %v1218 = vsub.f32 %v1112, %v1152
        %v1219 = vsub.f32 %v1117, %v1154
        %v1220 = vsub.f32 %v1122, %v1156
        %v1221 = vmul.f32 %v1205, 1.442695
        %v1222 = vpow.pop %v1221
        %v1223 = vmul.f32 %v1206, 1.442695
        %v1224 = vpow.pop %v1223
        %v1225 = vmul.f32 %v1207, 1.442695
        %v1226 = vpow.pop %v1225
        %v1227 = vmul.f32 %v1208, 1.442695
        %v1228 = vpow.pop %v1227
        %v1229 = vmul.f32 %v1209, 1.442695
        %v1230 = vpow.pop %v1229
        %v1231 = vmul.f32 %v1210, 1.442695
        %v1232 = vpow.pop %v1231
        %v1233 = vmul.f32 %v1211, 1.442695
        %v1234 = vpow.pop %v1233
        %v1235 = vmul.f32 %v1212, 1.442695
        %v1236 = vpow.pop %v1235
        %v1237 = vmul.f32 %v1213, 1.442695
        %v1238 = vpow.pop %v1237
        %v1239 = vmul.f32 %v1214, 1.442695
        %v1240 = vpow.pop %v1239
        %v1241 = vmul.f32 %v1215, 1.442695
        %v1242 = vpow.pop %v1241
        %v1243 = vmul.f32 %v1216, 1.442695
        %v1244 = vpow.pop %v1243
        %v1245 = vmul.f32 %v1217, 1.442695
        %v1246 = vpow.pop %v1245
        %v1247 = vmul.f32 %v1218, 1.442695
        %v1248 = vpow.pop %v1247
        %v1249 = vmul.f32 %v1219, 1.442695
        %v1250 = vpow.pop %v1249
        %v1251 = vmul.f32 %v1220, 1.442695
        %v1252 = vpow.pop %v1251
        %v1253 = vmul.f32 %v1174, 0.0
        %v1254 = vmul.f32 %v1176, 0.0
        %v1255 = vmul.f32 %v1178, 0.0
        %v1256 = vmul.f32 %v1180, 0.0
        %v1257 = vmul.f32 %v1182, 0.0
        %v1258 = vmul.f32 %v1184, 0.0
        %v1259 = vmul.f32 %v1186, 0.0
        %v1260 = vmul.f32 %v1188, 0.0
        %v1261 = vmul.f32 %v1190, 0.0
        %v1262 = vmul.f32 %v1192, 0.0
        %v1263 = vmul.f32 %v1194, 0.0
        %v1264 = vmul.f32 %v1196, 0.0
        %v1265 = vmul.f32 %v1198, 0.0
        %v1266 = vmul.f32 %v1200, 0.0
        %v1267 = vmul.f32 %v1202, 0.0
        %v1268 = vmul.f32 %v1204, 0.0
        %1269 = vadd.xlane.f32.xlu0 %v1222
        %v1270 = vpop.xlane.xlu0 %1269
        %1271 = vadd.xlane.f32.xlu0 %v1224
        %v1272 = vpop.xlane.xlu0 %1271
        %1273 = vadd.xlane.f32.xlu0 %v1226
        %v1274 = vpop.xlane.xlu0 %1273
        %1275 = vadd.xlane.f32.xlu0 %v1228
        %v1276 = vpop.xlane.xlu0 %1275
        %1277 = vadd.xlane.f32.xlu0 %v1230
        %v1278 = vpop.xlane.xlu0 %1277
        %1279 = vadd.xlane.f32.xlu0 %v1232
        %v1280 = vpop.xlane.xlu0 %1279
        %1281 = vadd.xlane.f32.xlu0 %v1234
        %v1282 = vpop.xlane.xlu0 %1281
        %1283 = vadd.xlane.f32.xlu0 %v1236
        %v1284 = vpop.xlane.xlu0 %1283
        %1285 = vadd.xlane.f32.xlu0 %v1238
        %v1286 = vpop.xlane.xlu0 %1285
        %1287 = vadd.xlane.f32.xlu0 %v1240
        %v1288 = vpop.xlane.xlu0 %1287
        %1289 = vadd.xlane.f32.xlu0 %v1242
        %v1290 = vpop.xlane.xlu0 %1289
        %1291 = vadd.xlane.f32.xlu0 %v1244
        %v1292 = vpop.xlane.xlu0 %1291
        %1293 = vadd.xlane.f32.xlu0 %v1246
        %v1294 = vpop.xlane.xlu0 %1293
        %1295 = vadd.xlane.f32.xlu0 %v1248
        %v1296 = vpop.xlane.xlu0 %1295
        %1297 = vadd.xlane.f32.xlu0 %v1250
        %v1298 = vpop.xlane.xlu0 %1297
        %1299 = vadd.xlane.f32.xlu0 %v1252
        %v1300 = vpop.xlane.xlu0 %1299
        %v1301 = vadd.f32 %v1253, %v1270
        %v1302 = vadd.f32 %v1254, %v1272
        %v1303 = vadd.f32 %v1255, %v1274
        %v1304 = vadd.f32 %v1256, %v1276
        %v1305 = vadd.f32 %v1257, %v1278
        %v1306 = vadd.f32 %v1258, %v1280
        %v1307 = vadd.f32 %v1259, %v1282
        %v1308 = vadd.f32 %v1260, %v1284
        %v1309 = vadd.f32 %v1261, %v1286
        %v1310 = vadd.f32 %v1262, %v1288
        %v1311 = vadd.f32 %v1263, %v1290
        %v1312 = vadd.f32 %v1264, %v1292
        %v1313 = vadd.f32 %v1265, %v1294
        %v1314 = vadd.f32 %v1266, %v1296
        %v1315 = vadd.f32 %v1267, %v1298
        %v1316 = vadd.f32 %v1268, %v1300
        %1317 = vmatprep.subr.mxu0 0.0
        %1318 = vmatpush1.msra.mxu0 %v789
        %1319 = vmatprep.subr.mxu0 0.0
        %1320 = vmatpush1.msra.mxu0 %v794
        %1321 = vmatprep.subr.mxu0 0.0
        %1322 = vmatpush1.msra.mxu0 %v799
        %1323 = vmatprep.subr.mxu0 0.0
        %1324 = vmatpush1.msra.mxu0 %v804
        %1325 = vmatprep.subr.mxu0 0.0
        %1326 = vmatpush1.msra.mxu0 %v809
        %1327 = vmatprep.subr.mxu0 0.0
        %1328 = vmatpush1.msra.mxu0 %v814
        %1329 = vmatprep.subr.mxu0 0.0
        %1330 = vmatpush1.msra.mxu0 %v819
        %1331 = vmatprep.subr.mxu0 0.0
        %1332 = vmatpush1.msra.mxu0 %v824
        %1333 = vmatprep.subr.mxu0 0.0
        %1334 = vmatpush1.msra.mxu0 %v829
        %1335 = vmatprep.subr.mxu0 0.0
        %1336 = vmatpush1.msra.mxu0 %v834
        %1337 = vmatprep.subr.mxu0 0.0
        %1338 = vmatpush1.msra.mxu0 %v839
        %1339 = vmatprep.subr.mxu0 0.0
        %1340 = vmatpush1.msra.mxu0 %v844
        %1341 = vmatprep.subr.mxu0 0.0
        %1342 = vmatpush1.msra.mxu0 %v849
        %1343 = vmatprep.subr.mxu0 0.0
        %1344 = vmatpush1.msra.mxu0 %v854
        %1345 = vmatprep.subr.mxu0 0.0
        %1346 = vmatpush1.msra.mxu0 %v859
        %1347 = vmatprep.subr.mxu0 0.0
        %1348 = vmatpush1.msra.mxu0 %v864
        %1349 = vmatprep.subr.mxu0 0.0
        %1350 = vmatpush1.msra.mxu0 0.0
        %1351 = vmatprep.subr.mxu0 0.0
        %1352 = vmatpush1.msra.mxu0 0.0
        %1353 = vmatprep.subr.mxu0 0.0
        %1354 = vmatpush1.msra.mxu0 0.0
        %1355 = vmatprep.subr.mxu0 0.0
        %1356 = vmatpush1.msra.mxu0 0.0
        %1357 = vmatprep.subr.mxu0 0.0
        %1358 = vmatpush1.msra.mxu0 0.0
        %1359 = vmatprep.subr.mxu0 0.0
        %1360 = vmatpush1.msra.mxu0 0.0
        %1361 = vmatprep.subr.mxu0 0.0
        %1362 = vmatpush1.msra.mxu0 0.0
        %1363 = vmatprep.subr.mxu0 0.0
        %1364 = vmatpush1.msra.mxu0 0.0
        %1365 = vmatprep.subr.mxu0 0.0
        %1366 = vmatpush1.msra.mxu0 0.0
        %1367 = vmatprep.subr.mxu0 0.0
        %1368 = vmatpush1.msra.mxu0 0.0
        %1369 = vmatprep.subr.mxu0 0.0
        %1370 = vmatpush1.msra.mxu0 0.0
        %1371 = vmatprep.subr.mxu0 0.0
        %1372 = vmatpush1.msra.mxu0 0.0
        %1373 = vmatprep.subr.mxu0 0.0
        %1374 = vmatpush1.msra.mxu0 0.0
        %1375 = vmatprep.subr.mxu0 0.0
        %1376 = vmatpush1.msra.mxu0 0.0
        %1377 = vmatprep.subr.mxu0 0.0
        %1378 = vmatpush1.msra.mxu0 0.0
        %1379 = vmatprep.subr.mxu0 0.0
        %1380 = vmatpush1.msra.mxu0 0.0
        %1381 = vmatprep.mubr.f32.mxu0 0.0
        %1382 = vmatmul.mubr.f32.gmra.mrb[0].mxu0 %v1222
        %v1383 = vpop.f32.mrb[0].mxu0
        %v1384 = vadd.f32 0.0, %v1383
        %v1385 = vpop.f32.mrb[0].mxu0
        %1386 = vmatprep.mubr.f32.mxu0 0.0
        %1387 = vmatmul.mubr.f32.gmra.mrb[0].mxu0 %v1224
        %v1388 = vpop.f32.mrb[0].mxu0
        %v1389 = vadd.f32 0.0, %v1388
        %v1390 = vpop.f32.mrb[0].mxu0
        %1391 = vmatprep.mubr.f32.mxu0 0.0
        %1392 = vmatmul.mubr.f32.gmra.mrb[0].mxu0 %v1226
        %v1393 = vpop.f32.mrb[0].mxu0
        %v1394 = vadd.f32 0.0, %v1393
        %v1395 = vpop.f32.mrb[0].mxu0
        %1396 = vmatprep.mubr.f32.mxu0 0.0
        %1397 = vmatmul.mubr.f32.gmra.mrb[0].mxu0 %v1228
        %v1398 = vpop.f32.mrb[0].mxu0
        %v1399 = vadd.f32 0.0, %v1398
        %v1400 = vpop.f32.mrb[0].mxu0
        %1401 = vmatprep.mubr.f32.mxu0 0.0
        %1402 = vmatmul.mubr.f32.gmra.mrb[0].mxu0 %v1230
        %v1403 = vpop.f32.mrb[0].mxu0
        %v1404 = vadd.f32 0.0, %v1403
        %v1405 = vpop.f32.mrb[0].mxu0
        %1406 = vmatprep.mubr.f32.mxu0 0.0
        %1407 = vmatmul.mubr.f32.gmra.mrb[0].mxu0 %v1232
        %v1408 = vpop.f32.mrb[0].mxu0
        %v1409 = vadd.f32 0.0, %v1408
        %v1410 = vpop.f32.mrb[0].mxu0
        %1411 = vmatprep.mubr.f32.mxu0 0.0
        %1412 = vmatmul.mubr.f32.gmra.mrb[0].mxu0 %v1234
        %v1413 = vpop.f32.mrb[0].mxu0
        %v1414 = vadd.f32 0.0, %v1413
        %v1415 = vpop.f32.mrb[0].mxu0
        %1416 = vmatprep.mubr.f32.mxu0 0.0
        %1417 = vmatmul.mubr.f32.gmra.mrb[0].mxu0 %v1236
        %v1418 = vpop.f32.mrb[0].mxu0
        %v1419 = vadd.f32 0.0, %v1418
        %v1420 = vpop.f32.mrb[0].mxu0
        %1421 = vmatprep.mubr.f32.mxu0 0.0
        %1422 = vmatmul.mubr.f32.gmra.mrb[0].mxu0 %v1238
        %v1423 = vpop.f32.mrb[0].mxu0
        %v1424 = vadd.f32 0.0, %v1423
        %v1425 = vpop.f32.mrb[0].mxu0
        %1426 = vmatprep.mubr.f32.mxu0 0.0
        %1427 = vmatmul.mubr.f32.gmra.mrb[0].mxu0 %v1240
        %v1428 = vpop.f32.mrb[0].mxu0
        %v1429 = vadd.f32 0.0, %v1428
        %v1430 = vpop.f32.mrb[0].mxu0
        %1431 = vmatprep.mubr.f32.mxu0 0.0
        %1432 = vmatmul.mubr.f32.gmra.mrb[0].mxu0 %v1242
        %v1433 = vpop.f32.mrb[0].mxu0
        %v1434 = vadd.f32 0.0, %v1433
        %v1435 = vpop.f32.mrb[0].mxu0
        %1436 = vmatprep.mubr.f32.mxu0 0.0
        %1437 = vmatmul.mubr.f32.gmra.mrb[0].mxu0 %v1244
        %v1438 = vpop.f32.mrb[0].mxu0
        %v1439 = vadd.f32 0.0, %v1438
        %v1440 = vpop.f32.mrb[0].mxu0
        %1441 = vmatprep.mubr.f32.mxu0 0.0
        %1442 = vmatmul.mubr.f32.gmra.mrb[0].mxu0 %v1246
        %v1443 = vpop.f32.mrb[0].mxu0
        %v1444 = vadd.f32 0.0, %v1443
        %v1445 = vpop.f32.mrb[0].mxu0
        %1446 = vmatprep.mubr.f32.mxu0 0.0
        %1447 = vmatmul.mubr.f32.gmra.mrb[0].mxu0 %v1248
        %v1448 = vpop.f32.mrb[0].mxu0
        %v1449 = vadd.f32 0.0, %v1448
        %v1450 = vpop.f32.mrb[0].mxu0
        %1451 = vmatprep.mubr.f32.mxu0 0.0
        %1452 = vmatmul.mubr.f32.gmra.mrb[0].mxu0 %v1250
        %v1453 = vpop.f32.mrb[0].mxu0
        %v1454 = vadd.f32 0.0, %v1453
        %v1455 = vpop.f32.mrb[0].mxu0
        %1456 = vmatprep.mubr.f32.mxu0 0.0
        %1457 = vmatmul.mubr.f32.gmra.mrb[0].mxu0 %v1252
        %v1458 = vpop.f32.mrb[0].mxu0
        %v1459 = vadd.f32 0.0, %v1458
        %v1460 = vpop.f32.mrb[0].mxu0
        %1461 = vdwg.mxu0
        %v1462 = vadd.f32 %v1253, %v1384
        %v1463 = vadd.f32 %v1254, %v1389
        %v1464 = vadd.f32 %v1255, %v1394
        %v1465 = vadd.f32 %v1256, %v1399
        %v1466 = vadd.f32 %v1257, %v1404
        %v1467 = vadd.f32 %v1258, %v1409
        %v1468 = vadd.f32 %v1259, %v1414
        %v1469 = vadd.f32 %v1260, %v1419
        %v1470 = vadd.f32 %v1261, %v1424
        %v1471 = vadd.f32 %v1262, %v1429
        %v1472 = vadd.f32 %v1263, %v1434
        %v1473 = vadd.f32 %v1264, %v1439
        %v1474 = vadd.f32 %v1265, %v1444
        %v1475 = vadd.f32 %v1266, %v1449
        %v1476 = vadd.f32 %v1267, %v1454
        %v1477 = vadd.f32 %v1268, %v1459
        %v1478 = vrcp.pop %v1301
        %v1479 = vrcp.pop %v1302
        %v1480 = vrcp.pop %v1303
        %v1481 = vrcp.pop %v1304
        %v1482 = vrcp.pop %v1305
        %v1483 = vrcp.pop %v1306
        %v1484 = vrcp.pop %v1307
        %v1485 = vrcp.pop %v1308
        %v1486 = vrcp.pop %v1309
        %v1487 = vrcp.pop %v1310
        %v1488 = vrcp.pop %v1311
        %v1489 = vrcp.pop %v1312
        %v1490 = vrcp.pop %v1313
        %v1491 = vrcp.pop %v1314
        %v1492 = vrcp.pop %v1315
        %v1493 = vrcp.pop %v1316
        %v1494 = vmul.f32 %v1462, %v1478
        %v1495 = vmul.f32 %v1463, %v1479
        %v1496 = vmul.f32 %v1464, %v1480
        %v1497 = vmul.f32 %v1465, %v1481
        %v1498 = vmul.f32 %v1466, %v1482
        %v1499 = vmul.f32 %v1467, %v1483
        %v1500 = vmul.f32 %v1468, %v1484
        %v1501 = vmul.f32 %v1469, %v1485
        %v1502 = vmul.f32 %v1470, %v1486
        %v1503 = vmul.f32 %v1471, %v1487
        %v1504 = vmul.f32 %v1472, %v1488
        %v1505 = vmul.f32 %v1473, %v1489
        %v1506 = vmul.f32 %v1474, %v1490
        %v1507 = vmul.f32 %v1475, %v1491
        %v1508 = vmul.f32 %v1476, %v1492
        %v1509 = vmul.f32 %v1477, %v1493
        %1510 = vrot.lane.b32.xlu0 %v867, 96
        %v1511 = vpop.permute.xlu0 %1510
        %1512 = vrot.lane.b32.xlu0 %v868, 96
        %v1513 = vpop.permute.xlu0 %1512
        %1514 = vrot.lane.b32.xlu0 %v869, 96
        %v1515 = vpop.permute.xlu0 %1514
        %1516 = vrot.lane.b32.xlu0 %v870, 96
        %v1517 = vpop.permute.xlu0 %1516
        %1518 = vrot.lane.b32.xlu0 %v871, 96
        %v1519 = vpop.permute.xlu0 %1518
        %1520 = vrot.lane.b32.xlu0 %v872, 96
        %v1521 = vpop.permute.xlu0 %1520
        %1522 = vrot.lane.b32.xlu0 %v873, 96
        %v1523 = vpop.permute.xlu0 %1522
        %1524 = vrot.lane.b32.xlu0 %v874, 96
        %v1525 = vpop.permute.xlu0 %1524
        %1526 = vrot.lane.b32.xlu0 %v875, 96
        %v1527 = vpop.permute.xlu0 %1526
        %1528 = vrot.lane.b32.xlu0 %v876, 96
        %v1529 = vpop.permute.xlu0 %1528
        %1530 = vrot.lane.b32.xlu0 %v877, 96
        %v1531 = vpop.permute.xlu0 %1530
        %1532 = vrot.lane.b32.xlu0 %v878, 96
        %v1533 = vpop.permute.xlu0 %1532
        %1534 = vrot.lane.b32.xlu0 %v879, 96
        %v1535 = vpop.permute.xlu0 %1534
        %1536 = vrot.lane.b32.xlu0 %v880, 96
        %v1537 = vpop.permute.xlu0 %1536
        %1538 = vrot.lane.b32.xlu0 %v881, 96
        %v1539 = vpop.permute.xlu0 %1538
        %1540 = vrot.lane.b32.xlu0 %v882, 96
        %v1541 = vpop.permute.xlu0 %1540
        %1542 = vrot.lane.b32.xlu0 %v630, 96
        %v1543 = vpop.permute.xlu0 %1542
        %1544 = vrot.lane.b32.xlu0 %v636, 96
        %v1545 = vpop.permute.xlu0 %1544
        %1546 = vrot.lane.b32.xlu0 %v642, 96
        %v1547 = vpop.permute.xlu0 %1546
        %1548 = vrot.lane.b32.xlu0 %v648, 96
        %v1549 = vpop.permute.xlu0 %1548
        %1550 = vrot.lane.b32.xlu0 %v654, 96
        %v1551 = vpop.permute.xlu0 %1550
        %1552 = vrot.lane.b32.xlu0 %v660, 96
        %v1553 = vpop.permute.xlu0 %1552
        %1554 = vrot.lane.b32.xlu0 %v666, 96
        %v1555 = vpop.permute.xlu0 %1554
        %1556 = vrot.lane.b32.xlu0 %v672, 96
        %v1557 = vpop.permute.xlu0 %1556
        %1558 = vrot.lane.b32.xlu0 %v678, 96
        %v1559 = vpop.permute.xlu0 %1558
        %1560 = vrot.lane.b32.xlu0 %v684, 96
        %v1561 = vpop.permute.xlu0 %1560
        %1562 = vrot.lane.b32.xlu0 %v690, 96
        %v1563 = vpop.permute.xlu0 %1562
        %1564 = vrot.lane.b32.xlu0 %v696, 96
        %v1565 = vpop.permute.xlu0 %1564
        %1566 = vrot.lane.b32.xlu0 %v702, 96
        %v1567 = vpop.permute.xlu0 %1566
        %1568 = vrot.lane.b32.xlu0 %v708, 96
        %v1569 = vpop.permute.xlu0 %1568
        %1570 = vrot.lane.b32.xlu0 %v714, 96
        %v1571 = vpop.permute.xlu0 %1570
        %1572 = vrot.lane.b32.xlu0 %v720, 96
        %v1573 = vpop.permute.xlu0 %1572
        %v1574 = vsel %vm883, %v1511, 0
        %v1576 = vsel %vm883, %v1513, 0
        %v1578 = vsel %vm883, %v1515, 0
        %v1580 = vsel %vm883, %v1517, 0
        %v1582 = vsel %vm883, %v1519, 0
        %v1584 = vsel %vm883, %v1521, 0
        %v1586 = vsel %vm883, %v1523, 0
        %v1588 = vsel %vm883, %v1525, 0
        %v1590 = vsel %vm883, %v1527, 0
        %v1592 = vsel %vm883, %v1529, 0
        %v1594 = vsel %vm883, %v1531, 0
        %v1596 = vsel %vm883, %v1533, 0
        %v1598 = vsel %vm883, %v1535, 0
        %v1600 = vsel %vm883, %v1537, 0
        %v1602 = vsel %vm883, %v1539, 0
        %v1604 = vsel %vm883, %v1541, 0
        %v1606 = vsel %vm883, %v1543, 0
        %v1608 = vsel %vm883, %v1545, 0
        %v1610 = vsel %vm883, %v1547, 0
        %v1612 = vsel %vm883, %v1549, 0
        %v1614 = vsel %vm883, %v1551, 0
        %v1616 = vsel %vm883, %v1553, 0
        %v1618 = vsel %vm883, %v1555, 0
        %v1620 = vsel %vm883, %v1557, 0
        %v1622 = vsel %vm883, %v1559, 0
        %v1624 = vsel %vm883, %v1561, 0
        %v1626 = vsel %vm883, %v1563, 0
        %v1628 = vsel %vm883, %v1565, 0
        %v1630 = vsel %vm883, %v1567, 0
        %v1632 = vsel %vm883, %v1569, 0
        %v1634 = vsel %vm883, %v1571, 0
        %v1636 = vsel %vm883, %v1573, 0
        %1638 = vmatprep.subr.mxu0 0.0
        %1639 = vmatpush1.xpose.msra.mxu0 %v1606
        %1640 = vmatprep.subr.mxu0 0.0
        %1641 = vmatpush1.xpose.msra.mxu0 %v1608
        %1642 = vmatprep.subr.mxu0 0.0
        %1643 = vmatpush1.xpose.msra.mxu0 %v1610
        %1644 = vmatprep.subr.mxu0 0.0
        %1645 = vmatpush1.xpose.msra.mxu0 %v1612
        %1646 = vmatprep.subr.mxu0 0.0
        %1647 = vmatpush1.xpose.msra.mxu0 %v1614
        %1648 = vmatprep.subr.mxu0 0.0
        %1649 = vmatpush1.xpose.msra.mxu0 %v1616
        %1650 = vmatprep.subr.mxu0 0.0
        %1651 = vmatpush1.xpose.msra.mxu0 %v1618
        %1652 = vmatprep.subr.mxu0 0.0
        %1653 = vmatpush1.xpose.msra.mxu0 %v1620
        %1654 = vmatprep.subr.mxu0 0.0
        %1655 = vmatpush1.xpose.msra.mxu0 %v1622
        %1656 = vmatprep.subr.mxu0 0.0
        %1657 = vmatpush1.xpose.msra.mxu0 %v1624
        %1658 = vmatprep.subr.mxu0 0.0
        %1659 = vmatpush1.xpose.msra.mxu0 %v1626
        %1660 = vmatprep.subr.mxu0 0.0
        %1661 = vmatpush1.xpose.msra.mxu0 %v1628
        %1662 = vmatprep.subr.mxu0 0.0
        %1663 = vmatpush1.xpose.msra.mxu0 %v1630
        %1664 = vmatprep.subr.mxu0 0.0
        %1665 = vmatpush1.xpose.msra.mxu0 %v1632
        %1666 = vmatprep.subr.mxu0 0.0
        %1667 = vmatpush1.xpose.msra.mxu0 %v1634
        %1668 = vmatprep.subr.mxu0 0.0
        %1669 = vmatpush1.xpose.msra.mxu0 %v1636
        %1670 = vmatprep.subr.mxu0 0.0
        %1671 = vmatpush1.xpose.msra.mxu0 0.0
        %1672 = vmatprep.subr.mxu0 0.0
        %1673 = vmatpush1.xpose.msra.mxu0 0.0
        %1674 = vmatprep.subr.mxu0 0.0
        %1675 = vmatpush1.xpose.msra.mxu0 0.0
        %1676 = vmatprep.subr.mxu0 0.0
        %1677 = vmatpush1.xpose.msra.mxu0 0.0
        %1678 = vmatprep.subr.mxu0 0.0
        %1679 = vmatpush1.xpose.msra.mxu0 0.0
        %1680 = vmatprep.subr.mxu0 0.0
        %1681 = vmatpush1.xpose.msra.mxu0 0.0
        %1682 = vmatprep.subr.mxu0 0.0
        %1683 = vmatpush1.xpose.msra.mxu0 0.0
        %1684 = vmatprep.subr.mxu0 0.0
        %1685 = vmatpush1.xpose.msra.mxu0 0.0
        %1686 = vmatprep.subr.mxu0 0.0
        %1687 = vmatpush1.xpose.msra.mxu0 0.0
        %1688 = vmatprep.subr.mxu0 0.0
        %1689 = vmatpush1.xpose.msra.mxu0 0.0
        %1690 = vmatprep.subr.mxu0 0.0
        %1691 = vmatpush1.xpose.msra.mxu0 0.0
        %1692 = vmatprep.subr.mxu0 0.0
        %1693 = vmatpush1.xpose.msra.mxu0 0.0
        %1694 = vmatprep.subr.mxu0 0.0
        %1695 = vmatpush1.xpose.msra.mxu0 0.0
        %1696 = vmatprep.subr.mxu0 0.0
        %1697 = vmatpush1.xpose.msra.mxu0 0.0
        %1698 = vmatprep.subr.mxu0 0.0
        %1699 = vmatpush1.xpose.msra.mxu0 0.0
        %1700 = vmatprep.subr.mxu0 0.0
        %1701 = vmatpush1.xpose.msra.mxu0 0.0
        %1702 = vmatprep.mubr.f32.mxu0 0.0
        %1703 = vmatmul.mubr.f32.gmra.mrb[0].mxu0 %v1574
        %v1704 = vpop.f32.mrb[0].mxu0
        %v1705 = vadd.f32 0.0, %v1704
        %v1706 = vpop.f32.mrb[0].mxu0
        %1707 = vmatprep.mubr.f32.mxu0 0.0
        %1708 = vmatmul.mubr.f32.gmra.mrb[0].mxu0 %v1576
        %v1709 = vpop.f32.mrb[0].mxu0
        %v1710 = vadd.f32 0.0, %v1709
        %v1711 = vpop.f32.mrb[0].mxu0
        %1712 = vmatprep.mubr.f32.mxu0 0.0
        %1713 = vmatmul.mubr.f32.gmra.mrb[0].mxu0 %v1578
        %v1714 = vpop.f32.mrb[0].mxu0
        %v1715 = vadd.f32 0.0, %v1714
        %v1716 = vpop.f32.mrb[0].mxu0
        %1717 = vmatprep.mubr.f32.mxu0 0.0
        %1718 = vmatmul.mubr.f32.gmra.mrb[0].mxu0 %v1580
        %v1719 = vpop.f32.mrb[0].mxu0
        %v1720 = vadd.f32 0.0, %v1719
        %v1721 = vpop.f32.mrb[0].mxu0
        %1722 = vmatprep.mubr.f32.mxu0 0.0
        %1723 = vmatmul.mubr.f32.gmra.mrb[0].mxu0 %v1582
        %v1724 = vpop.f32.mrb[0].mxu0
        %v1725 = vadd.f32 0.0, %v1724
        %v1726 = vpop.f32.mrb[0].mxu0
        %1727 = vmatprep.mubr.f32.mxu0 0.0
        %1728 = vmatmul.mubr.f32.gmra.mrb[0].mxu0 %v1584
        %v1729 = vpop.f32.mrb[0].mxu0
        %v1730 = vadd.f32 0.0, %v1729
        %v1731 = vpop.f32.mrb[0].mxu0
        %1732 = vmatprep.mubr.f32.mxu0 0.0
        %1733 = vmatmul.mubr.f32.gmra.mrb[0].mxu0 %v1586
        %v1734 = vpop.f32.mrb[0].mxu0
        %v1735 = vadd.f32 0.0, %v1734
        %v1736 = vpop.f32.mrb[0].mxu0
        %1737 = vmatprep.mubr.f32.mxu0 0.0
        %1738 = vmatmul.mubr.f32.gmra.mrb[0].mxu0 %v1588
        %v1739 = vpop.f32.mrb[0].mxu0
        %v1740 = vadd.f32 0.0, %v1739
        %v1741 = vpop.f32.mrb[0].mxu0
        %1742 = vmatprep.mubr.f32.mxu0 0.0
        %1743 = vmatmul.mubr.f32.gmra.mrb[0].mxu0 %v1590
        %v1744 = vpop.f32.mrb[0].mxu0
        %v1745 = vadd.f32 0.0, %v1744
        %v1746 = vpop.f32.mrb[0].mxu0
        %1747 = vmatprep.mubr.f32.mxu0 0.0
        %1748 = vmatmul.mubr.f32.gmra.mrb[0].mxu0 %v1592
        %v1749 = vpop.f32.mrb[0].mxu0
        %v1750 = vadd.f32 0.0, %v1749
        %v1751 = vpop.f32.mrb[0].mxu0
        %1752 = vmatprep.mubr.f32.mxu0 0.0
        %1753 = vmatmul.mubr.f32.gmra.mrb[0].mxu0 %v1594
        %v1754 = vpop.f32.mrb[0].mxu0
        %v1755 = vadd.f32 0.0, %v1754
        %v1756 = vpop.f32.mrb[0].mxu0
        %1757 = vmatprep.mubr.f32.mxu0 0.0
        %1758 = vmatmul.mubr.f32.gmra.mrb[0].mxu0 %v1596
        %v1759 = vpop.f32.mrb[0].mxu0
        %v1760 = vadd.f32 0.0, %v1759
        %v1761 = vpop.f32.mrb[0].mxu0
        %1762 = vmatprep.mubr.f32.mxu0 0.0
        %1763 = vmatmul.mubr.f32.gmra.mrb[0].mxu0 %v1598
        %v1764 = vpop.f32.mrb[0].mxu0
        %v1765 = vadd.f32 0.0, %v1764
        %v1766 = vpop.f32.mrb[0].mxu0
        %1767 = vmatprep.mubr.f32.mxu0 0.0
        %1768 = vmatmul.mubr.f32.gmra.mrb[0].mxu0 %v1600
        %v1769 = vpop.f32.mrb[0].mxu0
        %v1770 = vadd.f32 0.0, %v1769
        %v1771 = vpop.f32.mrb[0].mxu0
        %1772 = vmatprep.mubr.f32.mxu0 0.0
        %1773 = vmatmul.mubr.f32.gmra.mrb[0].mxu0 %v1602
        %v1774 = vpop.f32.mrb[0].mxu0
        %v1775 = vadd.f32 0.0, %v1774
        %v1776 = vpop.f32.mrb[0].mxu0
        %1777 = vmatprep.mubr.f32.mxu0 0.0
        %1778 = vmatmul.mubr.f32.gmra.mrb[0].mxu0 %v1604
        %v1779 = vpop.f32.mrb[0].mxu0
        %v1780 = vadd.f32 0.0, %v1779
        %v1781 = vpop.f32.mrb[0].mxu0
        %1782 = vdwg.mxu0
        %1783 = vmax.xlane.f32.xlu0 %v1705
        %v1784 = vpop.xlane.xlu0 %1783
        %1785 = vmax.xlane.f32.xlu0 %v1710
        %v1786 = vpop.xlane.xlu0 %1785
        %1787 = vmax.xlane.f32.xlu0 %v1715
        %v1788 = vpop.xlane.xlu0 %1787
        %1789 = vmax.xlane.f32.xlu0 %v1720
        %v1790 = vpop.xlane.xlu0 %1789
        %1791 = vmax.xlane.f32.xlu0 %v1725
        %v1792 = vpop.xlane.xlu0 %1791
        %1793 = vmax.xlane.f32.xlu0 %v1730
        %v1794 = vpop.xlane.xlu0 %1793
        %1795 = vmax.xlane.f32.xlu0 %v1735
        %v1796 = vpop.xlane.xlu0 %1795
        %1797 = vmax.xlane.f32.xlu0 %v1740
        %v1798 = vpop.xlane.xlu0 %1797
        %1799 = vmax.xlane.f32.xlu0 %v1745
        %v1800 = vpop.xlane.xlu0 %1799
        %1801 = vmax.xlane.f32.xlu0 %v1750
        %v1802 = vpop.xlane.xlu0 %1801
        %1803 = vmax.xlane.f32.xlu0 %v1755
        %v1804 = vpop.xlane.xlu0 %1803
        %1805 = vmax.xlane.f32.xlu0 %v1760
        %v1806 = vpop.xlane.xlu0 %1805
        %1807 = vmax.xlane.f32.xlu0 %v1765
        %v1808 = vpop.xlane.xlu0 %1807
        %1809 = vmax.xlane.f32.xlu0 %v1770
        %v1810 = vpop.xlane.xlu0 %1809
        %1811 = vmax.xlane.f32.xlu0 %v1775
        %v1812 = vpop.xlane.xlu0 %1811
        %1813 = vmax.xlane.f32.xlu0 %v1780
        %v1814 = vpop.xlane.xlu0 %1813
        %v1815 = vsub.f32 -inf, %v1784
        %v1816 = vsub.f32 -inf, %v1786
        %v1817 = vsub.f32 -inf, %v1788
        %v1818 = vsub.f32 -inf, %v1790
        %v1819 = vsub.f32 -inf, %v1792
        %v1820 = vsub.f32 -inf, %v1794
        %v1821 = vsub.f32 -inf, %v1796
        %v1822 = vsub.f32 -inf, %v1798
        %v1823 = vsub.f32 -inf, %v1800
        %v1824 = vsub.f32 -inf, %v1802
        %v1825 = vsub.f32 -inf, %v1804
        %v1826 = vsub.f32 -inf, %v1806
        %v1827 = vsub.f32 -inf, %v1808
        %v1828 = vsub.f32 -inf, %v1810
        %v1829 = vsub.f32 -inf, %v1812
        %v1830 = vsub.f32 -inf, %v1814
        %v1831 = vmul.f32 %v1815, 1.442695
        %v1832 = vpow.pop %v1831
        %v1833 = vmul.f32 %v1816, 1.442695
        %v1834 = vpow.pop %v1833
        %v1835 = vmul.f32 %v1817, 1.442695
        %v1836 = vpow.pop %v1835
        %v1837 = vmul.f32 %v1818, 1.442695
        %v1838 = vpow.pop %v1837
        %v1839 = vmul.f32 %v1819, 1.442695
        %v1840 = vpow.pop %v1839
        %v1841 = vmul.f32 %v1820, 1.442695
        %v1842 = vpow.pop %v1841
        %v1843 = vmul.f32 %v1821, 1.442695
        %v1844 = vpow.pop %v1843
        %v1845 = vmul.f32 %v1822, 1.442695
        %v1846 = vpow.pop %v1845
        %v1847 = vmul.f32 %v1823, 1.442695
        %v1848 = vpow.pop %v1847
        %v1849 = vmul.f32 %v1824, 1.442695
        %v1850 = vpow.pop %v1849
        %v1851 = vmul.f32 %v1825, 1.442695
        %v1852 = vpow.pop %v1851
        %v1853 = vmul.f32 %v1826, 1.442695
        %v1854 = vpow.pop %v1853
        %v1855 = vmul.f32 %v1827, 1.442695
        %v1856 = vpow.pop %v1855
        %v1857 = vmul.f32 %v1828, 1.442695
        %v1858 = vpow.pop %v1857
        %v1859 = vmul.f32 %v1829, 1.442695
        %v1860 = vpow.pop %v1859
        %v1861 = vmul.f32 %v1830, 1.442695
        %v1862 = vpow.pop %v1861
        %v1863 = vsub.f32 %v1705, %v1784
        %v1864 = vsub.f32 %v1710, %v1786
        %v1865 = vsub.f32 %v1715, %v1788
        %v1866 = vsub.f32 %v1720, %v1790
        %v1867 = vsub.f32 %v1725, %v1792
        %v1868 = vsub.f32 %v1730, %v1794
        %v1869 = vsub.f32 %v1735, %v1796
        %v1870 = vsub.f32 %v1740, %v1798
        %v1871 = vsub.f32 %v1745, %v1800
        %v1872 = vsub.f32 %v1750, %v1802
        %v1873 = vsub.f32 %v1755, %v1804
        %v1874 = vsub.f32 %v1760, %v1806
        %v1875 = vsub.f32 %v1765, %v1808
        %v1876 = vsub.f32 %v1770, %v1810
        %v1877 = vsub.f32 %v1775, %v1812
        %v1878 = vsub.f32 %v1780, %v1814
        %v1879 = vmul.f32 %v1863, 1.442695
        %v1880 = vpow.pop %v1879
        %v1881 = vmul.f32 %v1864, 1.442695
        %v1882 = vpow.pop %v1881
        %v1883 = vmul.f32 %v1865, 1.442695
        %v1884 = vpow.pop %v1883
        %v1885 = vmul.f32 %v1866, 1.442695
        %v1886 = vpow.pop %v1885
        %v1887 = vmul.f32 %v1867, 1.442695
        %v1888 = vpow.pop %v1887
        %v1889 = vmul.f32 %v1868, 1.442695
        %v1890 = vpow.pop %v1889
        %v1891 = vmul.f32 %v1869, 1.442695
        %v1892 = vpow.pop %v1891
        %v1893 = vmul.f32 %v1870, 1.442695
        %v1894 = vpow.pop %v1893
        %v1895 = vmul.f32 %v1871, 1.442695
        %v1896 = vpow.pop %v1895
        %v1897 = vmul.f32 %v1872, 1.442695
        %v1898 = vpow.pop %v1897
        %v1899 = vmul.f32 %v1873, 1.442695
        %v1900 = vpow.pop %v1899
        %v1901 = vmul.f32 %v1874, 1.442695
        %v1902 = vpow.pop %v1901
        %v1903 = vmul.f32 %v1875, 1.442695
        %v1904 = vpow.pop %v1903
        %v1905 = vmul.f32 %v1876, 1.442695
        %v1906 = vpow.pop %v1905
        %v1907 = vmul.f32 %v1877, 1.442695
        %v1908 = vpow.pop %v1907
        %v1909 = vmul.f32 %v1878, 1.442695
        %v1910 = vpow.pop %v1909
        %v1911 = vmul.f32 %v1832, 0.0
        %v1912 = vmul.f32 %v1834, 0.0
        %v1913 = vmul.f32 %v1836, 0.0
        %v1914 = vmul.f32 %v1838, 0.0
        %v1915 = vmul.f32 %v1840, 0.0
        %v1916 = vmul.f32 %v1842, 0.0
        %v1917 = vmul.f32 %v1844, 0.0
        %v1918 = vmul.f32 %v1846, 0.0
        %v1919 = vmul.f32 %v1848, 0.0
        %v1920 = vmul.f32 %v1850, 0.0
        %v1921 = vmul.f32 %v1852, 0.0
        %v1922 = vmul.f32 %v1854, 0.0
        %v1923 = vmul.f32 %v1856, 0.0
        %v1924 = vmul.f32 %v1858, 0.0
        %v1925 = vmul.f32 %v1860, 0.0
        %v1926 = vmul.f32 %v1862, 0.0
        %1927 = vadd.xlane.f32.xlu0 %v1880
        %v1928 = vpop.xlane.xlu0 %1927
        %1929 = vadd.xlane.f32.xlu0 %v1882
        %v1930 = vpop.xlane.xlu0 %1929
        %1931 = vadd.xlane.f32.xlu0 %v1884
        %v1932 = vpop.xlane.xlu0 %1931
        %1933 = vadd.xlane.f32.xlu0 %v1886
        %v1934 = vpop.xlane.xlu0 %1933
        %1935 = vadd.xlane.f32.xlu0 %v1888
        %v1936 = vpop.xlane.xlu0 %1935
        %1937 = vadd.xlane.f32.xlu0 %v1890
        %v1938 = vpop.xlane.xlu0 %1937
        %1939 = vadd.xlane.f32.xlu0 %v1892
        %v1940 = vpop.xlane.xlu0 %1939
        %1941 = vadd.xlane.f32.xlu0 %v1894
        %v1942 = vpop.xlane.xlu0 %1941
        %1943 = vadd.xlane.f32.xlu0 %v1896
        %v1944 = vpop.xlane.xlu0 %1943
        %1945 = vadd.xlane.f32.xlu0 %v1898
        %v1946 = vpop.xlane.xlu0 %1945
        %1947 = vadd.xlane.f32.xlu0 %v1900
        %v1948 = vpop.xlane.xlu0 %1947
        %1949 = vadd.xlane.f32.xlu0 %v1902
        %v1950 = vpop.xlane.xlu0 %1949
        %1951 = vadd.xlane.f32.xlu0 %v1904
        %v1952 = vpop.xlane.xlu0 %1951
        %1953 = vadd.xlane.f32.xlu0 %v1906
        %v1954 = vpop.xlane.xlu0 %1953
        %1955 = vadd.xlane.f32.xlu0 %v1908
        %v1956 = vpop.xlane.xlu0 %1955
        %1957 = vadd.xlane.f32.xlu0 %v1910
        %v1958 = vpop.xlane.xlu0 %1957
        %v1959 = vadd.f32 %v1911, %v1928
        %v1960 = vadd.f32 %v1912, %v1930
        %v1961 = vadd.f32 %v1913, %v1932
        %v1962 = vadd.f32 %v1914, %v1934
        %v1963 = vadd.f32 %v1915, %v1936
        %v1964 = vadd.f32 %v1916, %v1938
        %v1965 = vadd.f32 %v1917, %v1940
        %v1966 = vadd.f32 %v1918, %v1942
        %v1967 = vadd.f32 %v1919, %v1944
        %v1968 = vadd.f32 %v1920, %v1946
        %v1969 = vadd.f32 %v1921, %v1948
        %v1970 = vadd.f32 %v1922, %v1950
        %v1971 = vadd.f32 %v1923, %v1952
        %v1972 = vadd.f32 %v1924, %v1954
        %v1973 = vadd.f32 %v1925, %v1956
        %v1974 = vadd.f32 %v1926, %v1958
        %1991 = vrot.lane.b32.xlu0 %v789, 96
        %v1992 = vpop.permute.xlu0 %1991
        %1993 = vrot.lane.b32.xlu0 %v794, 96
        %v1994 = vpop.permute.xlu0 %1993
        %1995 = vrot.lane.b32.xlu0 %v799, 96
        %v1996 = vpop.permute.xlu0 %1995
        %1997 = vrot.lane.b32.xlu0 %v804, 96
        %v1998 = vpop.permute.xlu0 %1997
        %1999 = vrot.lane.b32.xlu0 %v809, 96
        %v2000 = vpop.permute.xlu0 %1999
        %2001 = vrot.lane.b32.xlu0 %v814, 96
        %v2002 = vpop.permute.xlu0 %2001
        %2003 = vrot.lane.b32.xlu0 %v819, 96
        %v2004 = vpop.permute.xlu0 %2003
        %2005 = vrot.lane.b32.xlu0 %v824, 96
        %v2006 = vpop.permute.xlu0 %2005
        %2007 = vrot.lane.b32.xlu0 %v829, 96
        %v2008 = vpop.permute.xlu0 %2007
        %2009 = vrot.lane.b32.xlu0 %v834, 96
        %v2010 = vpop.permute.xlu0 %2009
        %2011 = vrot.lane.b32.xlu0 %v839, 96
        %v2012 = vpop.permute.xlu0 %2011
        %2013 = vrot.lane.b32.xlu0 %v844, 96
        %v2014 = vpop.permute.xlu0 %2013
        %2015 = vrot.lane.b32.xlu0 %v849, 96
        %v2016 = vpop.permute.xlu0 %2015
        %2017 = vrot.lane.b32.xlu0 %v854, 96
        %v2018 = vpop.permute.xlu0 %2017
        %2019 = vrot.lane.b32.xlu0 %v859, 96
        %v2020 = vpop.permute.xlu0 %2019
        %2021 = vrot.lane.b32.xlu0 %v864, 96
        %v2022 = vpop.permute.xlu0 %2021
        %2039 = vmatprep.subr.mxu0 0.0
        %2040 = vmatpush1.msra.mxu0 %v1992
        %2041 = vmatprep.subr.mxu0 0.0
        %2042 = vmatpush1.msra.mxu0 %v1994
        %2043 = vmatprep.subr.mxu0 0.0
        %2044 = vmatpush1.msra.mxu0 %v1996
        %2045 = vmatprep.subr.mxu0 0.0
        %2046 = vmatpush1.msra.mxu0 %v1998
        %2047 = vmatprep.subr.mxu0 0.0
        %2048 = vmatpush1.msra.mxu0 %v2000
        %2049 = vmatprep.subr.mxu0 0.0
        %2050 = vmatpush1.msra.mxu0 %v2002
        %2051 = vmatprep.subr.mxu0 0.0
        %2052 = vmatpush1.msra.mxu0 %v2004
        %2053 = vmatprep.subr.mxu0 0.0
        %2054 = vmatpush1.msra.mxu0 %v2006
        %2055 = vmatprep.subr.mxu0 0.0
        %2056 = vmatpush1.msra.mxu0 %v2008
        %2057 = vmatprep.subr.mxu0 0.0
        %2058 = vmatpush1.msra.mxu0 %v2010
        %2059 = vmatprep.subr.mxu0 0.0
        %2060 = vmatpush1.msra.mxu0 %v2012
        %2061 = vmatprep.subr.mxu0 0.0
        %2062 = vmatpush1.msra.mxu0 %v2014
        %2063 = vmatprep.subr.mxu0 0.0
        %2064 = vmatpush1.msra.mxu0 %v2016
        %2065 = vmatprep.subr.mxu0 0.0
        %2066 = vmatpush1.msra.mxu0 %v2018
        %2067 = vmatprep.subr.mxu0 0.0
        %2068 = vmatpush1.msra.mxu0 %v2020
        %2069 = vmatprep.subr.mxu0 0.0
        %2070 = vmatpush1.msra.mxu0 %v2022
        %2071 = vmatprep.subr.mxu0 0.0
        %2072 = vmatpush1.msra.mxu0 0.0
        %2073 = vmatprep.subr.mxu0 0.0
        %2074 = vmatpush1.msra.mxu0 0.0
        %2075 = vmatprep.subr.mxu0 0.0
        %2076 = vmatpush1.msra.mxu0 0.0
        %2077 = vmatprep.subr.mxu0 0.0
        %2078 = vmatpush1.msra.mxu0 0.0
        %2079 = vmatprep.subr.mxu0 0.0
        %2080 = vmatpush1.msra.mxu0 0.0
        %2081 = vmatprep.subr.mxu0 0.0
        %2082 = vmatpush1.msra.mxu0 0.0
        %2083 = vmatprep.subr.mxu0 0.0
        %2084 = vmatpush1.msra.mxu0 0.0
        %2085 = vmatprep.subr.mxu0 0.0
        %2086 = vmatpush1.msra.mxu0 0.0
        %2087 = vmatprep.subr.mxu0 0.0
        %2088 = vmatpush1.msra.mxu0 0.0
        %2089 = vmatprep.subr.mxu0 0.0
        %2090 = vmatpush1.msra.mxu0 0.0
        %2091 = vmatprep.subr.mxu0 0.0
        %2092 = vmatpush1.msra.mxu0 0.0
        %2093 = vmatprep.subr.mxu0 0.0
        %2094 = vmatpush1.msra.mxu0 0.0
        %2095 = vmatprep.subr.mxu0 0.0
        %2096 = vmatpush1.msra.mxu0 0.0
        %2097 = vmatprep.subr.mxu0 0.0
        %2098 = vmatpush1.msra.mxu0 0.0
        %2099 = vmatprep.subr.mxu0 0.0
        %2100 = vmatpush1.msra.mxu0 0.0
        %2101 = vmatprep.subr.mxu0 0.0
        %2102 = vmatpush1.msra.mxu0 0.0
        %2103 = vmatprep.mubr.f32.mxu0 0.0
        %2104 = vmatmul.mubr.f32.gmra.mrb[0].mxu0 %v1880
        %v2105 = vpop.f32.mrb[0].mxu0
        %v2106 = vadd.f32 0.0, %v2105
        %v2107 = vpop.f32.mrb[0].mxu0
        %2108 = vmatprep.mubr.f32.mxu0 0.0
        %2109 = vmatmul.mubr.f32.gmra.mrb[0].mxu0 %v1882
        %v2110 = vpop.f32.mrb[0].mxu0
        %v2111 = vadd.f32 0.0, %v2110
        %v2112 = vpop.f32.mrb[0].mxu0
        %2113 = vmatprep.mubr.f32.mxu0 0.0
        %2114 = vmatmul.mubr.f32.gmra.mrb[0].mxu0 %v1884
        %v2115 = vpop.f32.mrb[0].mxu0
        %v2116 = vadd.f32 0.0, %v2115
        %v2117 = vpop.f32.mrb[0].mxu0
        %2118 = vmatprep.mubr.f32.mxu0 0.0
        %2119 = vmatmul.mubr.f32.gmra.mrb[0].mxu0 %v1886
        %v2120 = vpop.f32.mrb[0].mxu0
        %v2121 = vadd.f32 0.0, %v2120
        %v2122 = vpop.f32.mrb[0].mxu0
        %2123 = vmatprep.mubr.f32.mxu0 0.0
        %2124 = vmatmul.mubr.f32.gmra.mrb[0].mxu0 %v1888
        %v2125 = vpop.f32.mrb[0].mxu0
        %v2126 = vadd.f32 0.0, %v2125
        %v2127 = vpop.f32.mrb[0].mxu0
        %2128 = vmatprep.mubr.f32.mxu0 0.0
        %2129 = vmatmul.mubr.f32.gmra.mrb[0].mxu0 %v1890
        %v2130 = vpop.f32.mrb[0].mxu0
        %v2131 = vadd.f32 0.0, %v2130
        %v2132 = vpop.f32.mrb[0].mxu0
        %2133 = vmatprep.mubr.f32.mxu0 0.0
        %2134 = vmatmul.mubr.f32.gmra.mrb[0].mxu0 %v1892
        %v2135 = vpop.f32.mrb[0].mxu0
        %v2136 = vadd.f32 0.0, %v2135
        %v2137 = vpop.f32.mrb[0].mxu0
        %2138 = vmatprep.mubr.f32.mxu0 0.0
        %2139 = vmatmul.mubr.f32.gmra.mrb[0].mxu0 %v1894
        %v2140 = vpop.f32.mrb[0].mxu0
        %v2141 = vadd.f32 0.0, %v2140
        %v2142 = vpop.f32.mrb[0].mxu0
        %2143 = vmatprep.mubr.f32.mxu0 0.0
        %2144 = vmatmul.mubr.f32.gmra.mrb[0].mxu0 %v1896
        %v2145 = vpop.f32.mrb[0].mxu0
        %v2146 = vadd.f32 0.0, %v2145
        %v2147 = vpop.f32.mrb[0].mxu0
        %2148 = vmatprep.mubr.f32.mxu0 0.0
        %2149 = vmatmul.mubr.f32.gmra.mrb[0].mxu0 %v1898
        %v2150 = vpop.f32.mrb[0].mxu0
        %v2151 = vadd.f32 0.0, %v2150
        %v2152 = vpop.f32.mrb[0].mxu0
        %2153 = vmatprep.mubr.f32.mxu0 0.0
        %2154 = vmatmul.mubr.f32.gmra.mrb[0].mxu0 %v1900
        %v2155 = vpop.f32.mrb[0].mxu0
        %v2156 = vadd.f32 0.0, %v2155
        %v2157 = vpop.f32.mrb[0].mxu0
        %2158 = vmatprep.mubr.f32.mxu0 0.0
        %2159 = vmatmul.mubr.f32.gmra.mrb[0].mxu0 %v1902
        %v2160 = vpop.f32.mrb[0].mxu0
        %v2161 = vadd.f32 0.0, %v2160
        %v2162 = vpop.f32.mrb[0].mxu0
        %2163 = vmatprep.mubr.f32.mxu0 0.0
        %2164 = vmatmul.mubr.f32.gmra.mrb[0].mxu0 %v1904
        %v2165 = vpop.f32.mrb[0].mxu0
        %v2166 = vadd.f32 0.0, %v2165
        %v2167 = vpop.f32.mrb[0].mxu0
        %2168 = vmatprep.mubr.f32.mxu0 0.0
        %2169 = vmatmul.mubr.f32.gmra.mrb[0].mxu0 %v1906
        %v2170 = vpop.f32.mrb[0].mxu0
        %v2171 = vadd.f32 0.0, %v2170
        %v2172 = vpop.f32.mrb[0].mxu0
        %2173 = vmatprep.mubr.f32.mxu0 0.0
        %2174 = vmatmul.mubr.f32.gmra.mrb[0].mxu0 %v1908
        %v2175 = vpop.f32.mrb[0].mxu0
        %v2176 = vadd.f32 0.0, %v2175
        %v2177 = vpop.f32.mrb[0].mxu0
        %2178 = vmatprep.mubr.f32.mxu0 0.0
        %2179 = vmatmul.mubr.f32.gmra.mrb[0].mxu0 %v1910
        %v2180 = vpop.f32.mrb[0].mxu0
        %v2181 = vadd.f32 0.0, %v2180
        %v2182 = vpop.f32.mrb[0].mxu0
        %2183 = vdwg.mxu0
        %v2184 = vadd.f32 %v1911, %v2106
        %v2185 = vadd.f32 %v1912, %v2111
        %v2186 = vadd.f32 %v1913, %v2116
        %v2187 = vadd.f32 %v1914, %v2121
        %v2188 = vadd.f32 %v1915, %v2126
        %v2189 = vadd.f32 %v1916, %v2131
        %v2190 = vadd.f32 %v1917, %v2136
        %v2191 = vadd.f32 %v1918, %v2141
        %v2192 = vadd.f32 %v1919, %v2146
        %v2193 = vadd.f32 %v1920, %v2151
        %v2194 = vadd.f32 %v1921, %v2156
        %v2195 = vadd.f32 %v1922, %v2161
        %v2196 = vadd.f32 %v1923, %v2166
        %v2197 = vadd.f32 %v1924, %v2171
        %v2198 = vadd.f32 %v1925, %v2176
        %v2199 = vadd.f32 %v1926, %v2181
        %v2200 = vrcp.pop %v1959
        %v2201 = vrcp.pop %v1960
        %v2202 = vrcp.pop %v1961
        %v2203 = vrcp.pop %v1962
        %v2204 = vrcp.pop %v1963
        %v2205 = vrcp.pop %v1964
        %v2206 = vrcp.pop %v1965
        %v2207 = vrcp.pop %v1966
        %v2208 = vrcp.pop %v1967
        %v2209 = vrcp.pop %v1968
        %v2210 = vrcp.pop %v1969
        %v2211 = vrcp.pop %v1970
        %v2212 = vrcp.pop %v1971
        %v2213 = vrcp.pop %v1972
        %v2214 = vrcp.pop %v1973
        %v2215 = vrcp.pop %v1974
        %v2216 = vmul.f32 %v2184, %v2200
        %v2217 = vmul.f32 %v2185, %v2201
        %v2218 = vmul.f32 %v2186, %v2202
        %v2219 = vmul.f32 %v2187, %v2203
        %v2220 = vmul.f32 %v2188, %v2204
        %v2221 = vmul.f32 %v2189, %v2205
        %v2222 = vmul.f32 %v2190, %v2206
        %v2223 = vmul.f32 %v2191, %v2207
        %v2224 = vmul.f32 %v2192, %v2208
        %v2225 = vmul.f32 %v2193, %v2209
        %v2226 = vmul.f32 %v2194, %v2210
        %v2227 = vmul.f32 %v2195, %v2211
        %v2228 = vmul.f32 %v2196, %v2212
        %v2229 = vmul.f32 %v2197, %v2213
        %v2230 = vmul.f32 %v2198, %v2214
        %v2231 = vmul.f32 %v2199, %v2215
        %2232 = vrot.lane.b32.xlu0 %v867, 64
        %v2233 = vpop.permute.xlu0 %2232
        %2234 = vrot.lane.b32.xlu0 %v868, 64
        %v2235 = vpop.permute.xlu0 %2234
        %2236 = vrot.lane.b32.xlu0 %v869, 64
        %v2237 = vpop.permute.xlu0 %2236
        %2238 = vrot.lane.b32.xlu0 %v870, 64
        %v2239 = vpop.permute.xlu0 %2238
        %2240 = vrot.lane.b32.xlu0 %v871, 64
        %v2241 = vpop.permute.xlu0 %2240
        %2242 = vrot.lane.b32.xlu0 %v872, 64
        %v2243 = vpop.permute.xlu0 %2242
        %2244 = vrot.lane.b32.xlu0 %v873, 64
        %v2245 = vpop.permute.xlu0 %2244
        %2246 = vrot.lane.b32.xlu0 %v874, 64
        %v2247 = vpop.permute.xlu0 %2246
        %2248 = vrot.lane.b32.xlu0 %v875, 64
        %v2249 = vpop.permute.xlu0 %2248
        %2250 = vrot.lane.b32.xlu0 %v876, 64
        %v2251 = vpop.permute.xlu0 %2250
        %2252 = vrot.lane.b32.xlu0 %v877, 64
        %v2253 = vpop.permute.xlu0 %2252
        %2254 = vrot.lane.b32.xlu0 %v878, 64
        %v2255 = vpop.permute.xlu0 %2254
        %2256 = vrot.lane.b32.xlu0 %v879, 64
        %v2257 = vpop.permute.xlu0 %2256
        %2258 = vrot.lane.b32.xlu0 %v880, 64
        %v2259 = vpop.permute.xlu0 %2258
        %2260 = vrot.lane.b32.xlu0 %v881, 64
        %v2261 = vpop.permute.xlu0 %2260
        %2262 = vrot.lane.b32.xlu0 %v882, 64
        %v2263 = vpop.permute.xlu0 %2262
        %2264 = vrot.lane.b32.xlu0 %v630, 64
        %v2265 = vpop.permute.xlu0 %2264
        %2266 = vrot.lane.b32.xlu0 %v636, 64
        %v2267 = vpop.permute.xlu0 %2266
        %2268 = vrot.lane.b32.xlu0 %v642, 64
        %v2269 = vpop.permute.xlu0 %2268
        %2270 = vrot.lane.b32.xlu0 %v648, 64
        %v2271 = vpop.permute.xlu0 %2270
        %2272 = vrot.lane.b32.xlu0 %v654, 64
        %v2273 = vpop.permute.xlu0 %2272
        %2274 = vrot.lane.b32.xlu0 %v660, 64
        %v2275 = vpop.permute.xlu0 %2274
        %2276 = vrot.lane.b32.xlu0 %v666, 64
        %v2277 = vpop.permute.xlu0 %2276
        %2278 = vrot.lane.b32.xlu0 %v672, 64
        %v2279 = vpop.permute.xlu0 %2278
        %2280 = vrot.lane.b32.xlu0 %v678, 64
        %v2281 = vpop.permute.xlu0 %2280
        %2282 = vrot.lane.b32.xlu0 %v684, 64
        %v2283 = vpop.permute.xlu0 %2282
        %2284 = vrot.lane.b32.xlu0 %v690, 64
        %v2285 = vpop.permute.xlu0 %2284
        %2286 = vrot.lane.b32.xlu0 %v696, 64
        %v2287 = vpop.permute.xlu0 %2286
        %2288 = vrot.lane.b32.xlu0 %v702, 64
        %v2289 = vpop.permute.xlu0 %2288
        %2290 = vrot.lane.b32.xlu0 %v708, 64
        %v2291 = vpop.permute.xlu0 %2290
        %2292 = vrot.lane.b32.xlu0 %v714, 64
        %v2293 = vpop.permute.xlu0 %2292
        %2294 = vrot.lane.b32.xlu0 %v720, 64
        %v2295 = vpop.permute.xlu0 %2294
        %v2296 = vsel %vm883, %v2233, 0
        %v2298 = vsel %vm883, %v2235, 0
        %v2300 = vsel %vm883, %v2237, 0
        %v2302 = vsel %vm883, %v2239, 0
        %v2304 = vsel %vm883, %v2241, 0
        %v2306 = vsel %vm883, %v2243, 0
        %v2308 = vsel %vm883, %v2245, 0
        %v2310 = vsel %vm883, %v2247, 0
        %v2312 = vsel %vm883, %v2249, 0
        %v2314 = vsel %vm883, %v2251, 0
        %v2316 = vsel %vm883, %v2253, 0
        %v2318 = vsel %vm883, %v2255, 0
        %v2320 = vsel %vm883, %v2257, 0
        %v2322 = vsel %vm883, %v2259, 0
        %v2324 = vsel %vm883, %v2261, 0
        %v2326 = vsel %vm883, %v2263, 0
        %v2328 = vsel %vm883, %v2265, 0
        %v2330 = vsel %vm883, %v2267, 0
        %v2332 = vsel %vm883, %v2269, 0
        %v2334 = vsel %vm883, %v2271, 0
        %v2336 = vsel %vm883, %v2273, 0
        %v2338 = vsel %vm883, %v2275, 0
        %v2340 = vsel %vm883, %v2277, 0
        %v2342 = vsel %vm883, %v2279, 0
        %v2344 = vsel %vm883, %v2281, 0
        %v2346 = vsel %vm883, %v2283, 0
        %v2348 = vsel %vm883, %v2285, 0
        %v2350 = vsel %vm883, %v2287, 0
        %v2352 = vsel %vm883, %v2289, 0
        %v2354 = vsel %vm883, %v2291, 0
        %v2356 = vsel %vm883, %v2293, 0
        %v2358 = vsel %vm883, %v2295, 0
        %2360 = vmatprep.subr.mxu0 0.0
        %2361 = vmatpush1.xpose.msra.mxu0 %v2328
        %2362 = vmatprep.subr.mxu0 0.0
        %2363 = vmatpush1.xpose.msra.mxu0 %v2330
        %2364 = vmatprep.subr.mxu0 0.0
        %2365 = vmatpush1.xpose.msra.mxu0 %v2332
        %2366 = vmatprep.subr.mxu0 0.0
        %2367 = vmatpush1.xpose.msra.mxu0 %v2334
        %2368 = vmatprep.subr.mxu0 0.0
        %2369 = vmatpush1.xpose.msra.mxu0 %v2336
        %2370 = vmatprep.subr.mxu0 0.0
        %2371 = vmatpush1.xpose.msra.mxu0 %v2338
        %2372 = vmatprep.subr.mxu0 0.0
        %2373 = vmatpush1.xpose.msra.mxu0 %v2340
        %2374 = vmatprep.subr.mxu0 0.0
        %2375 = vmatpush1.xpose.msra.mxu0 %v2342
        %2376 = vmatprep.subr.mxu0 0.0
        %2377 = vmatpush1.xpose.msra.mxu0 %v2344
        %2378 = vmatprep.subr.mxu0 0.0
        %2379 = vmatpush1.xpose.msra.mxu0 %v2346
        %2380 = vmatprep.subr.mxu0 0.0
        %2381 = vmatpush1.xpose.msra.mxu0 %v2348
        %2382 = vmatprep.subr.mxu0 0.0
        %2383 = vmatpush1.xpose.msra.mxu0 %v2350
        %2384 = vmatprep.subr.mxu0 0.0
        %2385 = vmatpush1.xpose.msra.mxu0 %v2352
        %2386 = vmatprep.subr.mxu0 0.0
        %2387 = vmatpush1.xpose.msra.mxu0 %v2354
        %2388 = vmatprep.subr.mxu0 0.0
        %2389 = vmatpush1.xpose.msra.mxu0 %v2356
        %2390 = vmatprep.subr.mxu0 0.0
        %2391 = vmatpush1.xpose.msra.mxu0 %v2358
        %2392 = vmatprep.subr.mxu0 0.0
        %2393 = vmatpush1.xpose.msra.mxu0 0.0
        %2394 = vmatprep.subr.mxu0 0.0
        %2395 = vmatpush1.xpose.msra.mxu0 0.0
        %2396 = vmatprep.subr.mxu0 0.0
        %2397 = vmatpush1.xpose.msra.mxu0 0.0
        %2398 = vmatprep.subr.mxu0 0.0
        %2399 = vmatpush1.xpose.msra.mxu0 0.0
        %2400 = vmatprep.subr.mxu0 0.0
        %2401 = vmatpush1.xpose.msra.mxu0 0.0
        %2402 = vmatprep.subr.mxu0 0.0
        %2403 = vmatpush1.xpose.msra.mxu0 0.0
        %2404 = vmatprep.subr.mxu0 0.0
        %2405 = vmatpush1.xpose.msra.mxu0 0.0
        %2406 = vmatprep.subr.mxu0 0.0
        %2407 = vmatpush1.xpose.msra.mxu0 0.0
        %2408 = vmatprep.subr.mxu0 0.0
        %2409 = vmatpush1.xpose.msra.mxu0 0.0
        %2410 = vmatprep.subr.mxu0 0.0
        %2411 = vmatpush1.xpose.msra.mxu0 0.0
        %2412 = vmatprep.subr.mxu0 0.0
        %2413 = vmatpush1.xpose.msra.mxu0 0.0
        %2414 = vmatprep.subr.mxu0 0.0
        %2415 = vmatpush1.xpose.msra.mxu0 0.0
        %2416 = vmatprep.subr.mxu0 0.0
        %2417 = vmatpush1.xpose.msra.mxu0 0.0
        %2418 = vmatprep.subr.mxu0 0.0
        %2419 = vmatpush1.xpose.msra.mxu0 0.0
        %2420 = vmatprep.subr.mxu0 0.0
        %2421 = vmatpush1.xpose.msra.mxu0 0.0
        %2422 = vmatprep.subr.mxu0 0.0
        %2423 = vmatpush1.xpose.msra.mxu0 0.0
        %2424 = vmatprep.mubr.f32.mxu0 0.0
        %2425 = vmatmul.mubr.f32.gmra.mrb[0].mxu0 %v2296
        %v2426 = vpop.f32.mrb[0].mxu0
        %v2427 = vadd.f32 0.0, %v2426
        %v2428 = vpop.f32.mrb[0].mxu0
        %2429 = vmatprep.mubr.f32.mxu0 0.0
        %2430 = vmatmul.mubr.f32.gmra.mrb[0].mxu0 %v2298
        %v2431 = vpop.f32.mrb[0].mxu0
        %v2432 = vadd.f32 0.0, %v2431
        %v2433 = vpop.f32.mrb[0].mxu0
        %2434 = vmatprep.mubr.f32.mxu0 0.0
        %2435 = vmatmul.mubr.f32.gmra.mrb[0].mxu0 %v2300
        %v2436 = vpop.f32.mrb[0].mxu0
        %v2437 = vadd.f32 0.0, %v2436
        %v2438 = vpop.f32.mrb[0].mxu0
        %2439 = vmatprep.mubr.f32.mxu0 0.0
        %2440 = vmatmul.mubr.f32.gmra.mrb[0].mxu0 %v2302
        %v2441 = vpop.f32.mrb[0].mxu0
        %v2442 = vadd.f32 0.0, %v2441
        %v2443 = vpop.f32.mrb[0].mxu0
        %2444 = vmatprep.mubr.f32.mxu0 0.0
        %2445 = vmatmul.mubr.f32.gmra.mrb[0].mxu0 %v2304
        %v2446 = vpop.f32.mrb[0].mxu0
        %v2447 = vadd.f32 0.0, %v2446
        %v2448 = vpop.f32.mrb[0].mxu0
        %2449 = vmatprep.mubr.f32.mxu0 0.0
        %2450 = vmatmul.mubr.f32.gmra.mrb[0].mxu0 %v2306
        %v2451 = vpop.f32.mrb[0].mxu0
        %v2452 = vadd.f32 0.0, %v2451
        %v2453 = vpop.f32.mrb[0].mxu0
        %2454 = vmatprep.mubr.f32.mxu0 0.0
        %2455 = vmatmul.mubr.f32.gmra.mrb[0].mxu0 %v2308
        %v2456 = vpop.f32.mrb[0].mxu0
        %v2457 = vadd.f32 0.0, %v2456
        %v2458 = vpop.f32.mrb[0].mxu0
        %2459 = vmatprep.mubr.f32.mxu0 0.0
        %2460 = vmatmul.mubr.f32.gmra.mrb[0].mxu0 %v2310
        %v2461 = vpop.f32.mrb[0].mxu0
        %v2462 = vadd.f32 0.0, %v2461
        %v2463 = vpop.f32.mrb[0].mxu0
        %2464 = vmatprep.mubr.f32.mxu0 0.0
        %2465 = vmatmul.mubr.f32.gmra.mrb[0].mxu0 %v2312
        %v2466 = vpop.f32.mrb[0].mxu0
        %v2467 = vadd.f32 0.0, %v2466
        %v2468 = vpop.f32.mrb[0].mxu0
        %2469 = vmatprep.mubr.f32.mxu0 0.0
        %2470 = vmatmul.mubr.f32.gmra.mrb[0].mxu0 %v2314
        %v2471 = vpop.f32.mrb[0].mxu0
        %v2472 = vadd.f32 0.0, %v2471
        %v2473 = vpop.f32.mrb[0].mxu0
        %2474 = vmatprep.mubr.f32.mxu0 0.0
        %2475 = vmatmul.mubr.f32.gmra.mrb[0].mxu0 %v2316
        %v2476 = vpop.f32.mrb[0].mxu0
        %v2477 = vadd.f32 0.0, %v2476
        %v2478 = vpop.f32.mrb[0].mxu0
        %2479 = vmatprep.mubr.f32.mxu0 0.0
        %2480 = vmatmul.mubr.f32.gmra.mrb[0].mxu0 %v2318
        %v2481 = vpop.f32.mrb[0].mxu0
        %v2482 = vadd.f32 0.0, %v2481
        %v2483 = vpop.f32.mrb[0].mxu0
        %2484 = vmatprep.mubr.f32.mxu0 0.0
        %2485 = vmatmul.mubr.f32.gmra.mrb[0].mxu0 %v2320
        %v2486 = vpop.f32.mrb[0].mxu0
        %v2487 = vadd.f32 0.0, %v2486
        %v2488 = vpop.f32.mrb[0].mxu0
        %2489 = vmatprep.mubr.f32.mxu0 0.0
        %2490 = vmatmul.mubr.f32.gmra.mrb[0].mxu0 %v2322
        %v2491 = vpop.f32.mrb[0].mxu0
        %v2492 = vadd.f32 0.0, %v2491
        %v2493 = vpop.f32.mrb[0].mxu0
        %2494 = vmatprep.mubr.f32.mxu0 0.0
        %2495 = vmatmul.mubr.f32.gmra.mrb[0].mxu0 %v2324
        %v2496 = vpop.f32.mrb[0].mxu0
        %v2497 = vadd.f32 0.0, %v2496
        %v2498 = vpop.f32.mrb[0].mxu0
        %2499 = vmatprep.mubr.f32.mxu0 0.0
        %2500 = vmatmul.mubr.f32.gmra.mrb[0].mxu0 %v2326
        %v2501 = vpop.f32.mrb[0].mxu0
        %v2502 = vadd.f32 0.0, %v2501
        %v2503 = vpop.f32.mrb[0].mxu0
        %2504 = vdwg.mxu0
        %2505 = vmax.xlane.f32.xlu0 %v2427
        %v2506 = vpop.xlane.xlu0 %2505
        %2507 = vmax.xlane.f32.xlu0 %v2432
        %v2508 = vpop.xlane.xlu0 %2507
        %2509 = vmax.xlane.f32.xlu0 %v2437
        %v2510 = vpop.xlane.xlu0 %2509
        %2511 = vmax.xlane.f32.xlu0 %v2442
        %v2512 = vpop.xlane.xlu0 %2511
        %2513 = vmax.xlane.f32.xlu0 %v2447
        %v2514 = vpop.xlane.xlu0 %2513
        %2515 = vmax.xlane.f32.xlu0 %v2452
        %v2516 = vpop.xlane.xlu0 %2515
        %2517 = vmax.xlane.f32.xlu0 %v2457
        %v2518 = vpop.xlane.xlu0 %2517
        %2519 = vmax.xlane.f32.xlu0 %v2462
        %v2520 = vpop.xlane.xlu0 %2519
        %2521 = vmax.xlane.f32.xlu0 %v2467
        %v2522 = vpop.xlane.xlu0 %2521
        %2523 = vmax.xlane.f32.xlu0 %v2472
        %v2524 = vpop.xlane.xlu0 %2523
        %2525 = vmax.xlane.f32.xlu0 %v2477
        %v2526 = vpop.xlane.xlu0 %2525
        %2527 = vmax.xlane.f32.xlu0 %v2482
        %v2528 = vpop.xlane.xlu0 %2527
        %2529 = vmax.xlane.f32.xlu0 %v2487
        %v2530 = vpop.xlane.xlu0 %2529
        %2531 = vmax.xlane.f32.xlu0 %v2492
        %v2532 = vpop.xlane.xlu0 %2531
        %2533 = vmax.xlane.f32.xlu0 %v2497
        %v2534 = vpop.xlane.xlu0 %2533
        %2535 = vmax.xlane.f32.xlu0 %v2502
        %v2536 = vpop.xlane.xlu0 %2535
        %v2537 = vsub.f32 -inf, %v2506
        %v2538 = vsub.f32 -inf, %v2508
        %v2539 = vsub.f32 -inf, %v2510
        %v2540 = vsub.f32 -inf, %v2512
        %v2541 = vsub.f32 -inf, %v2514
        %v2542 = vsub.f32 -inf, %v2516
        %v2543 = vsub.f32 -inf, %v2518
        %v2544 = vsub.f32 -inf, %v2520
        %v2545 = vsub.f32 -inf, %v2522
        %v2546 = vsub.f32 -inf, %v2524
        %v2547 = vsub.f32 -inf, %v2526
        %v2548 = vsub.f32 -inf, %v2528
        %v2549 = vsub.f32 -inf, %v2530
        %v2550 = vsub.f32 -inf, %v2532
        %v2551 = vsub.f32 -inf, %v2534
        %v2552 = vsub.f32 -inf, %v2536
        %v2553 = vmul.f32 %v2537, 1.442695
        %v2554 = vpow.pop %v2553
        %v2555 = vmul.f32 %v2538, 1.442695
        %v2556 = vpow.pop %v2555
        %v2557 = vmul.f32 %v2539, 1.442695
        %v2558 = vpow.pop %v2557
        %v2559 = vmul.f32 %v2540, 1.442695
        %v2560 = vpow.pop %v2559
        %v2561 = vmul.f32 %v2541, 1.442695
        %v2562 = vpow.pop %v2561
        %v2563 = vmul.f32 %v2542, 1.442695
        %v2564 = vpow.pop %v2563
        %v2565 = vmul.f32 %v2543, 1.442695
        %v2566 = vpow.pop %v2565
        %v2567 = vmul.f32 %v2544, 1.442695
        %v2568 = vpow.pop %v2567
        %v2569 = vmul.f32 %v2545, 1.442695
        %v2570 = vpow.pop %v2569
        %v2571 = vmul.f32 %v2546, 1.442695
        %v2572 = vpow.pop %v2571
        %v2573 = vmul.f32 %v2547, 1.442695
        %v2574 = vpow.pop %v2573
        %v2575 = vmul.f32 %v2548, 1.442695
        %v2576 = vpow.pop %v2575
        %v2577 = vmul.f32 %v2549, 1.442695
        %v2578 = vpow.pop %v2577
        %v2579 = vmul.f32 %v2550, 1.442695
        %v2580 = vpow.pop %v2579
        %v2581 = vmul.f32 %v2551, 1.442695
        %v2582 = vpow.pop %v2581
        %v2583 = vmul.f32 %v2552, 1.442695
        %v2584 = vpow.pop %v2583
        %v2585 = vsub.f32 %v2427, %v2506
        %v2586 = vsub.f32 %v2432, %v2508
        %v2587 = vsub.f32 %v2437, %v2510
        %v2588 = vsub.f32 %v2442, %v2512
        %v2589 = vsub.f32 %v2447, %v2514
        %v2590 = vsub.f32 %v2452, %v2516
        %v2591 = vsub.f32 %v2457, %v2518
        %v2592 = vsub.f32 %v2462, %v2520
        %v2593 = vsub.f32 %v2467, %v2522
        %v2594 = vsub.f32 %v2472, %v2524
        %v2595 = vsub.f32 %v2477, %v2526
        %v2596 = vsub.f32 %v2482, %v2528
        %v2597 = vsub.f32 %v2487, %v2530
        %v2598 = vsub.f32 %v2492, %v2532
        %v2599 = vsub.f32 %v2497, %v2534
        %v2600 = vsub.f32 %v2502, %v2536
        %v2601 = vmul.f32 %v2585, 1.442695
        %v2602 = vpow.pop %v2601
        %v2603 = vmul.f32 %v2586, 1.442695
        %v2604 = vpow.pop %v2603
        %v2605 = vmul.f32 %v2587, 1.442695
        %v2606 = vpow.pop %v2605
        %v2607 = vmul.f32 %v2588, 1.442695
        %v2608 = vpow.pop %v2607
        %v2609 = vmul.f32 %v2589, 1.442695
        %v2610 = vpow.pop %v2609
        %v2611 = vmul.f32 %v2590, 1.442695
        %v2612 = vpow.pop %v2611
        %v2613 = vmul.f32 %v2591, 1.442695
        %v2614 = vpow.pop %v2613
        %v2615 = vmul.f32 %v2592, 1.442695
        %v2616 = vpow.pop %v2615
        %v2617 = vmul.f32 %v2593, 1.442695
        %v2618 = vpow.pop %v2617
        %v2619 = vmul.f32 %v2594, 1.442695
        %v2620 = vpow.pop %v2619
        %v2621 = vmul.f32 %v2595, 1.442695
        %v2622 = vpow.pop %v2621
        %v2623 = vmul.f32 %v2596, 1.442695
        %v2624 = vpow.pop %v2623
        %v2625 = vmul.f32 %v2597, 1.442695
        %v2626 = vpow.pop %v2625
        %v2627 = vmul.f32 %v2598, 1.442695
        %v2628 = vpow.pop %v2627
        %v2629 = vmul.f32 %v2599, 1.442695
        %v2630 = vpow.pop %v2629
        %v2631 = vmul.f32 %v2600, 1.442695
        %v2632 = vpow.pop %v2631
        %v2633 = vmul.f32 %v2554, 0.0
        %v2634 = vmul.f32 %v2556, 0.0
        %v2635 = vmul.f32 %v2558, 0.0
        %v2636 = vmul.f32 %v2560, 0.0
        %v2637 = vmul.f32 %v2562, 0.0
        %v2638 = vmul.f32 %v2564, 0.0
        %v2639 = vmul.f32 %v2566, 0.0
        %v2640 = vmul.f32 %v2568, 0.0
        %v2641 = vmul.f32 %v2570, 0.0
        %v2642 = vmul.f32 %v2572, 0.0
        %v2643 = vmul.f32 %v2574, 0.0
        %v2644 = vmul.f32 %v2576, 0.0
        %v2645 = vmul.f32 %v2578, 0.0
        %v2646 = vmul.f32 %v2580, 0.0
        %v2647 = vmul.f32 %v2582, 0.0
        %v2648 = vmul.f32 %v2584, 0.0
        %2649 = vadd.xlane.f32.xlu0 %v2602
        %v2650 = vpop.xlane.xlu0 %2649
        %2651 = vadd.xlane.f32.xlu0 %v2604
        %v2652 = vpop.xlane.xlu0 %2651
        %2653 = vadd.xlane.f32.xlu0 %v2606
        %v2654 = vpop.xlane.xlu0 %2653
        %2655 = vadd.xlane.f32.xlu0 %v2608
        %v2656 = vpop.xlane.xlu0 %2655
        %2657 = vadd.xlane.f32.xlu0 %v2610
        %v2658 = vpop.xlane.xlu0 %2657
        %2659 = vadd.xlane.f32.xlu0 %v2612
        %v2660 = vpop.xlane.xlu0 %2659
        %2661 = vadd.xlane.f32.xlu0 %v2614
        %v2662 = vpop.xlane.xlu0 %2661
        %2663 = vadd.xlane.f32.xlu0 %v2616
        %v2664 = vpop.xlane.xlu0 %2663
        %2665 = vadd.xlane.f32.xlu0 %v2618
        %v2666 = vpop.xlane.xlu0 %2665
        %2667 = vadd.xlane.f32.xlu0 %v2620
        %v2668 = vpop.xlane.xlu0 %2667
        %2669 = vadd.xlane.f32.xlu0 %v2622
        %v2670 = vpop.xlane.xlu0 %2669
        %2671 = vadd.xlane.f32.xlu0 %v2624
        %v2672 = vpop.xlane.xlu0 %2671
        %2673 = vadd.xlane.f32.xlu0 %v2626
        %v2674 = vpop.xlane.xlu0 %2673
        %2675 = vadd.xlane.f32.xlu0 %v2628
        %v2676 = vpop.xlane.xlu0 %2675
        %2677 = vadd.xlane.f32.xlu0 %v2630
        %v2678 = vpop.xlane.xlu0 %2677
        %2679 = vadd.xlane.f32.xlu0 %v2632
        %v2680 = vpop.xlane.xlu0 %2679
        %v2681 = vadd.f32 %v2633, %v2650
        %v2682 = vadd.f32 %v2634, %v2652
        %v2683 = vadd.f32 %v2635, %v2654
        %v2684 = vadd.f32 %v2636, %v2656
        %v2685 = vadd.f32 %v2637, %v2658
        %v2686 = vadd.f32 %v2638, %v2660
        %v2687 = vadd.f32 %v2639, %v2662
        %v2688 = vadd.f32 %v2640, %v2664
        %v2689 = vadd.f32 %v2641, %v2666
        %v2690 = vadd.f32 %v2642, %v2668
        %v2691 = vadd.f32 %v2643, %v2670
        %v2692 = vadd.f32 %v2644, %v2672
        %v2693 = vadd.f32 %v2645, %v2674
        %v2694 = vadd.f32 %v2646, %v2676
        %v2695 = vadd.f32 %v2647, %v2678
        %v2696 = vadd.f32 %v2648, %v2680
        %2697 = vrot.lane.b32.xlu0 %v789, 64
        %v2698 = vpop.permute.xlu0 %2697
        %2699 = vrot.lane.b32.xlu0 %v794, 64
        %v2700 = vpop.permute.xlu0 %2699
        %2701 = vrot.lane.b32.xlu0 %v799, 64
        %v2702 = vpop.permute.xlu0 %2701
        %2703 = vrot.lane.b32.xlu0 %v804, 64
        %v2704 = vpop.permute.xlu0 %2703
        %2705 = vrot.lane.b32.xlu0 %v809, 64
        %v2706 = vpop.permute.xlu0 %2705
        %2707 = vrot.lane.b32.xlu0 %v814, 64
        %v2708 = vpop.permute.xlu0 %2707
        %2709 = vrot.lane.b32.xlu0 %v819, 64
        %v2710 = vpop.permute.xlu0 %2709
        %2711 = vrot.lane.b32.xlu0 %v824, 64
        %v2712 = vpop.permute.xlu0 %2711
        %2713 = vrot.lane.b32.xlu0 %v829, 64
        %v2714 = vpop.permute.xlu0 %2713
        %2715 = vrot.lane.b32.xlu0 %v834, 64
        %v2716 = vpop.permute.xlu0 %2715
        %2717 = vrot.lane.b32.xlu0 %v839, 64
        %v2718 = vpop.permute.xlu0 %2717
        %2719 = vrot.lane.b32.xlu0 %v844, 64
        %v2720 = vpop.permute.xlu0 %2719
        %2721 = vrot.lane.b32.xlu0 %v849, 64
        %v2722 = vpop.permute.xlu0 %2721
        %2723 = vrot.lane.b32.xlu0 %v854, 64
        %v2724 = vpop.permute.xlu0 %2723
        %2725 = vrot.lane.b32.xlu0 %v859, 64
        %v2726 = vpop.permute.xlu0 %2725
        %2727 = vrot.lane.b32.xlu0 %v864, 64
        %v2728 = vpop.permute.xlu0 %2727
        %2745 = vmatprep.subr.mxu0 0.0
        %2746 = vmatpush1.msra.mxu0 %v2698
        %2747 = vmatprep.subr.mxu0 0.0
        %2748 = vmatpush1.msra.mxu0 %v2700
        %2749 = vmatprep.subr.mxu0 0.0
        %2750 = vmatpush1.msra.mxu0 %v2702
        %2751 = vmatprep.subr.mxu0 0.0
        %2752 = vmatpush1.msra.mxu0 %v2704
        %2753 = vmatprep.subr.mxu0 0.0
        %2754 = vmatpush1.msra.mxu0 %v2706
        %2755 = vmatprep.subr.mxu0 0.0
        %2756 = vmatpush1.msra.mxu0 %v2708
        %2757 = vmatprep.subr.mxu0 0.0
        %2758 = vmatpush1.msra.mxu0 %v2710
        %2759 = vmatprep.subr.mxu0 0.0
        %2760 = vmatpush1.msra.mxu0 %v2712
        %2761 = vmatprep.subr.mxu0 0.0
        %2762 = vmatpush1.msra.mxu0 %v2714
        %2763 = vmatprep.subr.mxu0 0.0
        %2764 = vmatpush1.msra.mxu0 %v2716
        %2765 = vmatprep.subr.mxu0 0.0
        %2766 = vmatpush1.msra.mxu0 %v2718
        %2767 = vmatprep.subr.mxu0 0.0
        %2768 = vmatpush1.msra.mxu0 %v2720
        %2769 = vmatprep.subr.mxu0 0.0
        %2770 = vmatpush1.msra.mxu0 %v2722
        %2771 = vmatprep.subr.mxu0 0.0
        %2772 = vmatpush1.msra.mxu0 %v2724
        %2773 = vmatprep.subr.mxu0 0.0
        %2774 = vmatpush1.msra.mxu0 %v2726
        %2775 = vmatprep.subr.mxu0 0.0
        %2776 = vmatpush1.msra.mxu0 %v2728
        %2777 = vmatprep.subr.mxu0 0.0
        %2778 = vmatpush1.msra.mxu0 0.0
        %2779 = vmatprep.subr.mxu0 0.0
        %2780 = vmatpush1.msra.mxu0 0.0
        %2781 = vmatprep.subr.mxu0 0.0
        %2782 = vmatpush1.msra.mxu0 0.0
        %2783 = vmatprep.subr.mxu0 0.0
        %2784 = vmatpush1.msra.mxu0 0.0
        %2785 = vmatprep.subr.mxu0 0.0
        %2786 = vmatpush1.msra.mxu0 0.0
        %2787 = vmatprep.subr.mxu0 0.0
        %2788 = vmatpush1.msra.mxu0 0.0
        %2789 = vmatprep.subr.mxu0 0.0
        %2790 = vmatpush1.msra.mxu0 0.0
        %2791 = vmatprep.subr.mxu0 0.0
        %2792 = vmatpush1.msra.mxu0 0.0
        %2793 = vmatprep.subr.mxu0 0.0
        %2794 = vmatpush1.msra.mxu0 0.0
        %2795 = vmatprep.subr.mxu0 0.0
        %2796 = vmatpush1.msra.mxu0 0.0
        %2797 = vmatprep.subr.mxu0 0.0
        %2798 = vmatpush1.msra.mxu0 0.0
        %2799 = vmatprep.subr.mxu0 0.0
        %2800 = vmatpush1.msra.mxu0 0.0
        %2801 = vmatprep.subr.mxu0 0.0
        %2802 = vmatpush1.msra.mxu0 0.0
        %2803 = vmatprep.subr.mxu0 0.0
        %2804 = vmatpush1.msra.mxu0 0.0
        %2805 = vmatprep.subr.mxu0 0.0
        %2806 = vmatpush1.msra.mxu0 0.0
        %2807 = vmatprep.subr.mxu0 0.0
        %2808 = vmatpush1.msra.mxu0 0.0
        %2809 = vmatprep.mubr.f32.mxu0 0.0
        %2810 = vmatmul.mubr.f32.gmra.mrb[0].mxu0 %v2602
        %v2811 = vpop.f32.mrb[0].mxu0
        %v2812 = vadd.f32 0.0, %v2811
        %v2813 = vpop.f32.mrb[0].mxu0
        %2814 = vmatprep.mubr.f32.mxu0 0.0
        %2815 = vmatmul.mubr.f32.gmra.mrb[0].mxu0 %v2604
        %v2816 = vpop.f32.mrb[0].mxu0
        %v2817 = vadd.f32 0.0, %v2816
        %v2818 = vpop.f32.mrb[0].mxu0
        %2819 = vmatprep.mubr.f32.mxu0 0.0
        %2820 = vmatmul.mubr.f32.gmra.mrb[0].mxu0 %v2606
        %v2821 = vpop.f32.mrb[0].mxu0
        %v2822 = vadd.f32 0.0, %v2821
        %v2823 = vpop.f32.mrb[0].mxu0
        %2824 = vmatprep.mubr.f32.mxu0 0.0
        %2825 = vmatmul.mubr.f32.gmra.mrb[0].mxu0 %v2608
        %v2826 = vpop.f32.mrb[0].mxu0
        %v2827 = vadd.f32 0.0, %v2826
        %v2828 = vpop.f32.mrb[0].mxu0
        %2829 = vmatprep.mubr.f32.mxu0 0.0
        %2830 = vmatmul.mubr.f32.gmra.mrb[0].mxu0 %v2610
        %v2831 = vpop.f32.mrb[0].mxu0
        %v2832 = vadd.f32 0.0, %v2831
        %v2833 = vpop.f32.mrb[0].mxu0
        %2834 = vmatprep.mubr.f32.mxu0 0.0
        %2835 = vmatmul.mubr.f32.gmra.mrb[0].mxu0 %v2612
        %v2836 = vpop.f32.mrb[0].mxu0
        %v2837 = vadd.f32 0.0, %v2836
        %v2838 = vpop.f32.mrb[0].mxu0
        %2839 = vmatprep.mubr.f32.mxu0 0.0
        %2840 = vmatmul.mubr.f32.gmra.mrb[0].mxu0 %v2614
        %v2841 = vpop.f32.mrb[0].mxu0
        %v2842 = vadd.f32 0.0, %v2841
        %v2843 = vpop.f32.mrb[0].mxu0
        %2844 = vmatprep.mubr.f32.mxu0 0.0
        %2845 = vmatmul.mubr.f32.gmra.mrb[0].mxu0 %v2616
        %v2846 = vpop.f32.mrb[0].mxu0
        %v2847 = vadd.f32 0.0, %v2846
        %v2848 = vpop.f32.mrb[0].mxu0
        %2849 = vmatprep.mubr.f32.mxu0 0.0
        %2850 = vmatmul.mubr.f32.gmra.mrb[0].mxu0 %v2618
        %v2851 = vpop.f32.mrb[0].mxu0
        %v2852 = vadd.f32 0.0, %v2851
        %v2853 = vpop.f32.mrb[0].mxu0
        %2854 = vmatprep.mubr.f32.mxu0 0.0
        %2855 = vmatmul.mubr.f32.gmra.mrb[0].mxu0 %v2620
        %v2856 = vpop.f32.mrb[0].mxu0
        %v2857 = vadd.f32 0.0, %v2856
        %v2858 = vpop.f32.mrb[0].mxu0
        %2859 = vmatprep.mubr.f32.mxu0 0.0
        %2860 = vmatmul.mubr.f32.gmra.mrb[0].mxu0 %v2622
        %v2861 = vpop.f32.mrb[0].mxu0
        %v2862 = vadd.f32 0.0, %v2861
        %v2863 = vpop.f32.mrb[0].mxu0
        %2864 = vmatprep.mubr.f32.mxu0 0.0
        %2865 = vmatmul.mubr.f32.gmra.mrb[0].mxu0 %v2624
        %v2866 = vpop.f32.mrb[0].mxu0
        %v2867 = vadd.f32 0.0, %v2866
        %v2868 = vpop.f32.mrb[0].mxu0
        %2869 = vmatprep.mubr.f32.mxu0 0.0
        %2870 = vmatmul.mubr.f32.gmra.mrb[0].mxu0 %v2626
        %v2871 = vpop.f32.mrb[0].mxu0
        %v2872 = vadd.f32 0.0, %v2871
        %v2873 = vpop.f32.mrb[0].mxu0
        %2874 = vmatprep.mubr.f32.mxu0 0.0
        %2875 = vmatmul.mubr.f32.gmra.mrb[0].mxu0 %v2628
        %v2876 = vpop.f32.mrb[0].mxu0
        %v2877 = vadd.f32 0.0, %v2876
        %v2878 = vpop.f32.mrb[0].mxu0
        %2879 = vmatprep.mubr.f32.mxu0 0.0
        %2880 = vmatmul.mubr.f32.gmra.mrb[0].mxu0 %v2630
        %v2881 = vpop.f32.mrb[0].mxu0
        %v2882 = vadd.f32 0.0, %v2881
        %v2883 = vpop.f32.mrb[0].mxu0
        %2884 = vmatprep.mubr.f32.mxu0 0.0
        %2885 = vmatmul.mubr.f32.gmra.mrb[0].mxu0 %v2632
        %v2886 = vpop.f32.mrb[0].mxu0
        %v2887 = vadd.f32 0.0, %v2886
        %v2888 = vpop.f32.mrb[0].mxu0
        %2889 = vdwg.mxu0
        %v2890 = vadd.f32 %v2633, %v2812
        %v2891 = vadd.f32 %v2634, %v2817
        %v2892 = vadd.f32 %v2635, %v2822
        %v2893 = vadd.f32 %v2636, %v2827
        %v2894 = vadd.f32 %v2637, %v2832
        %v2895 = vadd.f32 %v2638, %v2837
        %v2896 = vadd.f32 %v2639, %v2842
        %v2897 = vadd.f32 %v2640, %v2847
        %v2898 = vadd.f32 %v2641, %v2852
        %v2899 = vadd.f32 %v2642, %v2857
        %v2900 = vadd.f32 %v2643, %v2862
        %v2901 = vadd.f32 %v2644, %v2867
        %v2902 = vadd.f32 %v2645, %v2872
        %v2903 = vadd.f32 %v2646, %v2877
        %v2904 = vadd.f32 %v2647, %v2882
        %v2905 = vadd.f32 %v2648, %v2887
        %v2906 = vrcp.pop %v2681
        %v2907 = vrcp.pop %v2682
        %v2908 = vrcp.pop %v2683
        %v2909 = vrcp.pop %v2684
        %v2910 = vrcp.pop %v2685
        %v2911 = vrcp.pop %v2686
        %v2912 = vrcp.pop %v2687
        %v2913 = vrcp.pop %v2688
        %v2914 = vrcp.pop %v2689
        %v2915 = vrcp.pop %v2690
        %v2916 = vrcp.pop %v2691
        %v2917 = vrcp.pop %v2692
        %v2918 = vrcp.pop %v2693
        %v2919 = vrcp.pop %v2694
        %v2920 = vrcp.pop %v2695
        %v2921 = vrcp.pop %v2696
        %v2922 = vmul.f32 %v2890, %v2906
        %v2923 = vmul.f32 %v2891, %v2907
        %v2924 = vmul.f32 %v2892, %v2908
        %v2925 = vmul.f32 %v2893, %v2909
        %v2926 = vmul.f32 %v2894, %v2910
        %v2927 = vmul.f32 %v2895, %v2911
        %v2928 = vmul.f32 %v2896, %v2912
        %v2929 = vmul.f32 %v2897, %v2913
        %v2930 = vmul.f32 %v2898, %v2914
        %v2931 = vmul.f32 %v2899, %v2915
        %v2932 = vmul.f32 %v2900, %v2916
        %v2933 = vmul.f32 %v2901, %v2917
        %v2934 = vmul.f32 %v2902, %v2918
        %v2935 = vmul.f32 %v2903, %v2919
        %v2936 = vmul.f32 %v2904, %v2920
        %v2937 = vmul.f32 %v2905, %v2921
        %2938 = vrot.lane.b32.xlu0 %v867, 32
        %v2939 = vpop.permute.xlu0 %2938
        %2940 = vrot.lane.b32.xlu0 %v868, 32
        %v2941 = vpop.permute.xlu0 %2940
        %2942 = vrot.lane.b32.xlu0 %v869, 32
        %v2943 = vpop.permute.xlu0 %2942
        %2944 = vrot.lane.b32.xlu0 %v870, 32
        %v2945 = vpop.permute.xlu0 %2944
        %2946 = vrot.lane.b32.xlu0 %v871, 32
        %v2947 = vpop.permute.xlu0 %2946
        %2948 = vrot.lane.b32.xlu0 %v872, 32
        %v2949 = vpop.permute.xlu0 %2948
        %2950 = vrot.lane.b32.xlu0 %v873, 32
        %v2951 = vpop.permute.xlu0 %2950
        %2952 = vrot.lane.b32.xlu0 %v874, 32
        %v2953 = vpop.permute.xlu0 %2952
        %2954 = vrot.lane.b32.xlu0 %v875, 32
        %v2955 = vpop.permute.xlu0 %2954
        %2956 = vrot.lane.b32.xlu0 %v876, 32
        %v2957 = vpop.permute.xlu0 %2956
        %2958 = vrot.lane.b32.xlu0 %v877, 32
        %v2959 = vpop.permute.xlu0 %2958
        %2960 = vrot.lane.b32.xlu0 %v878, 32
        %v2961 = vpop.permute.xlu0 %2960
        %2962 = vrot.lane.b32.xlu0 %v879, 32
        %v2963 = vpop.permute.xlu0 %2962
        %2964 = vrot.lane.b32.xlu0 %v880, 32
        %v2965 = vpop.permute.xlu0 %2964
        %2966 = vrot.lane.b32.xlu0 %v881, 32
        %v2967 = vpop.permute.xlu0 %2966
        %2968 = vrot.lane.b32.xlu0 %v882, 32
        %v2969 = vpop.permute.xlu0 %2968
        %2970 = vrot.lane.b32.xlu0 %v630, 32
        %v2971 = vpop.permute.xlu0 %2970
        %2972 = vrot.lane.b32.xlu0 %v636, 32
        %v2973 = vpop.permute.xlu0 %2972
        %2974 = vrot.lane.b32.xlu0 %v642, 32
        %v2975 = vpop.permute.xlu0 %2974
        %2976 = vrot.lane.b32.xlu0 %v648, 32
        %v2977 = vpop.permute.xlu0 %2976
        %2978 = vrot.lane.b32.xlu0 %v654, 32
        %v2979 = vpop.permute.xlu0 %2978
        %2980 = vrot.lane.b32.xlu0 %v660, 32
        %v2981 = vpop.permute.xlu0 %2980
        %2982 = vrot.lane.b32.xlu0 %v666, 32
        %v2983 = vpop.permute.xlu0 %2982
        %2984 = vrot.lane.b32.xlu0 %v672, 32
        %v2985 = vpop.permute.xlu0 %2984
        %2986 = vrot.lane.b32.xlu0 %v678, 32
        %v2987 = vpop.permute.xlu0 %2986
        %2988 = vrot.lane.b32.xlu0 %v684, 32
        %v2989 = vpop.permute.xlu0 %2988
        %2990 = vrot.lane.b32.xlu0 %v690, 32
        %v2991 = vpop.permute.xlu0 %2990
        %2992 = vrot.lane.b32.xlu0 %v696, 32
        %v2993 = vpop.permute.xlu0 %2992
        %2994 = vrot.lane.b32.xlu0 %v702, 32
        %v2995 = vpop.permute.xlu0 %2994
        %2996 = vrot.lane.b32.xlu0 %v708, 32
        %v2997 = vpop.permute.xlu0 %2996
        %2998 = vrot.lane.b32.xlu0 %v714, 32
        %v2999 = vpop.permute.xlu0 %2998
        %3000 = vrot.lane.b32.xlu0 %v720, 32
        %v3001 = vpop.permute.xlu0 %3000
        %v3002 = vsel %vm883, %v2939, 0
        %v3004 = vsel %vm883, %v2941, 0
        %v3006 = vsel %vm883, %v2943, 0
        %v3008 = vsel %vm883, %v2945, 0
        %v3010 = vsel %vm883, %v2947, 0
        %v3012 = vsel %vm883, %v2949, 0
        %v3014 = vsel %vm883, %v2951, 0
        %v3016 = vsel %vm883, %v2953, 0
        %v3018 = vsel %vm883, %v2955, 0
        %v3020 = vsel %vm883, %v2957, 0
        %v3022 = vsel %vm883, %v2959, 0
        %v3024 = vsel %vm883, %v2961, 0
        %v3026 = vsel %vm883, %v2963, 0
        %v3028 = vsel %vm883, %v2965, 0
        %v3030 = vsel %vm883, %v2967, 0
        %v3032 = vsel %vm883, %v2969, 0
        %v3034 = vsel %vm883, %v2971, 0
        %v3036 = vsel %vm883, %v2973, 0
        %v3038 = vsel %vm883, %v2975, 0
        %v3040 = vsel %vm883, %v2977, 0
        %v3042 = vsel %vm883, %v2979, 0
        %v3044 = vsel %vm883, %v2981, 0
        %v3046 = vsel %vm883, %v2983, 0
        %v3048 = vsel %vm883, %v2985, 0
        %v3050 = vsel %vm883, %v2987, 0
        %v3052 = vsel %vm883, %v2989, 0
        %v3054 = vsel %vm883, %v2991, 0
        %v3056 = vsel %vm883, %v2993, 0
        %v3058 = vsel %vm883, %v2995, 0
        %v3060 = vsel %vm883, %v2997, 0
        %v3062 = vsel %vm883, %v2999, 0
        %v3064 = vsel %vm883, %v3001, 0
        %3066 = vmatprep.subr.mxu0 0.0
        %3067 = vmatpush1.xpose.msra.mxu0 %v3034
        %3068 = vmatprep.subr.mxu0 0.0
        %3069 = vmatpush1.xpose.msra.mxu0 %v3036
        %3070 = vmatprep.subr.mxu0 0.0
        %3071 = vmatpush1.xpose.msra.mxu0 %v3038
        %3072 = vmatprep.subr.mxu0 0.0
        %3073 = vmatpush1.xpose.msra.mxu0 %v3040
        %3074 = vmatprep.subr.mxu0 0.0
        %3075 = vmatpush1.xpose.msra.mxu0 %v3042
        %3076 = vmatprep.subr.mxu0 0.0
        %3077 = vmatpush1.xpose.msra.mxu0 %v3044
        %3078 = vmatprep.subr.mxu0 0.0
        %3079 = vmatpush1.xpose.msra.mxu0 %v3046
        %3080 = vmatprep.subr.mxu0 0.0
        %3081 = vmatpush1.xpose.msra.mxu0 %v3048
        %3082 = vmatprep.subr.mxu0 0.0
        %3083 = vmatpush1.xpose.msra.mxu0 %v3050
        %3084 = vmatprep.subr.mxu0 0.0
        %3085 = vmatpush1.xpose.msra.mxu0 %v3052
        %3086 = vmatprep.subr.mxu0 0.0
        %3087 = vmatpush1.xpose.msra.mxu0 %v3054
        %3088 = vmatprep.subr.mxu0 0.0
        %3089 = vmatpush1.xpose.msra.mxu0 %v3056
        %3090 = vmatprep.subr.mxu0 0.0
        %3091 = vmatpush1.xpose.msra.mxu0 %v3058
        %3092 = vmatprep.subr.mxu0 0.0
        %3093 = vmatpush1.xpose.msra.mxu0 %v3060
        %3094 = vmatprep.subr.mxu0 0.0
        %3095 = vmatpush1.xpose.msra.mxu0 %v3062
        %3096 = vmatprep.subr.mxu0 0.0
        %3097 = vmatpush1.xpose.msra.mxu0 %v3064
        %3098 = vmatprep.subr.mxu0 0.0
        %3099 = vmatpush1.xpose.msra.mxu0 0.0
        %3100 = vmatprep.subr.mxu0 0.0
        %3101 = vmatpush1.xpose.msra.mxu0 0.0
        %3102 = vmatprep.subr.mxu0 0.0
        %3103 = vmatpush1.xpose.msra.mxu0 0.0
        %3104 = vmatprep.subr.mxu0 0.0
        %3105 = vmatpush1.xpose.msra.mxu0 0.0
        %3106 = vmatprep.subr.mxu0 0.0
        %3107 = vmatpush1.xpose.msra.mxu0 0.0
        %3108 = vmatprep.subr.mxu0 0.0
        %3109 = vmatpush1.xpose.msra.mxu0 0.0
        %3110 = vmatprep.subr.mxu0 0.0
        %3111 = vmatpush1.xpose.msra.mxu0 0.0
        %3112 = vmatprep.subr.mxu0 0.0
        %3113 = vmatpush1.xpose.msra.mxu0 0.0
        %3114 = vmatprep.subr.mxu0 0.0
        %3115 = vmatpush1.xpose.msra.mxu0 0.0
        %3116 = vmatprep.subr.mxu0 0.0
        %3117 = vmatpush1.xpose.msra.mxu0 0.0
        %3118 = vmatprep.subr.mxu0 0.0
        %3119 = vmatpush1.xpose.msra.mxu0 0.0
        %3120 = vmatprep.subr.mxu0 0.0
        %3121 = vmatpush1.xpose.msra.mxu0 0.0
        %3122 = vmatprep.subr.mxu0 0.0
        %3123 = vmatpush1.xpose.msra.mxu0 0.0
        %3124 = vmatprep.subr.mxu0 0.0
        %3125 = vmatpush1.xpose.msra.mxu0 0.0
        %3126 = vmatprep.subr.mxu0 0.0
        %3127 = vmatpush1.xpose.msra.mxu0 0.0
        %3128 = vmatprep.subr.mxu0 0.0
        %3129 = vmatpush1.xpose.msra.mxu0 0.0
        %3130 = vmatprep.mubr.f32.mxu0 0.0
        %3131 = vmatmul.mubr.f32.gmra.mrb[0].mxu0 %v3002
        %v3132 = vpop.f32.mrb[0].mxu0
        %v3133 = vadd.f32 0.0, %v3132
        %v3134 = vpop.f32.mrb[0].mxu0
        %3135 = vmatprep.mubr.f32.mxu0 0.0
        %3136 = vmatmul.mubr.f32.gmra.mrb[0].mxu0 %v3004
        %v3137 = vpop.f32.mrb[0].mxu0
        %v3138 = vadd.f32 0.0, %v3137
        %v3139 = vpop.f32.mrb[0].mxu0
        %3140 = vmatprep.mubr.f32.mxu0 0.0
        %3141 = vmatmul.mubr.f32.gmra.mrb[0].mxu0 %v3006
        %v3142 = vpop.f32.mrb[0].mxu0
        %v3143 = vadd.f32 0.0, %v3142
        %v3144 = vpop.f32.mrb[0].mxu0
        %3145 = vmatprep.mubr.f32.mxu0 0.0
        %3146 = vmatmul.mubr.f32.gmra.mrb[0].mxu0 %v3008
        %v3147 = vpop.f32.mrb[0].mxu0
        %v3148 = vadd.f32 0.0, %v3147
        %v3149 = vpop.f32.mrb[0].mxu0
        %3150 = vmatprep.mubr.f32.mxu0 0.0
        %3151 = vmatmul.mubr.f32.gmra.mrb[0].mxu0 %v3010
        %v3152 = vpop.f32.mrb[0].mxu0
        %v3153 = vadd.f32 0.0, %v3152
        %v3154 = vpop.f32.mrb[0].mxu0
        %3155 = vmatprep.mubr.f32.mxu0 0.0
        %3156 = vmatmul.mubr.f32.gmra.mrb[0].mxu0 %v3012
        %v3157 = vpop.f32.mrb[0].mxu0
        %v3158 = vadd.f32 0.0, %v3157
        %v3159 = vpop.f32.mrb[0].mxu0
        %3160 = vmatprep.mubr.f32.mxu0 0.0
        %3161 = vmatmul.mubr.f32.gmra.mrb[0].mxu0 %v3014
        %v3162 = vpop.f32.mrb[0].mxu0
        %v3163 = vadd.f32 0.0, %v3162
        %v3164 = vpop.f32.mrb[0].mxu0
        %3165 = vmatprep.mubr.f32.mxu0 0.0
        %3166 = vmatmul.mubr.f32.gmra.mrb[0].mxu0 %v3016
        %v3167 = vpop.f32.mrb[0].mxu0
        %v3168 = vadd.f32 0.0, %v3167
        %v3169 = vpop.f32.mrb[0].mxu0
        %3170 = vmatprep.mubr.f32.mxu0 0.0
        %3171 = vmatmul.mubr.f32.gmra.mrb[0].mxu0 %v3018
        %v3172 = vpop.f32.mrb[0].mxu0
        %v3173 = vadd.f32 0.0, %v3172
        %v3174 = vpop.f32.mrb[0].mxu0
        %3175 = vmatprep.mubr.f32.mxu0 0.0
        %3176 = vmatmul.mubr.f32.gmra.mrb[0].mxu0 %v3020
        %v3177 = vpop.f32.mrb[0].mxu0
        %v3178 = vadd.f32 0.0, %v3177
        %v3179 = vpop.f32.mrb[0].mxu0
        %3180 = vmatprep.mubr.f32.mxu0 0.0
        %3181 = vmatmul.mubr.f32.gmra.mrb[0].mxu0 %v3022
        %v3182 = vpop.f32.mrb[0].mxu0
        %v3183 = vadd.f32 0.0, %v3182
        %v3184 = vpop.f32.mrb[0].mxu0
        %3185 = vmatprep.mubr.f32.mxu0 0.0
        %3186 = vmatmul.mubr.f32.gmra.mrb[0].mxu0 %v3024
        %v3187 = vpop.f32.mrb[0].mxu0
        %v3188 = vadd.f32 0.0, %v3187
        %v3189 = vpop.f32.mrb[0].mxu0
        %3190 = vmatprep.mubr.f32.mxu0 0.0
        %3191 = vmatmul.mubr.f32.gmra.mrb[0].mxu0 %v3026
        %v3192 = vpop.f32.mrb[0].mxu0
        %v3193 = vadd.f32 0.0, %v3192
        %v3194 = vpop.f32.mrb[0].mxu0
        %3195 = vmatprep.mubr.f32.mxu0 0.0
        %3196 = vmatmul.mubr.f32.gmra.mrb[0].mxu0 %v3028
        %v3197 = vpop.f32.mrb[0].mxu0
        %v3198 = vadd.f32 0.0, %v3197
        %v3199 = vpop.f32.mrb[0].mxu0
        %3200 = vmatprep.mubr.f32.mxu0 0.0
        %3201 = vmatmul.mubr.f32.gmra.mrb[0].mxu0 %v3030
        %v3202 = vpop.f32.mrb[0].mxu0
        %v3203 = vadd.f32 0.0, %v3202
        %v3204 = vpop.f32.mrb[0].mxu0
        %3205 = vmatprep.mubr.f32.mxu0 0.0
        %3206 = vmatmul.mubr.f32.gmra.mrb[0].mxu0 %v3032
        %v3207 = vpop.f32.mrb[0].mxu0
        %v3208 = vadd.f32 0.0, %v3207
        %v3209 = vpop.f32.mrb[0].mxu0
        %3210 = vdwg.mxu0
        %3211 = vmax.xlane.f32.xlu0 %v3133
        %v3212 = vpop.xlane.xlu0 %3211
        %3213 = vmax.xlane.f32.xlu0 %v3138
        %v3214 = vpop.xlane.xlu0 %3213
        %3215 = vmax.xlane.f32.xlu0 %v3143
        %v3216 = vpop.xlane.xlu0 %3215
        %3217 = vmax.xlane.f32.xlu0 %v3148
        %v3218 = vpop.xlane.xlu0 %3217
        %3219 = vmax.xlane.f32.xlu0 %v3153
        %v3220 = vpop.xlane.xlu0 %3219
        %3221 = vmax.xlane.f32.xlu0 %v3158
        %v3222 = vpop.xlane.xlu0 %3221
        %3223 = vmax.xlane.f32.xlu0 %v3163
        %v3224 = vpop.xlane.xlu0 %3223
        %3225 = vmax.xlane.f32.xlu0 %v3168
        %v3226 = vpop.xlane.xlu0 %3225
        %3227 = vmax.xlane.f32.xlu0 %v3173
        %v3228 = vpop.xlane.xlu0 %3227
        %3229 = vmax.xlane.f32.xlu0 %v3178
        %v3230 = vpop.xlane.xlu0 %3229
        %3231 = vmax.xlane.f32.xlu0 %v3183
        %v3232 = vpop.xlane.xlu0 %3231
        %3233 = vmax.xlane.f32.xlu0 %v3188
        %v3234 = vpop.xlane.xlu0 %3233
        %3235 = vmax.xlane.f32.xlu0 %v3193
        %v3236 = vpop.xlane.xlu0 %3235
        %3237 = vmax.xlane.f32.xlu0 %v3198
        %v3238 = vpop.xlane.xlu0 %3237
        %3239 = vmax.xlane.f32.xlu0 %v3203
        %v3240 = vpop.xlane.xlu0 %3239
        %3241 = vmax.xlane.f32.xlu0 %v3208
        %v3242 = vpop.xlane.xlu0 %3241
        %v3243 = vsub.f32 -inf, %v3212
        %v3244 = vsub.f32 -inf, %v3214
        %v3245 = vsub.f32 -inf, %v3216
        %v3246 = vsub.f32 -inf, %v3218
        %v3247 = vsub.f32 -inf, %v3220
        %v3248 = vsub.f32 -inf, %v3222
        %v3249 = vsub.f32 -inf, %v3224
        %v3250 = vsub.f32 -inf, %v3226
        %v3251 = vsub.f32 -inf, %v3228
        %v3252 = vsub.f32 -inf, %v3230
        %v3253 = vsub.f32 -inf, %v3232
        %v3254 = vsub.f32 -inf, %v3234
        %v3255 = vsub.f32 -inf, %v3236
        %v3256 = vsub.f32 -inf, %v3238
        %v3257 = vsub.f32 -inf, %v3240
        %v3258 = vsub.f32 -inf, %v3242
        %v3259 = vmul.f32 %v3243, 1.442695
        %v3260 = vpow.pop %v3259
        %v3261 = vmul.f32 %v3244, 1.442695
        %v3262 = vpow.pop %v3261
        %v3263 = vmul.f32 %v3245, 1.442695
        %v3264 = vpow.pop %v3263
        %v3265 = vmul.f32 %v3246, 1.442695
        %v3266 = vpow.pop %v3265
        %v3267 = vmul.f32 %v3247, 1.442695
        %v3268 = vpow.pop %v3267
        %v3269 = vmul.f32 %v3248, 1.442695
        %v3270 = vpow.pop %v3269
        %v3271 = vmul.f32 %v3249, 1.442695
        %v3272 = vpow.pop %v3271
        %v3273 = vmul.f32 %v3250, 1.442695
        %v3274 = vpow.pop %v3273
        %v3275 = vmul.f32 %v3251, 1.442695
        %v3276 = vpow.pop %v3275
        %v3277 = vmul.f32 %v3252, 1.442695
        %v3278 = vpow.pop %v3277
        %v3279 = vmul.f32 %v3253, 1.442695
        %v3280 = vpow.pop %v3279
        %v3281 = vmul.f32 %v3254, 1.442695
        %v3282 = vpow.pop %v3281
        %v3283 = vmul.f32 %v3255, 1.442695
        %v3284 = vpow.pop %v3283
        %v3285 = vmul.f32 %v3256, 1.442695
        %v3286 = vpow.pop %v3285
        %v3287 = vmul.f32 %v3257, 1.442695
        %v3288 = vpow.pop %v3287
        %v3289 = vmul.f32 %v3258, 1.442695
        %v3290 = vpow.pop %v3289
        %v3291 = vsub.f32 %v3133, %v3212
        %v3292 = vsub.f32 %v3138, %v3214
        %v3293 = vsub.f32 %v3143, %v3216
        %v3294 = vsub.f32 %v3148, %v3218
        %v3295 = vsub.f32 %v3153, %v3220
        %v3296 = vsub.f32 %v3158, %v3222
        %v3297 = vsub.f32 %v3163, %v3224
        %v3298 = vsub.f32 %v3168, %v3226
        %v3299 = vsub.f32 %v3173, %v3228
        %v3300 = vsub.f32 %v3178, %v3230
        %v3301 = vsub.f32 %v3183, %v3232
        %v3302 = vsub.f32 %v3188, %v3234
        %v3303 = vsub.f32 %v3193, %v3236
        %v3304 = vsub.f32 %v3198, %v3238
        %v3305 = vsub.f32 %v3203, %v3240
        %v3306 = vsub.f32 %v3208, %v3242
        %v3307 = vmul.f32 %v3291, 1.442695
        %v3308 = vpow.pop %v3307
        %v3309 = vmul.f32 %v3292, 1.442695
        %v3310 = vpow.pop %v3309
        %v3311 = vmul.f32 %v3293, 1.442695
        %v3312 = vpow.pop %v3311
        %v3313 = vmul.f32 %v3294, 1.442695
        %v3314 = vpow.pop %v3313
        %v3315 = vmul.f32 %v3295, 1.442695
        %v3316 = vpow.pop %v3315
        %v3317 = vmul.f32 %v3296, 1.442695
        %v3318 = vpow.pop %v3317
        %v3319 = vmul.f32 %v3297, 1.442695
        %v3320 = vpow.pop %v3319
        %v3321 = vmul.f32 %v3298, 1.442695
        %v3322 = vpow.pop %v3321
        %v3323 = vmul.f32 %v3299, 1.442695
        %v3324 = vpow.pop %v3323
        %v3325 = vmul.f32 %v3300, 1.442695
        %v3326 = vpow.pop %v3325
        %v3327 = vmul.f32 %v3301, 1.442695
        %v3328 = vpow.pop %v3327
        %v3329 = vmul.f32 %v3302, 1.442695
        %v3330 = vpow.pop %v3329
        %v3331 = vmul.f32 %v3303, 1.442695
        %v3332 = vpow.pop %v3331
        %v3333 = vmul.f32 %v3304, 1.442695
        %v3334 = vpow.pop %v3333
        %v3335 = vmul.f32 %v3305, 1.442695
        %v3336 = vpow.pop %v3335
        %v3337 = vmul.f32 %v3306, 1.442695
        %v3338 = vpow.pop %v3337
        %v3339 = vmul.f32 %v3260, 0.0
        %v3340 = vmul.f32 %v3262, 0.0
        %v3341 = vmul.f32 %v3264, 0.0
        %v3342 = vmul.f32 %v3266, 0.0
        %v3343 = vmul.f32 %v3268, 0.0
        %v3344 = vmul.f32 %v3270, 0.0
        %v3345 = vmul.f32 %v3272, 0.0
        %v3346 = vmul.f32 %v3274, 0.0
        %v3347 = vmul.f32 %v3276, 0.0
        %v3348 = vmul.f32 %v3278, 0.0
        %v3349 = vmul.f32 %v3280, 0.0
        %v3350 = vmul.f32 %v3282, 0.0
        %v3351 = vmul.f32 %v3284, 0.0
        %v3352 = vmul.f32 %v3286, 0.0
        %v3353 = vmul.f32 %v3288, 0.0
        %v3354 = vmul.f32 %v3290, 0.0
        %3355 = vadd.xlane.f32.xlu0 %v3308
        %v3356 = vpop.xlane.xlu0 %3355
        %3357 = vadd.xlane.f32.xlu0 %v3310
        %v3358 = vpop.xlane.xlu0 %3357
        %3359 = vadd.xlane.f32.xlu0 %v3312
        %v3360 = vpop.xlane.xlu0 %3359
        %3361 = vadd.xlane.f32.xlu0 %v3314
        %v3362 = vpop.xlane.xlu0 %3361
        %3363 = vadd.xlane.f32.xlu0 %v3316
        %v3364 = vpop.xlane.xlu0 %3363
        %3365 = vadd.xlane.f32.xlu0 %v3318
        %v3366 = vpop.xlane.xlu0 %3365
        %3367 = vadd.xlane.f32.xlu0 %v3320
        %v3368 = vpop.xlane.xlu0 %3367
        %3369 = vadd.xlane.f32.xlu0 %v3322
        %v3370 = vpop.xlane.xlu0 %3369
        %3371 = vadd.xlane.f32.xlu0 %v3324
        %v3372 = vpop.xlane.xlu0 %3371
        %3373 = vadd.xlane.f32.xlu0 %v3326
        %v3374 = vpop.xlane.xlu0 %3373
        %3375 = vadd.xlane.f32.xlu0 %v3328
        %v3376 = vpop.xlane.xlu0 %3375
        %3377 = vadd.xlane.f32.xlu0 %v3330
        %v3378 = vpop.xlane.xlu0 %3377
        %3379 = vadd.xlane.f32.xlu0 %v3332
        %v3380 = vpop.xlane.xlu0 %3379
        %3381 = vadd.xlane.f32.xlu0 %v3334
        %v3382 = vpop.xlane.xlu0 %3381
        %3383 = vadd.xlane.f32.xlu0 %v3336
        %v3384 = vpop.xlane.xlu0 %3383
        %3385 = vadd.xlane.f32.xlu0 %v3338
        %v3386 = vpop.xlane.xlu0 %3385
        %v3387 = vadd.f32 %v3339, %v3356
        %v3388 = vadd.f32 %v3340, %v3358
        %v3389 = vadd.f32 %v3341, %v3360
        %v3390 = vadd.f32 %v3342, %v3362
        %v3391 = vadd.f32 %v3343, %v3364
        %v3392 = vadd.f32 %v3344, %v3366
        %v3393 = vadd.f32 %v3345, %v3368
        %v3394 = vadd.f32 %v3346, %v3370
        %v3395 = vadd.f32 %v3347, %v3372
        %v3396 = vadd.f32 %v3348, %v3374
        %v3397 = vadd.f32 %v3349, %v3376
        %v3398 = vadd.f32 %v3350, %v3378
        %v3399 = vadd.f32 %v3351, %v3380
        %v3400 = vadd.f32 %v3352, %v3382
        %v3401 = vadd.f32 %v3353, %v3384
        %v3402 = vadd.f32 %v3354, %v3386
        %3403 = vrot.lane.b32.xlu0 %v789, 32
        %v3404 = vpop.permute.xlu0 %3403
        %3405 = vrot.lane.b32.xlu0 %v794, 32
        %v3406 = vpop.permute.xlu0 %3405
        %3407 = vrot.lane.b32.xlu0 %v799, 32
        %v3408 = vpop.permute.xlu0 %3407
        %3409 = vrot.lane.b32.xlu0 %v804, 32
        %v3410 = vpop.permute.xlu0 %3409
        %3411 = vrot.lane.b32.xlu0 %v809, 32
        %v3412 = vpop.permute.xlu0 %3411
        %3413 = vrot.lane.b32.xlu0 %v814, 32
        %v3414 = vpop.permute.xlu0 %3413
        %3415 = vrot.lane.b32.xlu0 %v819, 32
        %v3416 = vpop.permute.xlu0 %3415
        %3417 = vrot.lane.b32.xlu0 %v824, 32
        %v3418 = vpop.permute.xlu0 %3417
        %3419 = vrot.lane.b32.xlu0 %v829, 32
        %v3420 = vpop.permute.xlu0 %3419
        %3421 = vrot.lane.b32.xlu0 %v834, 32
        %v3422 = vpop.permute.xlu0 %3421
        %3423 = vrot.lane.b32.xlu0 %v839, 32
        %v3424 = vpop.permute.xlu0 %3423
        %3425 = vrot.lane.b32.xlu0 %v844, 32
        %v3426 = vpop.permute.xlu0 %3425
        %3427 = vrot.lane.b32.xlu0 %v849, 32
        %v3428 = vpop.permute.xlu0 %3427
        %3429 = vrot.lane.b32.xlu0 %v854, 32
        %v3430 = vpop.permute.xlu0 %3429
        %3431 = vrot.lane.b32.xlu0 %v859, 32
        %v3432 = vpop.permute.xlu0 %3431
        %3433 = vrot.lane.b32.xlu0 %v864, 32
        %v3434 = vpop.permute.xlu0 %3433
        %3451 = vmatprep.subr.mxu0 0.0
        %3452 = vmatpush1.msra.mxu0 %v3404
        %3453 = vmatprep.subr.mxu0 0.0
        %3454 = vmatpush1.msra.mxu0 %v3406
        %3455 = vmatprep.subr.mxu0 0.0
        %3456 = vmatpush1.msra.mxu0 %v3408
        %3457 = vmatprep.subr.mxu0 0.0
        %3458 = vmatpush1.msra.mxu0 %v3410
        %3459 = vmatprep.subr.mxu0 0.0
        %3460 = vmatpush1.msra.mxu0 %v3412
        %3461 = vmatprep.subr.mxu0 0.0
        %3462 = vmatpush1.msra.mxu0 %v3414
        %3463 = vmatprep.subr.mxu0 0.0
        %3464 = vmatpush1.msra.mxu0 %v3416
        %3465 = vmatprep.subr.mxu0 0.0
        %3466 = vmatpush1.msra.mxu0 %v3418
        %3467 = vmatprep.subr.mxu0 0.0
        %3468 = vmatpush1.msra.mxu0 %v3420
        %3469 = vmatprep.subr.mxu0 0.0
        %3470 = vmatpush1.msra.mxu0 %v3422
        %3471 = vmatprep.subr.mxu0 0.0
        %3472 = vmatpush1.msra.mxu0 %v3424
        %3473 = vmatprep.subr.mxu0 0.0
        %3474 = vmatpush1.msra.mxu0 %v3426
        %3475 = vmatprep.subr.mxu0 0.0
        %3476 = vmatpush1.msra.mxu0 %v3428
        %3477 = vmatprep.subr.mxu0 0.0
        %3478 = vmatpush1.msra.mxu0 %v3430
        %3479 = vmatprep.subr.mxu0 0.0
        %3480 = vmatpush1.msra.mxu0 %v3432
        %3481 = vmatprep.subr.mxu0 0.0
        %3482 = vmatpush1.msra.mxu0 %v3434
        %3483 = vmatprep.subr.mxu0 0.0
        %3484 = vmatpush1.msra.mxu0 0.0
        %3485 = vmatprep.subr.mxu0 0.0
        %3486 = vmatpush1.msra.mxu0 0.0
        %3487 = vmatprep.subr.mxu0 0.0
        %3488 = vmatpush1.msra.mxu0 0.0
        %3489 = vmatprep.subr.mxu0 0.0
        %3490 = vmatpush1.msra.mxu0 0.0
        %3491 = vmatprep.subr.mxu0 0.0
        %3492 = vmatpush1.msra.mxu0 0.0
        %3493 = vmatprep.subr.mxu0 0.0
        %3494 = vmatpush1.msra.mxu0 0.0
        %3495 = vmatprep.subr.mxu0 0.0
        %3496 = vmatpush1.msra.mxu0 0.0
        %3497 = vmatprep.subr.mxu0 0.0
        %3498 = vmatpush1.msra.mxu0 0.0
        %3499 = vmatprep.subr.mxu0 0.0
        %3500 = vmatpush1.msra.mxu0 0.0
        %3501 = vmatprep.subr.mxu0 0.0
        %3502 = vmatpush1.msra.mxu0 0.0
        %3503 = vmatprep.subr.mxu0 0.0
        %3504 = vmatpush1.msra.mxu0 0.0
        %3505 = vmatprep.subr.mxu0 0.0
        %3506 = vmatpush1.msra.mxu0 0.0
        %3507 = vmatprep.subr.mxu0 0.0
        %3508 = vmatpush1.msra.mxu0 0.0
        %3509 = vmatprep.subr.mxu0 0.0
        %3510 = vmatpush1.msra.mxu0 0.0
        %3511 = vmatprep.subr.mxu0 0.0
        %3512 = vmatpush1.msra.mxu0 0.0
        %3513 = vmatprep.subr.mxu0 0.0
        %3514 = vmatpush1.msra.mxu0 0.0
        %3515 = vmatprep.mubr.f32.mxu0 0.0
        %3516 = vmatmul.mubr.f32.gmra.mrb[0].mxu0 %v3308
        %v3517 = vpop.f32.mrb[0].mxu0
        %v3518 = vadd.f32 0.0, %v3517
        %v3519 = vpop.f32.mrb[0].mxu0
        %3520 = vmatprep.mubr.f32.mxu0 0.0
        %3521 = vmatmul.mubr.f32.gmra.mrb[0].mxu0 %v3310
        %v3522 = vpop.f32.mrb[0].mxu0
        %v3523 = vadd.f32 0.0, %v3522
        %v3524 = vpop.f32.mrb[0].mxu0
        %3525 = vmatprep.mubr.f32.mxu0 0.0
        %3526 = vmatmul.mubr.f32.gmra.mrb[0].mxu0 %v3312
        %v3527 = vpop.f32.mrb[0].mxu0
        %v3528 = vadd.f32 0.0, %v3527
        %v3529 = vpop.f32.mrb[0].mxu0
        %3530 = vmatprep.mubr.f32.mxu0 0.0
        %3531 = vmatmul.mubr.f32.gmra.mrb[0].mxu0 %v3314
        %v3532 = vpop.f32.mrb[0].mxu0
        %v3533 = vadd.f32 0.0, %v3532
        %v3534 = vpop.f32.mrb[0].mxu0
        %3535 = vmatprep.mubr.f32.mxu0 0.0
        %3536 = vmatmul.mubr.f32.gmra.mrb[0].mxu0 %v3316
        %v3537 = vpop.f32.mrb[0].mxu0
        %v3538 = vadd.f32 0.0, %v3537
        %v3539 = vpop.f32.mrb[0].mxu0
        %3540 = vmatprep.mubr.f32.mxu0 0.0
        %3541 = vmatmul.mubr.f32.gmra.mrb[0].mxu0 %v3318
        %v3542 = vpop.f32.mrb[0].mxu0
        %v3543 = vadd.f32 0.0, %v3542
        %v3544 = vpop.f32.mrb[0].mxu0
        %3545 = vmatprep.mubr.f32.mxu0 0.0
        %3546 = vmatmul.mubr.f32.gmra.mrb[0].mxu0 %v3320
        %v3547 = vpop.f32.mrb[0].mxu0
        %v3548 = vadd.f32 0.0, %v3547
        %v3549 = vpop.f32.mrb[0].mxu0
        %3550 = vmatprep.mubr.f32.mxu0 0.0
        %3551 = vmatmul.mubr.f32.gmra.mrb[0].mxu0 %v3322
        %v3552 = vpop.f32.mrb[0].mxu0
        %v3553 = vadd.f32 0.0, %v3552
        %v3554 = vpop.f32.mrb[0].mxu0
        %3555 = vmatprep.mubr.f32.mxu0 0.0
        %3556 = vmatmul.mubr.f32.gmra.mrb[0].mxu0 %v3324
        %v3557 = vpop.f32.mrb[0].mxu0
        %v3558 = vadd.f32 0.0, %v3557
        %v3559 = vpop.f32.mrb[0].mxu0
        %3560 = vmatprep.mubr.f32.mxu0 0.0
        %3561 = vmatmul.mubr.f32.gmra.mrb[0].mxu0 %v3326
        %v3562 = vpop.f32.mrb[0].mxu0
        %v3563 = vadd.f32 0.0, %v3562
        %v3564 = vpop.f32.mrb[0].mxu0
        %3565 = vmatprep.mubr.f32.mxu0 0.0
        %3566 = vmatmul.mubr.f32.gmra.mrb[0].mxu0 %v3328
        %v3567 = vpop.f32.mrb[0].mxu0
        %v3568 = vadd.f32 0.0, %v3567
        %v3569 = vpop.f32.mrb[0].mxu0
        %3570 = vmatprep.mubr.f32.mxu0 0.0
        %3571 = vmatmul.mubr.f32.gmra.mrb[0].mxu0 %v3330
        %v3572 = vpop.f32.mrb[0].mxu0
        %v3573 = vadd.f32 0.0, %v3572
        %v3574 = vpop.f32.mrb[0].mxu0
        %3575 = vmatprep.mubr.f32.mxu0 0.0
        %3576 = vmatmul.mubr.f32.gmra.mrb[0].mxu0 %v3332
        %v3577 = vpop.f32.mrb[0].mxu0
        %v3578 = vadd.f32 0.0, %v3577
        %v3579 = vpop.f32.mrb[0].mxu0
        %3580 = vmatprep.mubr.f32.mxu0 0.0
        %3581 = vmatmul.mubr.f32.gmra.mrb[0].mxu0 %v3334
        %v3582 = vpop.f32.mrb[0].mxu0
        %v3583 = vadd.f32 0.0, %v3582
        %v3584 = vpop.f32.mrb[0].mxu0
        %3585 = vmatprep.mubr.f32.mxu0 0.0
        %3586 = vmatmul.mubr.f32.gmra.mrb[0].mxu0 %v3336
        %v3587 = vpop.f32.mrb[0].mxu0
        %v3588 = vadd.f32 0.0, %v3587
        %v3589 = vpop.f32.mrb[0].mxu0
        %3590 = vmatprep.mubr.f32.mxu0 0.0
        %3591 = vmatmul.mubr.f32.gmra.mrb[0].mxu0 %v3338
        %v3592 = vpop.f32.mrb[0].mxu0
        %v3593 = vadd.f32 0.0, %v3592
        %v3594 = vpop.f32.mrb[0].mxu0
        %3595 = vdwg.mxu0
        %v3596 = vadd.f32 %v3339, %v3518
        %v3597 = vadd.f32 %v3340, %v3523
        %v3598 = vadd.f32 %v3341, %v3528
        %v3599 = vadd.f32 %v3342, %v3533
        %v3600 = vadd.f32 %v3343, %v3538
        %v3601 = vadd.f32 %v3344, %v3543
        %v3602 = vadd.f32 %v3345, %v3548
        %v3603 = vadd.f32 %v3346, %v3553
        %v3604 = vadd.f32 %v3347, %v3558
        %v3605 = vadd.f32 %v3348, %v3563
        %v3606 = vadd.f32 %v3349, %v3568
        %v3607 = vadd.f32 %v3350, %v3573
        %v3608 = vadd.f32 %v3351, %v3578
        %v3609 = vadd.f32 %v3352, %v3583
        %v3610 = vadd.f32 %v3353, %v3588
        %v3611 = vadd.f32 %v3354, %v3593
        %v3612 = vrcp.pop %v3387
        %v3613 = vrcp.pop %v3388
        %v3614 = vrcp.pop %v3389
        %v3615 = vrcp.pop %v3390
        %v3616 = vrcp.pop %v3391
        %v3617 = vrcp.pop %v3392
        %v3618 = vrcp.pop %v3393
        %v3619 = vrcp.pop %v3394
        %v3620 = vrcp.pop %v3395
        %v3621 = vrcp.pop %v3396
        %v3622 = vrcp.pop %v3397
        %v3623 = vrcp.pop %v3398
        %v3624 = vrcp.pop %v3399
        %v3625 = vrcp.pop %v3400
        %v3626 = vrcp.pop %v3401
        %v3627 = vrcp.pop %v3402
        %v3628 = vmul.f32 %v3596, %v3612
        %v3629 = vmul.f32 %v3597, %v3613
        %v3630 = vmul.f32 %v3598, %v3614
        %v3631 = vmul.f32 %v3599, %v3615
        %v3632 = vmul.f32 %v3600, %v3616
        %v3633 = vmul.f32 %v3601, %v3617
        %v3634 = vmul.f32 %v3602, %v3618
        %v3635 = vmul.f32 %v3603, %v3619
        %v3636 = vmul.f32 %v3604, %v3620
        %v3637 = vmul.f32 %v3605, %v3621
        %v3638 = vmul.f32 %v3606, %v3622
        %v3639 = vmul.f32 %v3607, %v3623
        %v3640 = vmul.f32 %v3608, %v3624
        %v3641 = vmul.f32 %v3609, %v3625
        %v3642 = vmul.f32 %v3610, %v3626
        %v3643 = vmul.f32 %v3611, %v3627
        %3660 = vrot.lane.b32.xlu0 %v2216, 32
        %v3661 = vpop.permute.xlu0 %3660
        %3662 = vrot.lane.b32.xlu0 %v2217, 32
        %v3663 = vpop.permute.xlu0 %3662
        %3664 = vrot.lane.b32.xlu0 %v2218, 32
        %v3665 = vpop.permute.xlu0 %3664
        %3666 = vrot.lane.b32.xlu0 %v2219, 32
        %v3667 = vpop.permute.xlu0 %3666
        %3668 = vrot.lane.b32.xlu0 %v2220, 32
        %v3669 = vpop.permute.xlu0 %3668
        %3670 = vrot.lane.b32.xlu0 %v2221, 32
        %v3671 = vpop.permute.xlu0 %3670
        %3672 = vrot.lane.b32.xlu0 %v2222, 32
        %v3673 = vpop.permute.xlu0 %3672
        %3674 = vrot.lane.b32.xlu0 %v2223, 32
        %v3675 = vpop.permute.xlu0 %3674
        %3676 = vrot.lane.b32.xlu0 %v2224, 32
        %v3677 = vpop.permute.xlu0 %3676
        %3678 = vrot.lane.b32.xlu0 %v2225, 32
        %v3679 = vpop.permute.xlu0 %3678
        %3680 = vrot.lane.b32.xlu0 %v2226, 32
        %v3681 = vpop.permute.xlu0 %3680
        %3682 = vrot.lane.b32.xlu0 %v2227, 32
        %v3683 = vpop.permute.xlu0 %3682
        %3684 = vrot.lane.b32.xlu0 %v2228, 32
        %v3685 = vpop.permute.xlu0 %3684
        %3686 = vrot.lane.b32.xlu0 %v2229, 32
        %v3687 = vpop.permute.xlu0 %3686
        %3688 = vrot.lane.b32.xlu0 %v2230, 32
        %v3689 = vpop.permute.xlu0 %3688
        %3690 = vrot.lane.b32.xlu0 %v2231, 32
        %v3691 = vpop.permute.xlu0 %3690
        %3724 = vrot.lane.b32.xlu0 %v2922, 64
        %v3725 = vpop.permute.xlu0 %3724
        %3726 = vrot.lane.b32.xlu0 %v2923, 64
        %v3727 = vpop.permute.xlu0 %3726
        %3728 = vrot.lane.b32.xlu0 %v2924, 64
        %v3729 = vpop.permute.xlu0 %3728
        %3730 = vrot.lane.b32.xlu0 %v2925, 64
        %v3731 = vpop.permute.xlu0 %3730
        %3732 = vrot.lane.b32.xlu0 %v2926, 64
        %v3733 = vpop.permute.xlu0 %3732
        %3734 = vrot.lane.b32.xlu0 %v2927, 64
        %v3735 = vpop.permute.xlu0 %3734
        %3736 = vrot.lane.b32.xlu0 %v2928, 64
        %v3737 = vpop.permute.xlu0 %3736
        %3738 = vrot.lane.b32.xlu0 %v2929, 64
        %v3739 = vpop.permute.xlu0 %3738
        %3740 = vrot.lane.b32.xlu0 %v2930, 64
        %v3741 = vpop.permute.xlu0 %3740
        %3742 = vrot.lane.b32.xlu0 %v2931, 64
        %v3743 = vpop.permute.xlu0 %3742
        %3744 = vrot.lane.b32.xlu0 %v2932, 64
        %v3745 = vpop.permute.xlu0 %3744
        %3746 = vrot.lane.b32.xlu0 %v2933, 64
        %v3747 = vpop.permute.xlu0 %3746
        %3748 = vrot.lane.b32.xlu0 %v2934, 64
        %v3749 = vpop.permute.xlu0 %3748
        %3750 = vrot.lane.b32.xlu0 %v2935, 64
        %v3751 = vpop.permute.xlu0 %3750
        %3752 = vrot.lane.b32.xlu0 %v2936, 64
        %v3753 = vpop.permute.xlu0 %3752
        %3754 = vrot.lane.b32.xlu0 %v2937, 64
        %v3755 = vpop.permute.xlu0 %3754
        %3788 = vrot.lane.b32.xlu0 %v3628, 96
        %v3789 = vpop.permute.xlu0 %3788
        %3790 = vrot.lane.b32.xlu0 %v3629, 96
        %v3791 = vpop.permute.xlu0 %3790
        %3792 = vrot.lane.b32.xlu0 %v3630, 96
        %v3793 = vpop.permute.xlu0 %3792
        %3794 = vrot.lane.b32.xlu0 %v3631, 96
        %v3795 = vpop.permute.xlu0 %3794
        %3796 = vrot.lane.b32.xlu0 %v3632, 96
        %v3797 = vpop.permute.xlu0 %3796
        %3798 = vrot.lane.b32.xlu0 %v3633, 96
        %v3799 = vpop.permute.xlu0 %3798
        %3800 = vrot.lane.b32.xlu0 %v3634, 96
        %v3801 = vpop.permute.xlu0 %3800
        %3802 = vrot.lane.b32.xlu0 %v3635, 96
        %v3803 = vpop.permute.xlu0 %3802
        %3804 = vrot.lane.b32.xlu0 %v3636, 96
        %v3805 = vpop.permute.xlu0 %3804
        %3806 = vrot.lane.b32.xlu0 %v3637, 96
        %v3807 = vpop.permute.xlu0 %3806
        %3808 = vrot.lane.b32.xlu0 %v3638, 96
        %v3809 = vpop.permute.xlu0 %3808
        %3810 = vrot.lane.b32.xlu0 %v3639, 96
        %v3811 = vpop.permute.xlu0 %3810
        %3812 = vrot.lane.b32.xlu0 %v3640, 96
        %v3813 = vpop.permute.xlu0 %3812
        %3814 = vrot.lane.b32.xlu0 %v3641, 96
        %v3815 = vpop.permute.xlu0 %3814
        %3816 = vrot.lane.b32.xlu0 %v3642, 96
        %v3817 = vpop.permute.xlu0 %3816
        %3818 = vrot.lane.b32.xlu0 %v3643, 96
        %v3819 = vpop.permute.xlu0 %3818
        %v3836 = vsel %vm883, %v1494, %v3661
        %v3837 = vsel %vm883, %v1495, %v3663
        %v3838 = vsel %vm883, %v1496, %v3665
        %v3839 = vsel %vm883, %v1497, %v3667
        %v3840 = vsel %vm883, %v1498, %v3669
        %v3841 = vsel %vm883, %v1499, %v3671
        %v3842 = vsel %vm883, %v1500, %v3673
        %v3843 = vsel %vm883, %v1501, %v3675
        %v3844 = vsel %vm883, %v1502, %v3677
        %v3845 = vsel %vm883, %v1503, %v3679
        %v3846 = vsel %vm883, %v1504, %v3681
        %v3847 = vsel %vm883, %v1505, %v3683
        %v3848 = vsel %vm883, %v1506, %v3685
        %v3849 = vsel %vm883, %v1507, %v3687
        %v3850 = vsel %vm883, %v1508, %v3689
        %v3851 = vsel %vm883, %v1509, %v3691
        %vm3852 = vcmask 523264
        %v3853 = vsel %vm3852, %v3836, %v3725
        %v3854 = vsel %vm3852, %v3837, %v3727
        %v3855 = vsel %vm3852, %v3838, %v3729
        %v3856 = vsel %vm3852, %v3839, %v3731
        %v3857 = vsel %vm3852, %v3840, %v3733
        %v3858 = vsel %vm3852, %v3841, %v3735
        %v3859 = vsel %vm3852, %v3842, %v3737
        %v3860 = vsel %vm3852, %v3843, %v3739
        %v3861 = vsel %vm3852, %v3844, %v3741
        %v3862 = vsel %vm3852, %v3845, %v3743
        %v3863 = vsel %vm3852, %v3846, %v3745
        %v3864 = vsel %vm3852, %v3847, %v3747
        %v3865 = vsel %vm3852, %v3848, %v3749
        %v3866 = vsel %vm3852, %v3849, %v3751
        %v3867 = vsel %vm3852, %v3850, %v3753
        %v3868 = vsel %vm3852, %v3851, %v3755
        %vm3869 = vcmask 785408
        %v3870 = vsel %vm3869, %v3853, %v3789
        %v3871 = vsel %vm3869, %v3854, %v3791
        %v3872 = vsel %vm3869, %v3855, %v3793
        %v3873 = vsel %vm3869, %v3856, %v3795
        %v3874 = vsel %vm3869, %v3857, %v3797
        %v3875 = vsel %vm3869, %v3858, %v3799
        %v3876 = vsel %vm3869, %v3859, %v3801
        %v3877 = vsel %vm3869, %v3860, %v3803
        %v3878 = vsel %vm3869, %v3861, %v3805
        %v3879 = vsel %vm3869, %v3862, %v3807
        %v3880 = vsel %vm3869, %v3863, %v3809
        %v3881 = vsel %vm3869, %v3864, %v3811
        %v3882 = vsel %vm3869, %v3865, %v3813
        %v3883 = vsel %vm3869, %v3866, %v3815
        %v3884 = vsel %vm3869, %v3867, %v3817
        %v3885 = vsel %vm3869, %v3868, %v3819
        %v3886 = vld [vmem:[#allocation7] sm:$0xff]
        %v3887 = vld [vmem:[#allocation7 + $0x8] sm:$0xff]
        %v3888 = vld [vmem:[#allocation7 + $0x10] sm:$0xff]
        %v3889 = vld [vmem:[#allocation7 + $0x18] sm:$0xff]
        %v3890 = vld [vmem:[#allocation7 + $0x20] sm:$0xff]
        %v3891 = vld [vmem:[#allocation7 + $0x28] sm:$0xff]
        %v3892 = vld [vmem:[#allocation7 + $0x30] sm:$0xff]
        %v3893 = vld [vmem:[#allocation7 + $0x38] sm:$0xff]
        %v3894 = vld [vmem:[#allocation7 + $0x40] sm:$0xff]
        %v3895 = vld [vmem:[#allocation7 + $0x48] sm:$0xff]
        %v3896 = vld [vmem:[#allocation7 + $0x50] sm:$0xff]
        %v3897 = vld [vmem:[#allocation7 + $0x58] sm:$0xff]
        %v3898 = vld [vmem:[#allocation7 + $0x60] sm:$0xff]
        %v3899 = vld [vmem:[#allocation7 + $0x68] sm:$0xff]
        %v3900 = vld [vmem:[#allocation7 + $0x70] sm:$0xff]
        %v3901 = vld [vmem:[#allocation7 + $0x78] sm:$0xff]
        %v3902 = vld [vmem:[%s6] sm:$0x1]
        %v3904 = vlaneseq
        %v3905 = vshrl.u32 %v3904, 7
        %v3906 = vsub.s32 0, %v3905
        %v3907 = vrot.slane %v3902, %v3906
        %3909 = vmatprep.subr.mxu0 0.0
        %3910 = vmatpush1.msra.mxu0 %v3886
        %3911 = vmatprep.subr.mxu0 0.0
        %3912 = vmatpush1.msra.mxu0 %v3887
        %3913 = vmatprep.subr.mxu0 0.0
        %3914 = vmatpush1.msra.mxu0 %v3888
        %3915 = vmatprep.subr.mxu0 0.0
        %3916 = vmatpush1.msra.mxu0 %v3889
        %3917 = vmatprep.subr.mxu0 0.0
        %3918 = vmatpush1.msra.mxu0 %v3890
        %3919 = vmatprep.subr.mxu0 0.0
        %3920 = vmatpush1.msra.mxu0 %v3891
        %3921 = vmatprep.subr.mxu0 0.0
        %3922 = vmatpush1.msra.mxu0 %v3892
        %3923 = vmatprep.subr.mxu0 0.0
        %3924 = vmatpush1.msra.mxu0 %v3893
        %3925 = vmatprep.subr.mxu0 0.0
        %3926 = vmatpush1.msra.mxu0 %v3894
        %3927 = vmatprep.subr.mxu0 0.0
        %3928 = vmatpush1.msra.mxu0 %v3895
        %3929 = vmatprep.subr.mxu0 0.0
        %3930 = vmatpush1.msra.mxu0 %v3896
        %3931 = vmatprep.subr.mxu0 0.0
        %3932 = vmatpush1.msra.mxu0 %v3897
        %3933 = vmatprep.subr.mxu0 0.0
        %3934 = vmatpush1.msra.mxu0 %v3898
        %3935 = vmatprep.subr.mxu0 0.0
        %3936 = vmatpush1.msra.mxu0 %v3899
        %3937 = vmatprep.subr.mxu0 0.0
        %3938 = vmatpush1.msra.mxu0 %v3900
        %3939 = vmatprep.subr.mxu0 0.0
        %3940 = vmatpush1.msra.mxu0 %v3901
        %3941 = vmatprep.subr.mxu0 0.0
        %3942 = vmatpush1.msra.mxu0 0.0
        %3943 = vmatprep.subr.mxu0 0.0
        %3944 = vmatpush1.msra.mxu0 0.0
        %3945 = vmatprep.subr.mxu0 0.0
        %3946 = vmatpush1.msra.mxu0 0.0
        %3947 = vmatprep.subr.mxu0 0.0
        %3948 = vmatpush1.msra.mxu0 0.0
        %3949 = vmatprep.subr.mxu0 0.0
        %3950 = vmatpush1.msra.mxu0 0.0
        %3951 = vmatprep.subr.mxu0 0.0
        %3952 = vmatpush1.msra.mxu0 0.0
        %3953 = vmatprep.subr.mxu0 0.0
        %3954 = vmatpush1.msra.mxu0 0.0
        %3955 = vmatprep.subr.mxu0 0.0
        %3956 = vmatpush1.msra.mxu0 0.0
        %3957 = vmatprep.subr.mxu0 0.0
        %3958 = vmatpush1.msra.mxu0 0.0
        %3959 = vmatprep.subr.mxu0 0.0
        %3960 = vmatpush1.msra.mxu0 0.0
        %3961 = vmatprep.subr.mxu0 0.0
        %3962 = vmatpush1.msra.mxu0 0.0
        %3963 = vmatprep.subr.mxu0 0.0
        %3964 = vmatpush1.msra.mxu0 0.0
        %3965 = vmatprep.subr.mxu0 0.0
        %3966 = vmatpush1.msra.mxu0 0.0
        %3967 = vmatprep.subr.mxu0 0.0
        %3968 = vmatpush1.msra.mxu0 0.0
        %3969 = vmatprep.subr.mxu0 0.0
        %3970 = vmatpush1.msra.mxu0 0.0
        %3971 = vmatprep.subr.mxu0 0.0
        %3972 = vmatpush1.msra.mxu0 0.0
        %3973 = vmatprep.mubr.f32.mxu0 0.0
        %3974 = vmatmul.mubr.f32.gmra.mrb[0].mxu0 %v3870
        %v3975 = vpop.f32.mrb[0].mxu0
        %v3976 = vadd.f32 %v3907, %v3975
        %v3977 = vpop.f32.mrb[0].mxu0
        %3978 = vmatprep.mubr.f32.mxu0 0.0
        %3979 = vmatmul.mubr.f32.gmra.mrb[0].mxu0 %v3871
        %v3980 = vpop.f32.mrb[0].mxu0
        %v3981 = vadd.f32 %v3907, %v3980
        %v3982 = vpop.f32.mrb[0].mxu0
        %3983 = vmatprep.mubr.f32.mxu0 0.0
        %3984 = vmatmul.mubr.f32.gmra.mrb[0].mxu0 %v3872
        %v3985 = vpop.f32.mrb[0].mxu0
        %v3986 = vadd.f32 %v3907, %v3985
        %v3987 = vpop.f32.mrb[0].mxu0
        %3988 = vmatprep.mubr.f32.mxu0 0.0
        %3989 = vmatmul.mubr.f32.gmra.mrb[0].mxu0 %v3873
        %v3990 = vpop.f32.mrb[0].mxu0
        %v3991 = vadd.f32 %v3907, %v3990
        %v3992 = vpop.f32.mrb[0].mxu0
        %3993 = vmatprep.mubr.f32.mxu0 0.0
        %3994 = vmatmul.mubr.f32.gmra.mrb[0].mxu0 %v3874
        %v3995 = vpop.f32.mrb[0].mxu0
        %v3996 = vadd.f32 %v3907, %v3995
        %v3997 = vpop.f32.mrb[0].mxu0
        %3998 = vmatprep.mubr.f32.mxu0 0.0
        %3999 = vmatmul.mubr.f32.gmra.mrb[0].mxu0 %v3875
        %v4000 = vpop.f32.mrb[0].mxu0
        %v4001 = vadd.f32 %v3907, %v4000
        %v4002 = vpop.f32.mrb[0].mxu0
        %4003 = vmatprep.mubr.f32.mxu0 0.0
        %4004 = vmatmul.mubr.f32.gmra.mrb[0].mxu0 %v3876
        %v4005 = vpop.f32.mrb[0].mxu0
        %v4006 = vadd.f32 %v3907, %v4005
        %v4007 = vpop.f32.mrb[0].mxu0
        %4008 = vmatprep.mubr.f32.mxu0 0.0
        %4009 = vmatmul.mubr.f32.gmra.mrb[0].mxu0 %v3877
        %v4010 = vpop.f32.mrb[0].mxu0
        %v4011 = vadd.f32 %v3907, %v4010
        %v4012 = vpop.f32.mrb[0].mxu0
        %4013 = vmatprep.mubr.f32.mxu0 0.0
        %4014 = vmatmul.mubr.f32.gmra.mrb[0].mxu0 %v3878
        %v4015 = vpop.f32.mrb[0].mxu0
        %v4016 = vadd.f32 %v3907, %v4015
        %v4017 = vpop.f32.mrb[0].mxu0
        %4018 = vmatprep.mubr.f32.mxu0 0.0
        %4019 = vmatmul.mubr.f32.gmra.mrb[0].mxu0 %v3879
        %v4020 = vpop.f32.mrb[0].mxu0
        %v4021 = vadd.f32 %v3907, %v4020
        %v4022 = vpop.f32.mrb[0].mxu0
        %4023 = vmatprep.mubr.f32.mxu0 0.0
        %4024 = vmatmul.mubr.f32.gmra.mrb[0].mxu0 %v3880
        %v4025 = vpop.f32.mrb[0].mxu0
        %v4026 = vadd.f32 %v3907, %v4025
        %v4027 = vpop.f32.mrb[0].mxu0
        %4028 = vmatprep.mubr.f32.mxu0 0.0
        %4029 = vmatmul.mubr.f32.gmra.mrb[0].mxu0 %v3881
        %v4030 = vpop.f32.mrb[0].mxu0
        %v4031 = vadd.f32 %v3907, %v4030
        %v4032 = vpop.f32.mrb[0].mxu0
        %4033 = vmatprep.mubr.f32.mxu0 0.0
        %4034 = vmatmul.mubr.f32.gmra.mrb[0].mxu0 %v3882
        %v4035 = vpop.f32.mrb[0].mxu0
        %v4036 = vadd.f32 %v3907, %v4035
        %v4037 = vpop.f32.mrb[0].mxu0
        %4038 = vmatprep.mubr.f32.mxu0 0.0
        %4039 = vmatmul.mubr.f32.gmra.mrb[0].mxu0 %v3883
        %v4040 = vpop.f32.mrb[0].mxu0
        %v4041 = vadd.f32 %v3907, %v4040
        %v4042 = vpop.f32.mrb[0].mxu0
        %4043 = vmatprep.mubr.f32.mxu0 0.0
        %4044 = vmatmul.mubr.f32.gmra.mrb[0].mxu0 %v3884
        %v4045 = vpop.f32.mrb[0].mxu0
        %v4046 = vadd.f32 %v3907, %v4045
        %v4047 = vpop.f32.mrb[0].mxu0
        %4048 = vmatprep.mubr.f32.mxu0 0.0
        %4049 = vmatmul.mubr.f32.gmra.mrb[0].mxu0 %v3885
        %v4050 = vpop.f32.mrb[0].mxu0
        %v4051 = vadd.f32 %v3907, %v4050
        %v4052 = vpop.f32.mrb[0].mxu0
        %4053 = vdwg.mxu0
        %v4054 = vadd.f32 %v326, %v3976
        %v4055 = vadd.f32 %v327, %v3981
        %v4056 = vadd.f32 %v328, %v3986
        %v4057 = vadd.f32 %v329, %v3991
        %v4058 = vadd.f32 %v330, %v3996
        %v4059 = vadd.f32 %v331, %v4001
        %v4060 = vadd.f32 %v332, %v4006
        %v4061 = vadd.f32 %v333, %v4011
        %v4062 = vadd.f32 %v334, %v4016
        %v4063 = vadd.f32 %v335, %v4021
        %v4064 = vadd.f32 %v336, %v4026
        %v4065 = vadd.f32 %v337, %v4031
        %v4066 = vadd.f32 %v338, %v4036
        %v4067 = vadd.f32 %v339, %v4041
        %v4068 = vadd.f32 %v340, %v4046
        %v4069 = vadd.f32 %v341, %v4051
        %4070 = vst [vmem:[%s325] sm:$0xff] %v4054
        %4071 = vst [vmem:[%s325 + $0x8] sm:$0xff] %v4055
        %4072 = vst [vmem:[%s325 + $0x10] sm:$0xff] %v4056
        %4073 = vst [vmem:[%s325 + $0x18] sm:$0xff] %v4057
        %4074 = vst [vmem:[%s325 + $0x20] sm:$0xff] %v4058
        %4075 = vst [vmem:[%s325 + $0x28] sm:$0xff] %v4059
        %4076 = vst [vmem:[%s325 + $0x30] sm:$0xff] %v4060
        %4077 = vst [vmem:[%s325 + $0x38] sm:$0xff] %v4061
        %4078 = vst [vmem:[%s325 + $0x40] sm:$0xff] %v4062
        %4079 = vst [vmem:[%s325 + $0x48] sm:$0xff] %v4063
        %4080 = vst [vmem:[%s325 + $0x50] sm:$0xff] %v4064
        %4081 = vst [vmem:[%s325 + $0x58] sm:$0xff] %v4065
        %4082 = vst [vmem:[%s325 + $0x60] sm:$0xff] %v4066
        %4083 = vst [vmem:[%s325 + $0x68] sm:$0xff] %v4067
        %4084 = vst [vmem:[%s325 + $0x70] sm:$0xff] %v4068
        %4085 = vst [vmem:[%s325 + $0x78] sm:$0xff] %v4069
        %s4086 = sand.u32 %s185, 1
        %s4087 = scalar_lea.sflag [#allocation4], %s4086
        %s4088 = sand.u32 %s185, 1
        %s4089 = smul.addr %s4088, 128
        %s4090 = scalar_lea.vmem [#allocation8], %s4089
        // Predicated region
        $region61: #{tpu_custom_call.1} parent=47 // pred_check
          %p4091 = pneg %p195
        $region62: #{tpu_custom_call.1} parent=47 // pred_check_branch
          %4093 = sbr.rel (%p4091) target = $region64
        $region63: #{tpu_custom_call.1} parent=47 // pred_region
          %s4095 = ssub.s32 2048, 2048
          %4096 = vsyncadd %s4087, %s4095
          %s4097 = smul.addr %s25, 16
          %s4098 = smul.addr %s4097, 128
          %s4099 = scalar_lea.hbm %s7, %s4098
          %s4100 = sshll.u32 %s4090, 4
          %s4101 = int_to_ptr.vmem [resolvable:$true] %s4100
          %4106 = dma.vmem_to_hbm [thread:$0]  %s4101, 2048, %s4099, %s4087, 128, 128, 8
        $region64: #{tpu_custom_call.1} parent=47 // pred_fallthru
          _
      $region48: #{tpu_custom_call.1} parent=5 // pred_fallthru
        _
      %p4107 = scmp.le.s32.totalorder 2, %s20
      // Predicated region
      $region65: #{tpu_custom_call.1} parent=5 // pred_check
        %p4108 = pneg %p4107
      $region66: #{tpu_custom_call.1} parent=5 // pred_check_branch
        %4110 = sbr.rel (%p4108) target = $region68
      $region67: #{tpu_custom_call.1} parent=5 // pred_region
        %s4111 = ssub.s32 %s20, 2
        // Predicated region
        $region69: #{tpu_custom_call.1} parent=67 // pred_check
          %p4112 = pneg %p201
        $region70: #{tpu_custom_call.1} parent=67 // pred_check_branch
          %4114 = sbr.rel (%p4112) target = $region72
        $region71: #{tpu_custom_call.1} parent=67 // pred_region
          %s4115 = sand.u32 %s186, 1
          %s4116 = scalar_lea.sflag [#allocation4], %s4115
          %s4117 = sand.u32 %s186, 1
          %s4118 = smul.addr %s4117, 128
          %s4119 = scalar_lea.vmem [#allocation8], %s4118
          %4120 = dma.done %s4116, 2048
        $region72: #{tpu_custom_call.1} parent=67 // pred_fallthru
          _
      $region68: #{tpu_custom_call.1} parent=5 // pred_fallthru
        _
    $region6: #{tpu_custom_call.1} parent=1 // loop_footer
      %s24 = sadd.s32 1, %s20
    $region7: #{tpu_custom_call.1} parent=1 // loop_footer_branch
      %19 = sbr.rel target = $region3
    $region8: #{tpu_custom_call.1} parent=1 // loop_exit
      _
    %4121 = vsyncpa [#allocation3], 1
    %s4122 = scalar_lea.sflag [#allocation3], 1
    %4123 = vsyncpa %s4122, 1
    %4124 = vsyncpa [#allocation6], 1
    %4125 = vsyncpa [#allocation4], 1
    %s4126 = scalar_lea.sflag [#allocation4], 1
    %4127 = vsyncpa %s4126, 1

</llo_original>
